<compile_context>
chip_gen: v7x
topology: tpu7x:2x2x1
jax: 0.10.0
libtpu: 0.0.40
codegen_flags: <defaults>
</compile_context>

<pallas_src>
import functools

import jax
import jax.numpy as jnp
from jax.experimental import pallas as pl
from jax.experimental.pallas import tpu as pltpu


def _round_up(x, m):
    return (x + m - 1) // m * m


def _tap_shifts(wp: int, nflat: int):
    # Lane shift per 3x3 tap (tap index k = ky*3 + kx) such that
    # rolled[i] = x[i + (ky-1)*wp + (kx-1)] for all interior canvas positions.
    shifts = []
    for ky in range(3):
        for kx in range(3):
            off = (ky - 1) * wp + (kx - 1)
            shifts.append((-off) % nflat)
    return tuple(shifts)


def _fold_bn(w, b, gamma, beta, mean, var, eps=1e-5):
    # BN(conv(x; w, b)) == conv(x; w*s, (b-mean)*s + beta), s = gamma/sqrt(var+eps)
    scale = gamma / jnp.sqrt(var + eps)
    return w * scale[:, None, None, None], (b - mean) * scale + beta


def _taps(w):
    # (C_out, C_in, 3, 3) -> (9, C_out, C_in), tap k = ky*3 + kx
    c_out, c_in = w.shape[0], w.shape[1]
    return jnp.transpose(w, (2, 3, 0, 1)).reshape(9, c_out, c_in)


def _make_kernel(shifts):
    def kernel(xs_ref, m_ref, w1_ref, b1_ref, w2_ref, b2_ref,
               feat_ref, mid_ref):
        xs = xs_ref[0]          # (9*C_in, Nflat): im2col-stacked padded input
        mask = m_ref[...]       # (1, Nflat): 1.0 on valid spatial positions

        # conv1 + folded BN1 as ONE stacked MXU matmul, then bias + ReLU.
        # The mask re-zeroes the padding ring so it serves as conv2's zero pad.
        y1 = jnp.dot(w1_ref[...], xs, preferred_element_type=jnp.float32)
        y1 = jnp.maximum(y1 + b1_ref[...], 0.0) * mask
        mid_ref[0] = y1

        # conv2 + folded BN2: 9 accumulated f32 MXU matmuls over lane-rolled
        # copies of y1 (pltpu.roll -> XLU; no transposes, no reshapes).
        acc = jnp.dot(w2_ref[4], y1, preferred_element_type=jnp.float32)
        for k, s in enumerate(shifts):
            if k == 4:  # center tap already accumulated (shift == 0)
                continue
            acc = acc + jnp.dot(w2_ref[k], pltpu.roll(y1, s, 1),
                                preferred_element_type=jnp.float32)
        feat_ref[0] = jnp.maximum(acc + b2_ref[...], 0.0)

    return kernel


@functools.partial(jax.jit, static_argnames=("mid",))
def two_conv_bn_rule(x, params, mid=False):
    """x: (b, in_chan, h, w) float32 NCHW. Returns feat [, feat_mid]."""
    b, c_in, h, w = x.shape
    c_out = params["w1"].shape[0]
    hp, wp = h + 2, w + 2
    n_canvas = hp * wp
    nflat = _round_up(n_canvas, 128)
    shifts = _tap_shifts(wp, nflat)

    # ---- parameter prep: fold BN, build tap-layouts ----
    w1f, b1f = _fold_bn(params["w1"], params["b1"], *params["bn1"])
    w2f, b2f = _fold_bn(params["w2"], params["b2"], *params["bn2"])
    w1t = _taps(w1f)                                             # (9,Cout,Cin)
    w1s = jnp.transpose(w1t, (1, 0, 2)).reshape(c_out, 9 * c_in)  # stacked
    w1s = w1s.astype(jnp.float32)
    w2t = _taps(w2f).astype(jnp.float32)                          # (9,Cout,Cout)
    b1c = b1f.reshape(c_out, 1).astype(jnp.float32)
    b2c = b2f.reshape(c_out, 1).astype(jnp.float32)

    # ---- activation prep: zero-pad canvas, flatten, lane-pad, pre-shift ----
    x_pad = jnp.pad(x.astype(jnp.float32), ((0, 0), (0, 0), (1, 1), (1, 1)))
    x_flat = x_pad.reshape(b, c_in, n_canvas)
    x_flat = jnp.pad(x_flat, ((0, 0), (0, 0), (0, nflat - n_canvas)))
    x_taps = jnp.stack([jnp.roll(x_flat, s, axis=-1) for s in shifts], axis=1)
    x_taps = x_taps.reshape(b, 9 * c_in, nflat)

    mask2d = jnp.zeros((hp, wp), jnp.float32).at[1:h + 1, 1:w + 1].set(1.0)
    mask = jnp.pad(mask2d.reshape(1, n_canvas),
                   ((0, 0), (0, nflat - n_canvas)))

    # ---- pallas_call ----
    x_spec = pl.BlockSpec((1, 9 * c_in, nflat), lambda i: (i, 0, 0))
    o_spec = pl.BlockSpec((1, c_out, nflat), lambda i: (i, 0, 0))
    m_spec = pl.BlockSpec((1, nflat), lambda i: (0, 0))
    w1_spec = pl.BlockSpec((c_out, 9 * c_in), lambda i: (0, 0))
    w2_spec = pl.BlockSpec((9, c_out, c_out), lambda i: (0, 0, 0))
    b_spec = pl.BlockSpec((c_out, 1), lambda i: (0, 0))

    feat_flat, mid_flat = pl.pallas_call(
        _make_kernel(shifts),
        out_shape=(jax.ShapeDtypeStruct((b, c_out, nflat), jnp.float32),
                   jax.ShapeDtypeStruct((b, c_out, nflat), jnp.float32)),
        grid=(b,),
        in_specs=[x_spec, m_spec, w1_spec, b_spec, w2_spec, b_spec],
        out_specs=(o_spec, o_spec),
        compiler_params=pltpu.CompilerParams(
            dimension_semantics=("parallel",)),
    )(x_taps, mask, w1s, b1c, w2t, b2c)

    def to_nchw(y):
        y = y[:, :, :n_canvas].reshape(b, c_out, hp, wp)
        return y[:, :, 1:h + 1, 1:w + 1]

    feat = to_nchw(feat_flat)
    if mid:
        return feat, to_nchw(mid_flat)
    return feat


def _reference(x, params, mid=False):
    """Pure-JAX reference (eval-mode BN), mirrors the PyTorch forward."""
    def conv(x, w, b):
        y = jax.lax.conv_general_dilated(
            x, w, window_strides=(1, 1), padding=((1, 1), (1, 1)),
            dimension_numbers=("NCHW", "OIHW", "NCHW"))
        return y + b[None, :, None, None]

    def bn(y, gamma, beta, mean, var, eps=1e-5):
        inv = gamma / jnp.sqrt(var + eps)
        return ((y - mean[None, :, None, None]) * inv[None, :, None, None]
                + beta[None, :, None, None])

    f1 = jax.nn.relu(bn(conv(x, params["w1"], params["b1"]), *params["bn1"]))
    f2 = jax.nn.relu(bn(conv(f1, params["w2"], params["b2"]), *params["bn2"]))
    return (f2, f1) if mid else f2


if __name__ == "__main__":
    key = jax.random.PRNGKey(0)
    keys = jax.random.split(key, 13)
    (kx, kw1, kb1, kw2, kb2,
     kg1, kbe1, km1, kv1, kg2, kbe2, km2, kv2) = keys

    batch, in_chan, height, width = 2, 4, 16, 16
    out_chan = 64  # module default

    x = jax.random.normal(kx, (batch, in_chan, height, width), jnp.float32)

    params = {
        "w1": 0.1 * jax.random.normal(kw1, (out_chan, in_chan, 3, 3), jnp.float32),
        "b1": 0.05 * jax.random.normal(kb1, (out_chan,), jnp.float32),
        "bn1": (0.5 + jax.random.uniform(kg1, (out_chan,), jnp.float32),    # gamma
                0.05 * jax.random.normal(kbe1, (out_chan,), jnp.float32),   # beta
                0.05 * jax.random.normal(km1, (out_chan,), jnp.float32),    # running_mean
                0.5 + jax.random.uniform(kv1, (out_chan,), jnp.float32)),   # running_var
        "w2": 0.05 * jax.random.normal(kw2, (out_chan, out_chan, 3, 3), jnp.float32),
        "b2": 0.05 * jax.random.normal(kb2, (out_chan,), jnp.float32),
        "bn2": (0.5 + jax.random.uniform(kg2, (out_chan,), jnp.float32),
                0.05 * jax.random.normal(kbe2, (out_chan,), jnp.float32),
                0.05 * jax.random.normal(km2, (out_chan,), jnp.float32),
                0.5 + jax.random.uniform(kv2, (out_chan,), jnp.float32)),
    }

    feat, feat_mid = two_conv_bn_rule(x, params, mid=True)
    jax.block_until_ready((feat, feat_mid))

    ref_feat, ref_mid = _reference(x, params, mid=True)
    assert feat.shape == (batch, out_chan, height, width)
    assert feat_mid.shape == (batch, out_chan, height, width)
    assert jnp.allclose(feat_mid, ref_mid, atol=2e-3, rtol=2e-3), float(
        jnp.max(jnp.abs(feat_mid - ref_mid)))
    assert jnp.allclose(feat, ref_feat, atol=2e-3, rtol=2e-3), float(
        jnp.max(jnp.abs(feat - ref_feat)))
    print("KERNEL_OK")
</pallas_src>

<mosaic_0001>
module attributes {stable_mosaic.version = 11 : i64} {
  func.func @kernel(%arg0: i32, %arg1: memref<1x36x384xf32, #tpu.memory_space<vmem>>, %arg2: memref<1x384xf32, #tpu.memory_space<vmem>>, %arg3: memref<64x36xf32, #tpu.memory_space<vmem>>, %arg4: memref<64x1xf32, #tpu.memory_space<vmem>>, %arg5: memref<9x64x64xf32, #tpu.memory_space<vmem>>, %arg6: memref<64x1xf32, #tpu.memory_space<vmem>>, %arg7: memref<1x64x384xf32, #tpu.memory_space<vmem>>, %arg8: memref<1x64x384xf32, #tpu.memory_space<vmem>>) attributes {dimension_semantics = [#tpu.dimension_semantics<parallel>], iteration_bounds = array<i64: 2>, scalar_prefetch = 0 : i64, scratch_operands = 0 : i64, tpu.core_type = #tpu.core_type<tc>, window_params = [{transform_indices = @transform_0, window_bounds = array<i64: 1, 36, 384>}, {pipeline_mode = #tpu.pipeline_mode<synchronous>, transform_indices = @transform_1, window_bounds = array<i64: 1, 384>}, {pipeline_mode = #tpu.pipeline_mode<synchronous>, transform_indices = @transform_2, window_bounds = array<i64: 64, 36>}, {pipeline_mode = #tpu.pipeline_mode<synchronous>, transform_indices = @transform_3, window_bounds = array<i64: 64, 1>}, {pipeline_mode = #tpu.pipeline_mode<synchronous>, transform_indices = @transform_4, window_bounds = array<i64: 9, 64, 64>}, {pipeline_mode = #tpu.pipeline_mode<synchronous>, transform_indices = @transform_5, window_bounds = array<i64: 64, 1>}, {transform_indices = @transform_6, window_bounds = array<i64: 1, 64, 384>}, {transform_indices = @transform_7, window_bounds = array<i64: 1, 64, 384>}]} {
    %c0 = arith.constant 0 : index
    %c0_0 = arith.constant 0 : index
    %c0_1 = arith.constant 0 : index
    %0 = vector.load %arg1[%c0, %c0_0, %c0_1] : memref<1x36x384xf32, #tpu.memory_space<vmem>>, vector<1x36x384xf32>
    %1 = vector.shape_cast %0 : vector<1x36x384xf32> to vector<36x384xf32>
    %c0_2 = arith.constant 0 : index
    %c0_3 = arith.constant 0 : index
    %2 = vector.load %arg2[%c0_2, %c0_3] : memref<1x384xf32, #tpu.memory_space<vmem>>, vector<1x384xf32>
    %c0_4 = arith.constant 0 : index
    %c0_5 = arith.constant 0 : index
    %3 = vector.load %arg3[%c0_4, %c0_5] : memref<64x36xf32, #tpu.memory_space<vmem>>, vector<64x36xf32>
    %cst = arith.constant dense<0.000000e+00> : vector<64x384xf32>
    %4 = tpu.matmul %3, %1, %cst {dimension_numbers = #tpu.dot_dimension_numbers<[1], [0], [0], [1], [0, 0, 1, 1], [], []>} : vector<64x36xf32>, vector<36x384xf32>, vector<64x384xf32> -> vector<64x384xf32>
    %c0_6 = arith.constant 0 : index
    %c0_7 = arith.constant 0 : index
    %5 = vector.load %arg4[%c0_6, %c0_7] : memref<64x1xf32, #tpu.memory_space<vmem>>, vector<64x1xf32>
    %6 = vector.broadcast %5 : vector<64x1xf32> to vector<64x384xf32>
    %7 = arith.addf %4, %6 : vector<64x384xf32>
    %cst_8 = arith.constant 0.000000e+00 : f32
    %8 = vector.broadcast %cst_8 : f32 to vector<64x384xf32>
    %9 = arith.maximumf %7, %8 : vector<64x384xf32>
    %10 = vector.broadcast %2 : vector<1x384xf32> to vector<64x384xf32>
    %11 = arith.mulf %9, %10 : vector<64x384xf32>
    %c0_9 = arith.constant 0 : index
    %c0_10 = arith.constant 0 : index
    %c0_11 = arith.constant 0 : index
    %12 = vector.load %arg8[%c0_9, %c0_10, %c0_11] : memref<1x64x384xf32, #tpu.memory_space<vmem>>, vector<1x64x384xf32>
    %13 = vector.shape_cast %12 : vector<1x64x384xf32> to vector<64x384xf32>
    %14 = vector.shape_cast %11 : vector<64x384xf32> to vector<1x64x384xf32>
    tpu.vector_store %arg8[%c0_9, %c0_10, %c0_11], %14 {strides = array<i32>} : memref<1x64x384xf32, #tpu.memory_space<vmem>>, vector<1x64x384xf32>,
    %c4 = arith.constant 4 : index
    %c0_12 = arith.constant 0 : index
    %c0_13 = arith.constant 0 : index
    %15 = vector.load %arg5[%c4, %c0_12, %c0_13] : memref<9x64x64xf32, #tpu.memory_space<vmem>>, vector<1x64x64xf32>
    %16 = vector.shape_cast %15 : vector<1x64x64xf32> to vector<64x64xf32>
    %cst_14 = arith.constant dense<0.000000e+00> : vector<64x384xf32>
    %17 = tpu.matmul %16, %11, %cst_14 {dimension_numbers = #tpu.dot_dimension_numbers<[1], [0], [0], [1], [0, 0, 1, 1], [], []>} : vector<64x64xf32>, vector<64x384xf32>, vector<64x384xf32> -> vector<64x384xf32>
    %c0_15 = arith.constant 0 : index
    %c0_16 = arith.constant 0 : index
    %c0_17 = arith.constant 0 : index
    %18 = vector.load %arg5[%c0_15, %c0_16, %c0_17] : memref<9x64x64xf32, #tpu.memory_space<vmem>>, vector<1x64x64xf32>
    %19 = vector.shape_cast %18 : vector<1x64x64xf32> to vector<64x64xf32>
    %c19_i32 = arith.constant 19 : i32
    %20 = tpu.dynamic_rotate %11 by %c19_i32 dim 1 : vector<64x384xf32>, i32 -> vector<64x384xf32>
    %cst_18 = arith.constant dense<0.000000e+00> : vector<64x384xf32>
    %21 = tpu.matmul %19, %20, %cst_18 {dimension_numbers = #tpu.dot_dimension_numbers<[1], [0], [0], [1], [0, 0, 1, 1], [], []>} : vector<64x64xf32>, vector<64x384xf32>, vector<64x384xf32> -> vector<64x384xf32>
    %22 = arith.addf %17, %21 : vector<64x384xf32>
    %c1 = arith.constant 1 : index
    %c0_19 = arith.constant 0 : index
    %c0_20 = arith.constant 0 : index
    %23 = vector.load %arg5[%c1, %c0_19, %c0_20] : memref<9x64x64xf32, #tpu.memory_space<vmem>>, vector<1x64x64xf32>
    %24 = vector.shape_cast %23 : vector<1x64x64xf32> to vector<64x64xf32>
    %c18_i32 = arith.constant 18 : i32
    %25 = tpu.dynamic_rotate %11 by %c18_i32 dim 1 : vector<64x384xf32>, i32 -> vector<64x384xf32>
    %cst_21 = arith.constant dense<0.000000e+00> : vector<64x384xf32>
    %26 = tpu.matmul %24, %25, %cst_21 {dimension_numbers = #tpu.dot_dimension_numbers<[1], [0], [0], [1], [0, 0, 1, 1], [], []>} : vector<64x64xf32>, vector<64x384xf32>, vector<64x384xf32> -> vector<64x384xf32>
    %27 = arith.addf %22, %26 : vector<64x384xf32>
    %c2 = arith.constant 2 : index
    %c0_22 = arith.constant 0 : index
    %c0_23 = arith.constant 0 : index
    %28 = vector.load %arg5[%c2, %c0_22, %c0_23] : memref<9x64x64xf32, #tpu.memory_space<vmem>>, vector<1x64x64xf32>
    %29 = vector.shape_cast %28 : vector<1x64x64xf32> to vector<64x64xf32>
    %c17_i32 = arith.constant 17 : i32
    %30 = tpu.dynamic_rotate %11 by %c17_i32 dim 1 : vector<64x384xf32>, i32 -> vector<64x384xf32>
    %cst_24 = arith.constant dense<0.000000e+00> : vector<64x384xf32>
    %31 = tpu.matmul %29, %30, %cst_24 {dimension_numbers = #tpu.dot_dimension_numbers<[1], [0], [0], [1], [0, 0, 1, 1], [], []>} : vector<64x64xf32>, vector<64x384xf32>, vector<64x384xf32> -> vector<64x384xf32>
    %32 = arith.addf %27, %31 : vector<64x384xf32>
    %c3 = arith.constant 3 : index
    %c0_25 = arith.constant 0 : index
    %c0_26 = arith.constant 0 : index
    %33 = vector.load %arg5[%c3, %c0_25, %c0_26] : memref<9x64x64xf32, #tpu.memory_space<vmem>>, vector<1x64x64xf32>
    %34 = vector.shape_cast %33 : vector<1x64x64xf32> to vector<64x64xf32>
    %c1_i32 = arith.constant 1 : i32
    %35 = tpu.dynamic_rotate %11 by %c1_i32 dim 1 : vector<64x384xf32>, i32 -> vector<64x384xf32>
    %cst_27 = arith.constant dense<0.000000e+00> : vector<64x384xf32>
    %36 = tpu.matmul %34, %35, %cst_27 {dimension_numbers = #tpu.dot_dimension_numbers<[1], [0], [0], [1], [0, 0, 1, 1], [], []>} : vector<64x64xf32>, vector<64x384xf32>, vector<64x384xf32> -> vector<64x384xf32>
    %37 = arith.addf %32, %36 : vector<64x384xf32>
    %c5 = arith.constant 5 : index
    %c0_28 = arith.constant 0 : index
    %c0_29 = arith.constant 0 : index
    %38 = vector.load %arg5[%c5, %c0_28, %c0_29] : memref<9x64x64xf32, #tpu.memory_space<vmem>>, vector<1x64x64xf32>
    %39 = vector.shape_cast %38 : vector<1x64x64xf32> to vector<64x64xf32>
    %c383_i32 = arith.constant 383 : i32
    %40 = tpu.dynamic_rotate %11 by %c383_i32 dim 1 : vector<64x384xf32>, i32 -> vector<64x384xf32>
    %cst_30 = arith.constant dense<0.000000e+00> : vector<64x384xf32>
    %41 = tpu.matmul %39, %40, %cst_30 {dimension_numbers = #tpu.dot_dimension_numbers<[1], [0], [0], [1], [0, 0, 1, 1], [], []>} : vector<64x64xf32>, vector<64x384xf32>, vector<64x384xf32> -> vector<64x384xf32>
    %42 = arith.addf %37, %41 : vector<64x384xf32>
    %c6 = arith.constant 6 : index
    %c0_31 = arith.constant 0 : index
    %c0_32 = arith.constant 0 : index
    %43 = vector.load %arg5[%c6, %c0_31, %c0_32] : memref<9x64x64xf32, #tpu.memory_space<vmem>>, vector<1x64x64xf32>
    %44 = vector.shape_cast %43 : vector<1x64x64xf32> to vector<64x64xf32>
    %c367_i32 = arith.constant 367 : i32
    %45 = tpu.dynamic_rotate %11 by %c367_i32 dim 1 : vector<64x384xf32>, i32 -> vector<64x384xf32>
    %cst_33 = arith.constant dense<0.000000e+00> : vector<64x384xf32>
    %46 = tpu.matmul %44, %45, %cst_33 {dimension_numbers = #tpu.dot_dimension_numbers<[1], [0], [0], [1], [0, 0, 1, 1], [], []>} : vector<64x64xf32>, vector<64x384xf32>, vector<64x384xf32> -> vector<64x384xf32>
    %47 = arith.addf %42, %46 : vector<64x384xf32>
    %c7 = arith.constant 7 : index
    %c0_34 = arith.constant 0 : index
    %c0_35 = arith.constant 0 : index
    %48 = vector.load %arg5[%c7, %c0_34, %c0_35] : memref<9x64x64xf32, #tpu.memory_space<vmem>>, vector<1x64x64xf32>
    %49 = vector.shape_cast %48 : vector<1x64x64xf32> to vector<64x64xf32>
    %c366_i32 = arith.constant 366 : i32
    %50 = tpu.dynamic_rotate %11 by %c366_i32 dim 1 : vector<64x384xf32>, i32 -> vector<64x384xf32>
    %cst_36 = arith.constant dense<0.000000e+00> : vector<64x384xf32>
    %51 = tpu.matmul %49, %50, %cst_36 {dimension_numbers = #tpu.dot_dimension_numbers<[1], [0], [0], [1], [0, 0, 1, 1], [], []>} : vector<64x64xf32>, vector<64x384xf32>, vector<64x384xf32> -> vector<64x384xf32>
    %52 = arith.addf %47, %51 : vector<64x384xf32>
    %c8 = arith.constant 8 : index
    %c0_37 = arith.constant 0 : index
    %c0_38 = arith.constant 0 : index
    %53 = vector.load %arg5[%c8, %c0_37, %c0_38] : memref<9x64x64xf32, #tpu.memory_space<vmem>>, vector<1x64x64xf32>
    %54 = vector.shape_cast %53 : vector<1x64x64xf32> to vector<64x64xf32>
    %c365_i32 = arith.constant 365 : i32
    %55 = tpu.dynamic_rotate %11 by %c365_i32 dim 1 : vector<64x384xf32>, i32 -> vector<64x384xf32>
    %cst_39 = arith.constant dense<0.000000e+00> : vector<64x384xf32>
    %56 = tpu.matmul %54, %55, %cst_39 {dimension_numbers = #tpu.dot_dimension_numbers<[1], [0], [0], [1], [0, 0, 1, 1], [], []>} : vector<64x64xf32>, vector<64x384xf32>, vector<64x384xf32> -> vector<64x384xf32>
    %57 = arith.addf %52, %56 : vector<64x384xf32>
    %c0_40 = arith.constant 0 : index
    %c0_41 = arith.constant 0 : index
    %58 = vector.load %arg6[%c0_40, %c0_41] : memref<64x1xf32, #tpu.memory_space<vmem>>, vector<64x1xf32>
    %59 = vector.broadcast %58 : vector<64x1xf32> to vector<64x384xf32>
    %60 = arith.addf %57, %59 : vector<64x384xf32>
    %cst_42 = arith.constant 0.000000e+00 : f32
    %61 = vector.broadcast %cst_42 : f32 to vector<64x384xf32>
    %62 = arith.maximumf %60, %61 : vector<64x384xf32>
    %c0_43 = arith.constant 0 : index
    %c0_44 = arith.constant 0 : index
    %c0_45 = arith.constant 0 : index
    %63 = vector.load %arg7[%c0_43, %c0_44, %c0_45] : memref<1x64x384xf32, #tpu.memory_space<vmem>>, vector<1x64x384xf32>
    %64 = vector.shape_cast %63 : vector<1x64x384xf32> to vector<64x384xf32>
    %65 = vector.shape_cast %62 : vector<64x384xf32> to vector<1x64x384xf32>
    tpu.vector_store %arg7[%c0_43, %c0_44, %c0_45], %65 {strides = array<i32>} : memref<1x64x384xf32, #tpu.memory_space<vmem>>, vector<1x64x384xf32>,
    return
  }
  func.func @transform_0(%arg0: i32) -> (i32, i32, i32) {
    %c0_i32 = arith.constant 0 : i32
    %c0_i32_0 = arith.constant 0 : i32
    %c0_i32_1 = arith.constant 0 : i32
    return %arg0, %c0_i32, %c0_i32_0 : i32, i32, i32
  }
  func.func @transform_1(%arg0: i32) -> (i32, i32) {
    %c0_i32 = arith.constant 0 : i32
    %c0_i32_0 = arith.constant 0 : i32
    %c0_i32_1 = arith.constant 0 : i32
    return %c0_i32, %c0_i32_0 : i32, i32
  }
  func.func @transform_2(%arg0: i32) -> (i32, i32) {
    %c0_i32 = arith.constant 0 : i32
    %c0_i32_0 = arith.constant 0 : i32
    %c0_i32_1 = arith.constant 0 : i32
    return %c0_i32, %c0_i32_0 : i32, i32
  }
  func.func @transform_3(%arg0: i32) -> (i32, i32) {
    %c0_i32 = arith.constant 0 : i32
    %c0_i32_0 = arith.constant 0 : i32
    %c0_i32_1 = arith.constant 0 : i32
    return %c0_i32, %c0_i32_0 : i32, i32
  }
  func.func @transform_4(%arg0: i32) -> (i32, i32, i32) {
    %c0_i32 = arith.constant 0 : i32
    %c0_i32_0 = arith.constant 0 : i32
    %c0_i32_1 = arith.constant 0 : i32
    %c0_i32_2 = arith.constant 0 : i32
    return %c0_i32, %c0_i32_0, %c0_i32_1 : i32, i32, i32
  }
  func.func @transform_5(%arg0: i32) -> (i32, i32) {
    %c0_i32 = arith.constant 0 : i32
    %c0_i32_0 = arith.constant 0 : i32
    %c0_i32_1 = arith.constant 0 : i32
    return %c0_i32, %c0_i32_0 : i32, i32
  }
  func.func @transform_6(%arg0: i32) -> (i32, i32, i32) {
    %c0_i32 = arith.constant 0 : i32
    %c0_i32_0 = arith.constant 0 : i32
    %c0_i32_1 = arith.constant 0 : i32
    return %arg0, %c0_i32, %c0_i32_0 : i32, i32, i32
  }
  func.func @transform_7(%arg0: i32) -> (i32, i32, i32) {
    %c0_i32 = arith.constant 0 : i32
    %c0_i32_0 = arith.constant 0 : i32
    %c0_i32_1 = arith.constant 0 : i32
    return %arg0, %c0_i32, %c0_i32_0 : i32, i32, i32
  }
}

</mosaic_0001>

<llo_original>
// kernel: two_conv_bn_rule.1
$region0: #{two_conv_bn_rule.1}
  #allocation0 [shape = 'u32[]', space=smem, size = 0x4, offset = 0x4, fixed_abs, tag = 'smem constant byte address 0x4 - core index']
  #allocation1 [shape = 'u32[144,128]{1,0:T(1,128)}', space=vmem, size = 0x12000, scoped, tag = 'internal scratch']
  %s0 = inlined_call_operand.vmem [shape: f32[2,36,384], index: 0, kind: input, shape index: {}]
  %s1 = inlined_call_operand.vmem [shape: f32[1,384], index: 1, kind: input, shape index: {}]
  %s2 = inlined_call_operand.vmem [shape: f32[64,36], index: 2, kind: input, shape index: {}]
  %s3 = inlined_call_operand.vmem [shape: f32[64,1], index: 3, kind: input, shape index: {}]
  %s4 = inlined_call_operand.vmem [shape: f32[9,64,64], index: 4, kind: input, shape index: {}]
  %s5 = inlined_call_operand.vmem [shape: f32[64,1], index: 5, kind: input, shape index: {}]
  %s6 = inlined_call_operand.vmem [shape: f32[2,64,384], index: 6, kind: output, shape index: {0}]
  %s7 = inlined_call_operand.vmem [shape: f32[2,64,384], index: 7, kind: output, shape index: {1}]
  %8 = xla_tuple %s6, %s7
  %s9 = sld [smem:[#allocation0]]
  $region65: #{two_conv_bn_rule.1} parent=0
    _
  %s11 = ssub.s32 1, %s9
  %s12 = scalar_select 0, %s11, %s9
  loop: start=0, step=1, limit=4
  $region2: #{two_conv_bn_rule.1} parent=0 // loop_pre_header
    _
  $region3: #{two_conv_bn_rule.1} parent=0 // loop_header
    %s14 = sphi 0, %s18
    %p15 = scmp.ge.s32.totalorder %s14, 4
    %s24 = sphi 0, %s26
    %s27 = sphi 0, %s24
    %s28 = sphi 0, %s27
    %s44 = sphi 0, %s28
    %s48 = sphi 0, %s48
    %s50 = sphi 0, %s48
    %s51 = sphi 0, %s50
    %s65 = sphi 0, %s51
    %s69 = sphi 0, %s69
    %s71 = sphi 0, %s69
    %s72 = sphi 0, %s71
    %s86 = sphi 0, %s72
    %s90 = sphi 0, %s90
    %s92 = sphi 0, %s90
    %s93 = sphi 0, %s92
    %s107 = sphi 0, %s93
    %s111 = sphi 0, %s111
    %s113 = sphi 0, %s111
    %s114 = sphi 0, %s113
    %s128 = sphi 0, %s114
    %s132 = sphi 0, %s132
    %s134 = sphi 0, %s132
    %s135 = sphi 0, %s134
    %s149 = sphi 0, %s135
    %s155 = sphi 0, %s157
    %s158 = sphi 0, %s155
    %s159 = sphi 0, %s158
    %s175 = sphi 0, %s159
    %s181 = sphi 0, %s183
    %s184 = sphi 0, %s181
    %s185 = sphi 0, %s184
    %s201 = sphi 0, %s185
  $region4: #{two_conv_bn_rule.1} parent=0 // loop_header_branch
    %17 = sbr.rel (%p15) target = $region8
  $region5: #{two_conv_bn_rule.1} parent=0 // loop_body
    %s19 = ssub.s32 %s14, 1
    %s20 = ssub.s32 %s14, 2
    %s21 = sadd.s32 %s14, 1
    %s22 = ssub.s32 %s14, %s21
    %p23 = scmp.eq.s32.totalorder %s22, 0
    %s25 = sadd.s32 %s24, 1
    %s26 = scalar_select %p23, %s24, %s25
    %p29 = pneg %p23
    %p30 = scmp.eq.s32.totalorder %s14, 1
    %p31 = por %p29, %p30
    %p32 = scmp.ne.s32.totalorder %s24, %s27
    %p33 = scmp.eq.s32.totalorder %s14, 0
    %p34 = por %p32, %p33
    %p35 = scmp.ne.s32.totalorder %s24, %s27
    %p36 = scmp.eq.s32.totalorder %s19, 1
    %p37 = por %p35, %p36
    %p38 = scmp.ne.s32.totalorder %s27, %s28
    %p39 = scmp.eq.s32.totalorder %s19, 0
    %p40 = por %p38, %p39
    %p41 = scmp.ne.s32.totalorder %s27, %s28
    %p42 = scmp.eq.s32.totalorder %s20, 1
    %p43 = por %p41, %p42
    %p45 = scmp.ne.s32.totalorder %s28, %s44
    %p46 = scmp.eq.s32.totalorder %s20, 0
    %p47 = por %p45, %p46
    %s49 = sadd.s32 %s48, 1
    %p52 = scmp.eq.s32.totalorder %s14, 1
    %p53 = scmp.ne.s32.totalorder %s48, %s50
    %p54 = scmp.eq.s32.totalorder %s14, 0
    %p55 = por %p53, %p54
    %p56 = scmp.ne.s32.totalorder %s48, %s50
    %p57 = scmp.eq.s32.totalorder %s19, 1
    %p58 = por %p56, %p57
    %p59 = scmp.ne.s32.totalorder %s50, %s51
    %p60 = scmp.eq.s32.totalorder %s19, 0
    %p61 = por %p59, %p60
    %p62 = scmp.ne.s32.totalorder %s50, %s51
    %p63 = scmp.eq.s32.totalorder %s20, 1
    %p64 = por %p62, %p63
    %p66 = scmp.ne.s32.totalorder %s51, %s65
    %p67 = scmp.eq.s32.totalorder %s20, 0
    %p68 = por %p66, %p67
    %s70 = sadd.s32 %s69, 1
    %p73 = scmp.eq.s32.totalorder %s14, 1
    %p74 = scmp.ne.s32.totalorder %s69, %s71
    %p75 = scmp.eq.s32.totalorder %s14, 0
    %p76 = por %p74, %p75
    %p77 = scmp.ne.s32.totalorder %s69, %s71
    %p78 = scmp.eq.s32.totalorder %s19, 1
    %p79 = por %p77, %p78
    %p80 = scmp.ne.s32.totalorder %s71, %s72
    %p81 = scmp.eq.s32.totalorder %s19, 0
    %p82 = por %p80, %p81
    %p83 = scmp.ne.s32.totalorder %s71, %s72
    %p84 = scmp.eq.s32.totalorder %s20, 1
    %p85 = por %p83, %p84
    %p87 = scmp.ne.s32.totalorder %s72, %s86
    %p88 = scmp.eq.s32.totalorder %s20, 0
    %p89 = por %p87, %p88
    %s91 = sadd.s32 %s90, 1
    %p94 = scmp.eq.s32.totalorder %s14, 1
    %p95 = scmp.ne.s32.totalorder %s90, %s92
    %p96 = scmp.eq.s32.totalorder %s14, 0
    %p97 = por %p95, %p96
    %p98 = scmp.ne.s32.totalorder %s90, %s92
    %p99 = scmp.eq.s32.totalorder %s19, 1
    %p100 = por %p98, %p99
    %p101 = scmp.ne.s32.totalorder %s92, %s93
    %p102 = scmp.eq.s32.totalorder %s19, 0
    %p103 = por %p101, %p102
    %p104 = scmp.ne.s32.totalorder %s92, %s93
    %p105 = scmp.eq.s32.totalorder %s20, 1
    %p106 = por %p104, %p105
    %p108 = scmp.ne.s32.totalorder %s93, %s107
    %p109 = scmp.eq.s32.totalorder %s20, 0
    %p110 = por %p108, %p109
    %s112 = sadd.s32 %s111, 1
    %p115 = scmp.eq.s32.totalorder %s14, 1
    %p116 = scmp.ne.s32.totalorder %s111, %s113
    %p117 = scmp.eq.s32.totalorder %s14, 0
    %p118 = por %p116, %p117
    %p119 = scmp.ne.s32.totalorder %s111, %s113
    %p120 = scmp.eq.s32.totalorder %s19, 1
    %p121 = por %p119, %p120
    %p122 = scmp.ne.s32.totalorder %s113, %s114
    %p123 = scmp.eq.s32.totalorder %s19, 0
    %p124 = por %p122, %p123
    %p125 = scmp.ne.s32.totalorder %s113, %s114
    %p126 = scmp.eq.s32.totalorder %s20, 1
    %p127 = por %p125, %p126
    %p129 = scmp.ne.s32.totalorder %s114, %s128
    %p130 = scmp.eq.s32.totalorder %s20, 0
    %p131 = por %p129, %p130
    %s133 = sadd.s32 %s132, 1
    %p136 = scmp.eq.s32.totalorder %s14, 1
    %p137 = scmp.ne.s32.totalorder %s132, %s134
    %p138 = scmp.eq.s32.totalorder %s14, 0
    %p139 = por %p137, %p138
    %p140 = scmp.ne.s32.totalorder %s132, %s134
    %p141 = scmp.eq.s32.totalorder %s19, 1
    %p142 = por %p140, %p141
    %p143 = scmp.ne.s32.totalorder %s134, %s135
    %p144 = scmp.eq.s32.totalorder %s19, 0
    %p145 = por %p143, %p144
    %p146 = scmp.ne.s32.totalorder %s134, %s135
    %p147 = scmp.eq.s32.totalorder %s20, 1
    %p148 = por %p146, %p147
    %p150 = scmp.ne.s32.totalorder %s135, %s149
    %p151 = scmp.eq.s32.totalorder %s20, 0
    %p152 = por %p150, %p151
    %s153 = ssub.s32 %s14, %s21
    %p154 = scmp.eq.s32.totalorder %s153, 0
    %s156 = sadd.s32 %s155, 1
    %s157 = scalar_select %p154, %s155, %s156
    %p160 = pneg %p154
    %p161 = scmp.eq.s32.totalorder %s14, 1
    %p162 = por %p160, %p161
    %p163 = scmp.ne.s32.totalorder %s155, %s158
    %p164 = scmp.eq.s32.totalorder %s14, 0
    %p165 = por %p163, %p164
    %p166 = scmp.ne.s32.totalorder %s155, %s158
    %p167 = scmp.eq.s32.totalorder %s19, 1
    %p168 = por %p166, %p167
    %p169 = scmp.ne.s32.totalorder %s158, %s159
    %p170 = scmp.eq.s32.totalorder %s19, 0
    %p171 = por %p169, %p170
    %p172 = scmp.ne.s32.totalorder %s158, %s159
    %p173 = scmp.eq.s32.totalorder %s20, 1
    %p174 = por %p172, %p173
    %p176 = scmp.ne.s32.totalorder %s159, %s175
    %p177 = scmp.eq.s32.totalorder %s20, 0
    %p178 = por %p176, %p177
    %s179 = ssub.s32 %s14, %s21
    %p180 = scmp.eq.s32.totalorder %s179, 0
    %s182 = sadd.s32 %s181, 1
    %s183 = scalar_select %p180, %s181, %s182
    %p186 = pneg %p180
    %p187 = scmp.eq.s32.totalorder %s14, 1
    %p188 = por %p186, %p187
    %p189 = scmp.ne.s32.totalorder %s181, %s184
    %p190 = scmp.eq.s32.totalorder %s14, 0
    %p191 = por %p189, %p190
    %p192 = scmp.ne.s32.totalorder %s181, %s184
    %p193 = scmp.eq.s32.totalorder %s19, 1
    %p194 = por %p192, %p193
    %p195 = scmp.ne.s32.totalorder %s184, %s185
    %p196 = scmp.eq.s32.totalorder %s19, 0
    %p197 = por %p195, %p196
    %p198 = scmp.ne.s32.totalorder %s184, %s185
    %p199 = scmp.eq.s32.totalorder %s20, 1
    %p200 = por %p198, %p199
    %p202 = scmp.ne.s32.totalorder %s185, %s201
    %p203 = scmp.eq.s32.totalorder %s20, 0
    %p204 = por %p202, %p203
    %p205 = scmp.le.s32.totalorder 1, %s14
    %p206 = scmp.lt.s32.totalorder %s14, 3
    %p207 = pnand %p205, %p206
    %p208 = pneg %p207
    // Predicated region
    $region9: #{two_conv_bn_rule.1} parent=5 // pred_check
      _
    $region10: #{two_conv_bn_rule.1} parent=5 // pred_check_branch
      %210 = sbr.rel (%p207) target = $region12
    $region11: #{two_conv_bn_rule.1} parent=5 // pred_region
      %s211 = ssub.s32 %s14, 1
      // Predicated region
      $region13: #{two_conv_bn_rule.1} parent=11 // pred_check
        %p212 = pneg %p61
      $region14: #{two_conv_bn_rule.1} parent=11 // pred_check_branch
        %214 = sbr.rel (%p212) target = $region16
      $region15: #{two_conv_bn_rule.1} parent=11 // pred_region
        _
      $region16: #{two_conv_bn_rule.1} parent=11 // pred_fallthru
        _
      // Predicated region
      $region17: #{two_conv_bn_rule.1} parent=11 // pred_check
        %p215 = pneg %p82
      $region18: #{two_conv_bn_rule.1} parent=11 // pred_check_branch
        %217 = sbr.rel (%p215) target = $region20
      $region19: #{two_conv_bn_rule.1} parent=11 // pred_region
        _
      $region20: #{two_conv_bn_rule.1} parent=11 // pred_fallthru
        _
      // Predicated region
      $region21: #{two_conv_bn_rule.1} parent=11 // pred_check
        %p218 = pneg %p103
      $region22: #{two_conv_bn_rule.1} parent=11 // pred_check_branch
        %220 = sbr.rel (%p218) target = $region24
      $region23: #{two_conv_bn_rule.1} parent=11 // pred_region
        _
      $region24: #{two_conv_bn_rule.1} parent=11 // pred_fallthru
        _
      // Predicated region
      $region25: #{two_conv_bn_rule.1} parent=11 // pred_check
        %p221 = pneg %p124
      $region26: #{two_conv_bn_rule.1} parent=11 // pred_check_branch
        %223 = sbr.rel (%p221) target = $region28
      $region27: #{two_conv_bn_rule.1} parent=11 // pred_region
        _
      $region28: #{two_conv_bn_rule.1} parent=11 // pred_fallthru
        _
      // Predicated region
      $region29: #{two_conv_bn_rule.1} parent=11 // pred_check
        %p224 = pneg %p145
      $region30: #{two_conv_bn_rule.1} parent=11 // pred_check_branch
        %226 = sbr.rel (%p224) target = $region32
      $region31: #{two_conv_bn_rule.1} parent=11 // pred_region
        _
      $region32: #{two_conv_bn_rule.1} parent=11 // pred_fallthru
        _
    $region12: #{two_conv_bn_rule.1} parent=5 // pred_fallthru
      _
    %p227 = scmp.lt.s32.totalorder %s14, 2
    // Predicated region
    $region33: #{two_conv_bn_rule.1} parent=5 // pred_check
      %p228 = pneg %p227
    $region34: #{two_conv_bn_rule.1} parent=5 // pred_check_branch
      %230 = sbr.rel (%p228) target = $region36
    $region35: #{two_conv_bn_rule.1} parent=5 // pred_region
      // Predicated region
      $region37: #{two_conv_bn_rule.1} parent=35 // pred_check
        %p231 = pneg %p34
      $region38: #{two_conv_bn_rule.1} parent=35 // pred_check_branch
        %233 = sbr.rel (%p231) target = $region40
      $region39: #{two_conv_bn_rule.1} parent=35 // pred_region
        %p234 = scmp.lt.s32.totalorder %s14, 1
        %s235 = scalar_select %p234, %s14, 1
        %s236 = smul.addr %s235, 15
        %s237 = smul.addr %s236, 8
        %s238 = scalar_lea.vmem %s0, %s237
      $region40: #{two_conv_bn_rule.1} parent=35 // pred_fallthru
        _
    $region36: #{two_conv_bn_rule.1} parent=5 // pred_fallthru
      _
    %p239 = scmp.le.s32.totalorder 1, %s14
    %p240 = scmp.lt.s32.totalorder %s14, 3
    %p241 = pnand %p239, %p240
    %p242 = pneg %p241
    // Predicated region
    $region41: #{two_conv_bn_rule.1} parent=5 // pred_check
      _
    $region42: #{two_conv_bn_rule.1} parent=5 // pred_check_branch
      %244 = sbr.rel (%p241) target = $region44
    $region43: #{two_conv_bn_rule.1} parent=5 // pred_region
      %s245 = ssub.s32 %s14, 1
      %p246 = scmp.lt.s32.totalorder %s19, 1
      %s247 = scalar_select %p246, %s19, 1
      %s248 = smul.addr %s247, 15
      %s249 = smul.addr %s248, 8
      %s250 = scalar_lea.vmem %s0, %s249
      %p251 = pneg %p40
      %p252 = pneg %p37
      %p253 = pneg %p61
      %p254 = pneg %p58
      %p255 = pneg %p82
      %p256 = pneg %p79
      %p257 = pneg %p103
      %p258 = pneg %p100
      %p259 = pneg %p124
      %p260 = pneg %p121
      %p261 = pneg %p145
      %p262 = pneg %p142
      %p263 = pneg %p171
      %p264 = pneg %p168
      %p265 = scmp.lt.s32.totalorder %s19, 1
      %s266 = scalar_select %p265, %s19, 1
      %s267 = smul.addr %s266, 24
      %s268 = smul.addr %s267, 8
      %s269 = scalar_lea.vmem %s6, %s268
      %p270 = pneg %p197
      %p271 = pneg %p194
      %p272 = scmp.lt.s32.totalorder %s19, 1
      %s273 = scalar_select %p272, %s19, 1
      %s274 = smul.addr %s273, 24
      %s275 = smul.addr %s274, 8
      %s276 = scalar_lea.vmem %s7, %s275
      %p277 = scmp.lt.s32.totalorder %s19, 1
      %s278 = scalar_select %p277, %s19, 1
      %s279 = smul.addr %s278, 15
      %s280 = smul.addr %s279, 8
      %s281 = scalar_lea.vmem %s0, %s280
      %p282 = scmp.lt.s32.totalorder %s19, 1
      %s283 = scalar_select %p282, %s19, 1
      %s284 = smul.addr %s283, 24
      %s285 = smul.addr %s284, 8
      %s286 = scalar_lea.vmem %s6, %s285
      %p287 = scmp.lt.s32.totalorder %s19, 1
      %s288 = scalar_select %p287, %s19, 1
      %s289 = smul.addr %s288, 24
      %s290 = smul.addr %s289, 8
      %s291 = scalar_lea.vmem %s7, %s290
      %v292 = vld [vmem:[%s281] sm:$0xff]
      %v293 = vld [vmem:[%s281 + $0x8] sm:$0xff]
      %v294 = vld [vmem:[%s281 + $0x10] sm:$0xff]
      %v295 = vld [vmem:[%s281 + $0x18] sm:$0xff]
      %v296 = vld [vmem:[%s281 + $0x20] sm:$0xff]
      %v297 = vld [vmem:[%s281 + $0x28] sm:$0xff]
      %v298 = vld [vmem:[%s281 + $0x30] sm:$0xff]
      %v299 = vld [vmem:[%s281 + $0x38] sm:$0xff]
      %v300 = vld [vmem:[%s281 + $0x40] sm:$0xff]
      %v301 = vld [vmem:[%s281 + $0x48] sm:$0xff]
      %v302 = vld [vmem:[%s281 + $0x50] sm:$0xff]
      %v303 = vld [vmem:[%s281 + $0x58] sm:$0xff]
      %v304 = vld [vmem:[%s281 + $0x60] sm:$0xf]
      %v305 = vld [vmem:[%s281 + $0x68] sm:$0xf]
      %v306 = vld [vmem:[%s281 + $0x70] sm:$0xf]
      %v307 = vld [vmem:[%s1] sm:$0x7]
      %v308 = vld [vmem:[%s2] sm:$0xff]
      %v309 = vld [vmem:[%s2 + $0x8] sm:$0xff]
      %v310 = vld [vmem:[%s2 + $0x10] sm:$0xff]
      %v311 = vld [vmem:[%s2 + $0x18] sm:$0xff]
      %v312 = vld [vmem:[%s2 + $0x20] sm:$0xff]
      %v313 = vld [vmem:[%s2 + $0x28] sm:$0xff]
      %v314 = vld [vmem:[%s2 + $0x30] sm:$0xff]
      %v315 = vld [vmem:[%s2 + $0x38] sm:$0xff]
      %v316 = vld [vmem:[%s3] sm:$0xff]
      %v317 = vld [vmem:[%s3 + $0x8] sm:$0xff]
      %v318 = vld [vmem:[%s3 + $0x10] sm:$0xff]
      %v319 = vld [vmem:[%s3 + $0x18] sm:$0xff]
      %v320 = vld [vmem:[%s3 + $0x20] sm:$0xff]
      %v321 = vld [vmem:[%s3 + $0x28] sm:$0xff]
      %v322 = vld [vmem:[%s3 + $0x30] sm:$0xff]
      %v323 = vld [vmem:[%s3 + $0x38] sm:$0xff]
      %325 = vset.pattern.permute.xlu0 0
      %326 = vperm.xlu0 %325, %v316
      %v327 = vpop.permute.xlu0 %326
      %330 = vset.pattern.permute.xlu0 0
      %331 = vperm.xlu0 %330, %v317
      %v332 = vpop.permute.xlu0 %331
      %335 = vset.pattern.permute.xlu0 0
      %336 = vperm.xlu0 %335, %v318
      %v337 = vpop.permute.xlu0 %336
      %340 = vset.pattern.permute.xlu0 0
      %341 = vperm.xlu0 %340, %v319
      %v342 = vpop.permute.xlu0 %341
      %345 = vset.pattern.permute.xlu0 0
      %346 = vperm.xlu0 %345, %v320
      %v347 = vpop.permute.xlu0 %346
      %350 = vset.pattern.permute.xlu0 0
      %351 = vperm.xlu0 %350, %v321
      %v352 = vpop.permute.xlu0 %351
      %355 = vset.pattern.permute.xlu0 0
      %356 = vperm.xlu0 %355, %v322
      %v357 = vpop.permute.xlu0 %356
      %360 = vset.pattern.permute.xlu0 0
      %361 = vperm.xlu0 %360, %v323
      %v362 = vpop.permute.xlu0 %361
      %vm364 = vcmask 293888
      %v366 = vsel %vm364, %v308, 0
      %v369 = vsel %vm364, %v309, 0
      %v372 = vsel %vm364, %v310, 0
      %v375 = vsel %vm364, %v311, 0
      %v378 = vsel %vm364, %v312, 0
      %v381 = vsel %vm364, %v313, 0
      %v384 = vsel %vm364, %v314, 0
      %v387 = vsel %vm364, %v315, 0
      %vm389 = vcmask 1043456
      %v391 = vsel %vm389, %v304, 0
      %v394 = vsel %vm389, %v305, 0
      %v397 = vsel %vm389, %v306, 0
      %399 = vmatprep.subr.mxu0 %v293
      %400 = vmatpush1.msra.mxu0 %v292
      %401 = vmatprep.subr.mxu0 %v296
      %402 = vmatpush1.msra.mxu0 %v295
      %403 = vmatprep.subr.mxu0 %v299
      %404 = vmatpush1.msra.mxu0 %v298
      %405 = vmatprep.subr.mxu0 %v302
      %406 = vmatpush1.msra.mxu0 %v301
      %407 = vmatprep.subr.mxu0 %v394
      %408 = vmatpush1.msra.mxu0 %v391
      %409 = vmatprep.subr.mxu0 0.0
      %410 = vmatpush1.msra.mxu0 0.0
      %411 = vmatprep.subr.mxu0 0.0
      %412 = vmatpush1.msra.mxu0 0.0
      %413 = vmatprep.subr.mxu0 0.0
      %414 = vmatpush1.msra.mxu0 0.0
      %415 = vmatprep.subr.mxu0 0.0
      %416 = vmatpush1.msra.mxu0 0.0
      %417 = vmatprep.subr.mxu0 0.0
      %418 = vmatpush1.msra.mxu0 0.0
      %419 = vmatprep.subr.mxu0 0.0
      %420 = vmatpush1.msra.mxu0 0.0
      %421 = vmatprep.subr.mxu0 0.0
      %422 = vmatpush1.msra.mxu0 0.0
      %423 = vmatprep.subr.mxu0 0.0
      %424 = vmatpush1.msra.mxu0 0.0
      %425 = vmatprep.subr.mxu0 0.0
      %426 = vmatpush1.msra.mxu0 0.0
      %427 = vmatprep.subr.mxu0 0.0
      %428 = vmatpush1.msra.mxu0 0.0
      %429 = vmatprep.subr.mxu0 0.0
      %430 = vmatpush1.msra.mxu0 0.0
      %431 = vmatprep.subr.mxu0 0.0
      %432 = vmatpush1.msra.mxu0 0.0
      %433 = vmatprep.subr.mxu0 0.0
      %434 = vmatpush1.msra.mxu0 0.0
      %435 = vmatprep.subr.mxu0 0.0
      %436 = vmatpush1.msra.mxu0 0.0
      %437 = vmatprep.subr.mxu0 0.0
      %438 = vmatpush1.msra.mxu0 0.0
      %439 = vmatprep.subr.mxu0 0.0
      %440 = vmatpush1.msra.mxu0 0.0
      %441 = vmatprep.subr.mxu0 0.0
      %442 = vmatpush1.msra.mxu0 0.0
      %443 = vmatprep.subr.mxu0 0.0
      %444 = vmatpush1.msra.mxu0 0.0
      %445 = vmatprep.subr.mxu0 0.0
      %446 = vmatpush1.msra.mxu0 0.0
      %447 = vmatprep.subr.mxu0 0.0
      %448 = vmatpush1.msra.mxu0 0.0
      %449 = vmatprep.subr.mxu0 0.0
      %450 = vmatpush1.msra.mxu0 0.0
      %451 = vmatprep.subr.mxu0 0.0
      %452 = vmatpush1.msra.mxu0 0.0
      %453 = vmatprep.subr.mxu0 0.0
      %454 = vmatpush1.msra.mxu0 0.0
      %455 = vmatprep.subr.mxu0 0.0
      %456 = vmatpush1.msra.mxu0 0.0
      %457 = vmatprep.subr.mxu0 0.0
      %458 = vmatpush1.msra.mxu0 0.0
      %459 = vmatprep.subr.mxu0 0.0
      %460 = vmatpush1.msra.mxu0 0.0
      %461 = vmatprep.subr.mxu0 0.0
      %462 = vmatpush1.msra.mxu0 0.0
      %463 = vmatprep.mubr.f32.mxu0 0.0
      %464 = vmatmul.mubr.f32.gmra.mrb[0].mxu0 %v366
      %v465 = vpop.f32.mrb[0].mxu0
      %v466 = vadd.f32 %v327, %v465
      %v467 = vpop.f32.mrb[0].mxu0
      %v468 = vadd.f32 %v327, %v467
      %469 = vmatprep.mubr.f32.mxu0 0.0
      %470 = vmatmul.mubr.f32.gmra.mrb[0].mxu0 %v369
      %v471 = vpop.f32.mrb[0].mxu0
      %v472 = vadd.f32 %v332, %v471
      %v473 = vpop.f32.mrb[0].mxu0
      %v474 = vadd.f32 %v332, %v473
      %475 = vmatprep.mubr.f32.mxu0 0.0
      %476 = vmatmul.mubr.f32.gmra.mrb[0].mxu0 %v372
      %v477 = vpop.f32.mrb[0].mxu0
      %v478 = vadd.f32 %v337, %v477
      %v479 = vpop.f32.mrb[0].mxu0
      %v480 = vadd.f32 %v337, %v479
      %481 = vmatprep.mubr.f32.mxu0 0.0
      %482 = vmatmul.mubr.f32.gmra.mrb[0].mxu0 %v375
      %v483 = vpop.f32.mrb[0].mxu0
      %v484 = vadd.f32 %v342, %v483
      %v485 = vpop.f32.mrb[0].mxu0
      %v486 = vadd.f32 %v342, %v485
      %487 = vmatprep.mubr.f32.mxu0 0.0
      %488 = vmatmul.mubr.f32.gmra.mrb[0].mxu0 %v378
      %v489 = vpop.f32.mrb[0].mxu0
      %v490 = vadd.f32 %v347, %v489
      %v491 = vpop.f32.mrb[0].mxu0
      %v492 = vadd.f32 %v347, %v491
      %493 = vmatprep.mubr.f32.mxu0 0.0
      %494 = vmatmul.mubr.f32.gmra.mrb[0].mxu0 %v381
      %v495 = vpop.f32.mrb[0].mxu0
      %v496 = vadd.f32 %v352, %v495
      %v497 = vpop.f32.mrb[0].mxu0
      %v498 = vadd.f32 %v352, %v497
      %499 = vmatprep.mubr.f32.mxu0 0.0
      %500 = vmatmul.mubr.f32.gmra.mrb[0].mxu0 %v384
      %v501 = vpop.f32.mrb[0].mxu0
      %v502 = vadd.f32 %v357, %v501
      %v503 = vpop.f32.mrb[0].mxu0
      %v504 = vadd.f32 %v357, %v503
      %505 = vmatprep.mubr.f32.mxu0 0.0
      %506 = vmatmul.mubr.f32.gmra.mrb[0].mxu0 %v387
      %v507 = vpop.f32.mrb[0].mxu0
      %v508 = vadd.f32 %v362, %v507
      %v509 = vpop.f32.mrb[0].mxu0
      %v510 = vadd.f32 %v362, %v509
      %511 = vdwg.mxu0
      %512 = vmatprep.subr.mxu0 0.0
      %513 = vmatpush1.msra.mxu0 %v294
      %514 = vmatprep.subr.mxu0 0.0
      %515 = vmatpush1.msra.mxu0 %v297
      %516 = vmatprep.subr.mxu0 0.0
      %517 = vmatpush1.msra.mxu0 %v300
      %518 = vmatprep.subr.mxu0 0.0
      %519 = vmatpush1.msra.mxu0 %v303
      %520 = vmatprep.subr.mxu0 0.0
      %521 = vmatpush1.msra.mxu0 %v397
      %522 = vmatprep.subr.mxu0 0.0
      %523 = vmatpush1.msra.mxu0 0.0
      %524 = vmatprep.subr.mxu0 0.0
      %525 = vmatpush1.msra.mxu0 0.0
      %526 = vmatprep.subr.mxu0 0.0
      %527 = vmatpush1.msra.mxu0 0.0
      %528 = vmatprep.subr.mxu0 0.0
      %529 = vmatpush1.msra.mxu0 0.0
      %530 = vmatprep.subr.mxu0 0.0
      %531 = vmatpush1.msra.mxu0 0.0
      %532 = vmatprep.subr.mxu0 0.0
      %533 = vmatpush1.msra.mxu0 0.0
      %534 = vmatprep.subr.mxu0 0.0
      %535 = vmatpush1.msra.mxu0 0.0
      %536 = vmatprep.subr.mxu0 0.0
      %537 = vmatpush1.msra.mxu0 0.0
      %538 = vmatprep.subr.mxu0 0.0
      %539 = vmatpush1.msra.mxu0 0.0
      %540 = vmatprep.subr.mxu0 0.0
      %541 = vmatpush1.msra.mxu0 0.0
      %542 = vmatprep.subr.mxu0 0.0
      %543 = vmatpush1.msra.mxu0 0.0
      %544 = vmatprep.subr.mxu0 0.0
      %545 = vmatpush1.msra.mxu0 0.0
      %546 = vmatprep.subr.mxu0 0.0
      %547 = vmatpush1.msra.mxu0 0.0
      %548 = vmatprep.subr.mxu0 0.0
      %549 = vmatpush1.msra.mxu0 0.0
      %550 = vmatprep.subr.mxu0 0.0
      %551 = vmatpush1.msra.mxu0 0.0
      %552 = vmatprep.subr.mxu0 0.0
      %553 = vmatpush1.msra.mxu0 0.0
      %554 = vmatprep.subr.mxu0 0.0
      %555 = vmatpush1.msra.mxu0 0.0
      %556 = vmatprep.subr.mxu0 0.0
      %557 = vmatpush1.msra.mxu0 0.0
      %558 = vmatprep.subr.mxu0 0.0
      %559 = vmatpush1.msra.mxu0 0.0
      %560 = vmatprep.subr.mxu0 0.0
      %561 = vmatpush1.msra.mxu0 0.0
      %562 = vmatprep.subr.mxu0 0.0
      %563 = vmatpush1.msra.mxu0 0.0
      %564 = vmatprep.subr.mxu0 0.0
      %565 = vmatpush1.msra.mxu0 0.0
      %566 = vmatprep.subr.mxu0 0.0
      %567 = vmatpush1.msra.mxu0 0.0
      %568 = vmatprep.subr.mxu0 0.0
      %569 = vmatpush1.msra.mxu0 0.0
      %570 = vmatprep.subr.mxu0 0.0
      %571 = vmatpush1.msra.mxu0 0.0
      %572 = vmatprep.subr.mxu0 0.0
      %573 = vmatpush1.msra.mxu0 0.0
      %574 = vmatprep.subr.mxu0 0.0
      %575 = vmatpush1.msra.mxu0 0.0
      %576 = vmatprep.mubr.f32.mxu0 0.0
      %577 = vmatmul.mubr.f32.gmra.mrb[0].mxu0 %v366
      %v578 = vpop.f32.mrb[0].mxu0
      %v579 = vadd.f32 %v327, %v578
      %v580 = vpop.f32.mrb[0].mxu0
      %581 = vmatprep.mubr.f32.mxu0 0.0
      %582 = vmatmul.mubr.f32.gmra.mrb[0].mxu0 %v369
      %v583 = vpop.f32.mrb[0].mxu0
      %v584 = vadd.f32 %v332, %v583
      %v585 = vpop.f32.mrb[0].mxu0
      %586 = vmatprep.mubr.f32.mxu0 0.0
      %587 = vmatmul.mubr.f32.gmra.mrb[0].mxu0 %v372
      %v588 = vpop.f32.mrb[0].mxu0
      %v589 = vadd.f32 %v337, %v588
      %v590 = vpop.f32.mrb[0].mxu0
      %591 = vmatprep.mubr.f32.mxu0 0.0
      %592 = vmatmul.mubr.f32.gmra.mrb[0].mxu0 %v375
      %v593 = vpop.f32.mrb[0].mxu0
      %v594 = vadd.f32 %v342, %v593
      %v595 = vpop.f32.mrb[0].mxu0
      %596 = vmatprep.mubr.f32.mxu0 0.0
      %597 = vmatmul.mubr.f32.gmra.mrb[0].mxu0 %v378
      %v598 = vpop.f32.mrb[0].mxu0
      %v599 = vadd.f32 %v347, %v598
      %v600 = vpop.f32.mrb[0].mxu0
      %601 = vmatprep.mubr.f32.mxu0 0.0
      %602 = vmatmul.mubr.f32.gmra.mrb[0].mxu0 %v381
      %v603 = vpop.f32.mrb[0].mxu0
      %v604 = vadd.f32 %v352, %v603
      %v605 = vpop.f32.mrb[0].mxu0
      %606 = vmatprep.mubr.f32.mxu0 0.0
      %607 = vmatmul.mubr.f32.gmra.mrb[0].mxu0 %v384
      %v608 = vpop.f32.mrb[0].mxu0
      %v609 = vadd.f32 %v357, %v608
      %v610 = vpop.f32.mrb[0].mxu0
      %611 = vmatprep.mubr.f32.mxu0 0.0
      %612 = vmatmul.mubr.f32.gmra.mrb[0].mxu0 %v387
      %v613 = vpop.f32.mrb[0].mxu0
      %v614 = vadd.f32 %v362, %v613
      %v615 = vpop.f32.mrb[0].mxu0
      %616 = vdwg.mxu0
      %v617 = vmax.f32 %v466, 0.0
      %v618 = vmax.f32 %v468, 0.0
      %v619 = vmax.f32 %v579, 0.0
      %v620 = vmax.f32 %v472, 0.0
      %v621 = vmax.f32 %v474, 0.0
      %v622 = vmax.f32 %v584, 0.0
      %v623 = vmax.f32 %v478, 0.0
      %v624 = vmax.f32 %v480, 0.0
      %v625 = vmax.f32 %v589, 0.0
      %v626 = vmax.f32 %v484, 0.0
      %v627 = vmax.f32 %v486, 0.0
      %v628 = vmax.f32 %v594, 0.0
      %v629 = vmax.f32 %v490, 0.0
      %v630 = vmax.f32 %v492, 0.0
      %v631 = vmax.f32 %v599, 0.0
      %v632 = vmax.f32 %v496, 0.0
      %v633 = vmax.f32 %v498, 0.0
      %v634 = vmax.f32 %v604, 0.0
      %v635 = vmax.f32 %v502, 0.0
      %v636 = vmax.f32 %v504, 0.0
      %v637 = vmax.f32 %v609, 0.0
      %v638 = vmax.f32 %v508, 0.0
      %v639 = vmax.f32 %v510, 0.0
      %v640 = vmax.f32 %v614, 0.0
      %v642 = vlaneseq
      %v643 = vshrl.u32 %v642, 7
      %v644 = vsub.s32 0, %v643
      %v645 = vrot.slane %v307, %v644
      %v646 = vlaneseq
      %v647 = vshrl.u32 %v646, 7
      %v648 = vsub.s32 1, %v647
      %v649 = vrot.slane %v307, %v648
      %v650 = vlaneseq
      %v651 = vshrl.u32 %v650, 7
      %v652 = vsub.s32 2, %v651
      %v653 = vrot.slane %v307, %v652
      %v657 = vmul.f32 %v617, %v645
      %v658 = vmul.f32 %v618, %v649
      %v659 = vmul.f32 %v619, %v653
      %v660 = vmul.f32 %v620, %v645
      %v661 = vmul.f32 %v621, %v649
      %v662 = vmul.f32 %v622, %v653
      %v663 = vmul.f32 %v623, %v645
      %v664 = vmul.f32 %v624, %v649
      %v665 = vmul.f32 %v625, %v653
      %v666 = vmul.f32 %v626, %v645
      %v667 = vmul.f32 %v627, %v649
      %v668 = vmul.f32 %v628, %v653
      %v669 = vmul.f32 %v629, %v645
      %v670 = vmul.f32 %v630, %v649
      %v671 = vmul.f32 %v631, %v653
      %v672 = vmul.f32 %v632, %v645
      %v673 = vmul.f32 %v633, %v649
      %v674 = vmul.f32 %v634, %v653
      %v675 = vmul.f32 %v635, %v645
      %v676 = vmul.f32 %v636, %v649
      %v677 = vmul.f32 %v637, %v653
      %v678 = vmul.f32 %v638, %v645
      %v679 = vmul.f32 %v639, %v649
      %v680 = vmul.f32 %v640, %v653
      %681 = vst [vmem:[%s291] sm:$0xff] %v657
      %682 = vst [vmem:[%s291 + $0x8] sm:$0xff] %v658
      %683 = vst [vmem:[%s291 + $0x10] sm:$0xff] %v659
      %684 = vst [vmem:[%s291 + $0x18] sm:$0xff] %v660
      %685 = vst [vmem:[%s291 + $0x20] sm:$0xff] %v661
      %686 = vst [vmem:[%s291 + $0x28] sm:$0xff] %v662
      %687 = vst [vmem:[%s291 + $0x30] sm:$0xff] %v663
      %688 = vst [vmem:[%s291 + $0x38] sm:$0xff] %v664
      %689 = vst [vmem:[%s291 + $0x40] sm:$0xff] %v665
      %690 = vst [vmem:[%s291 + $0x48] sm:$0xff] %v666
      %691 = vst [vmem:[%s291 + $0x50] sm:$0xff] %v667
      %692 = vst [vmem:[%s291 + $0x58] sm:$0xff] %v668
      %693 = vst [vmem:[%s291 + $0x60] sm:$0xff] %v669
      %694 = vst [vmem:[%s291 + $0x68] sm:$0xff] %v670
      %695 = vst [vmem:[%s291 + $0x70] sm:$0xff] %v671
      %696 = vst [vmem:[%s291 + $0x78] sm:$0xff] %v672
      %697 = vst [vmem:[%s291 + $0x80] sm:$0xff] %v673
      %698 = vst [vmem:[%s291 + $0x88] sm:$0xff] %v674
      %699 = vst [vmem:[%s291 + $0x90] sm:$0xff] %v675
      %700 = vst [vmem:[%s291 + $0x98] sm:$0xff] %v676
      %701 = vst [vmem:[%s291 + $0xa0] sm:$0xff] %v677
      %702 = vst [vmem:[%s291 + $0xa8] sm:$0xff] %v678
      %703 = vst [vmem:[%s291 + $0xb0] sm:$0xff] %v679
      %704 = vst [vmem:[%s291 + $0xb8] sm:$0xff] %v680
      %s705 = scalar_lea.vmem %s4, 256
      %v706 = vld [vmem:[%s705] sm:$0xff]
      %v707 = vld [vmem:[%s705 + $0x8] sm:$0xff]
      %v708 = vld [vmem:[%s705 + $0x10] sm:$0xff]
      %v709 = vld [vmem:[%s705 + $0x18] sm:$0xff]
      %v710 = vld [vmem:[%s705 + $0x20] sm:$0xff]
      %v711 = vld [vmem:[%s705 + $0x28] sm:$0xff]
      %v712 = vld [vmem:[%s705 + $0x30] sm:$0xff]
      %v713 = vld [vmem:[%s705 + $0x38] sm:$0xff]
      %v714 = vld [vmem:[%s4] sm:$0xff]
      %v715 = vld [vmem:[%s4 + $0x8] sm:$0xff]
      %v716 = vld [vmem:[%s4 + $0x10] sm:$0xff]
      %v717 = vld [vmem:[%s4 + $0x18] sm:$0xff]
      %v718 = vld [vmem:[%s4 + $0x20] sm:$0xff]
      %v719 = vld [vmem:[%s4 + $0x28] sm:$0xff]
      %v720 = vld [vmem:[%s4 + $0x30] sm:$0xff]
      %v721 = vld [vmem:[%s4 + $0x38] sm:$0xff]
      %722 = vrot.lane.b32.xlu0 %v657, 19
      %v723 = vpop.permute.xlu0 %722
      %724 = vrot.lane.b32.xlu0 %v660, 19
      %v725 = vpop.permute.xlu0 %724
      %726 = vrot.lane.b32.xlu0 %v663, 19
      %v727 = vpop.permute.xlu0 %726
      %728 = vrot.lane.b32.xlu0 %v666, 19
      %v729 = vpop.permute.xlu0 %728
      %730 = vrot.lane.b32.xlu0 %v669, 19
      %v731 = vpop.permute.xlu0 %730
      %732 = vrot.lane.b32.xlu0 %v672, 19
      %v733 = vpop.permute.xlu0 %732
      %734 = vrot.lane.b32.xlu0 %v675, 19
      %v735 = vpop.permute.xlu0 %734
      %736 = vrot.lane.b32.xlu0 %v678, 19
      %v737 = vpop.permute.xlu0 %736
      %738 = vrot.lane.b32.xlu0 %v658, 19
      %v739 = vpop.permute.xlu0 %738
      %740 = vrot.lane.b32.xlu0 %v661, 19
      %v741 = vpop.permute.xlu0 %740
      %742 = vrot.lane.b32.xlu0 %v664, 19
      %v743 = vpop.permute.xlu0 %742
      %744 = vrot.lane.b32.xlu0 %v667, 19
      %v745 = vpop.permute.xlu0 %744
      %746 = vrot.lane.b32.xlu0 %v670, 19
      %v747 = vpop.permute.xlu0 %746
      %748 = vrot.lane.b32.xlu0 %v673, 19
      %v749 = vpop.permute.xlu0 %748
      %750 = vrot.lane.b32.xlu0 %v676, 19
      %v751 = vpop.permute.xlu0 %750
      %752 = vrot.lane.b32.xlu0 %v679, 19
      %v753 = vpop.permute.xlu0 %752
      %754 = vrot.lane.b32.xlu0 %v659, 19
      %v755 = vpop.permute.xlu0 %754
      %756 = vrot.lane.b32.xlu0 %v662, 19
      %v757 = vpop.permute.xlu0 %756
      %758 = vrot.lane.b32.xlu0 %v665, 19
      %v759 = vpop.permute.xlu0 %758
      %760 = vrot.lane.b32.xlu0 %v668, 19
      %v761 = vpop.permute.xlu0 %760
      %762 = vrot.lane.b32.xlu0 %v671, 19
      %v763 = vpop.permute.xlu0 %762
      %764 = vrot.lane.b32.xlu0 %v674, 19
      %v765 = vpop.permute.xlu0 %764
      %766 = vrot.lane.b32.xlu0 %v677, 19
      %v767 = vpop.permute.xlu0 %766
      %768 = vrot.lane.b32.xlu0 %v680, 19
      %v769 = vpop.permute.xlu0 %768
      %v770 = vlaneseq
      %v771 = vand.u32 %v770, 127
      %vm772 = vcmp.lt.s32.totalorder %v771, 19
      %v773 = vsel %vm772, %v739, %v755
      %v774 = vsel %vm772, %v741, %v757
      %v775 = vsel %vm772, %v743, %v759
      %v776 = vsel %vm772, %v745, %v761
      %v777 = vsel %vm772, %v747, %v763
      %v778 = vsel %vm772, %v749, %v765
      %v779 = vsel %vm772, %v751, %v767
      %v780 = vsel %vm772, %v753, %v769
      %v781 = vsel %vm772, %v723, %v739
      %v782 = vsel %vm772, %v725, %v741
      %v783 = vsel %vm772, %v727, %v743
      %v784 = vsel %vm772, %v729, %v745
      %v785 = vsel %vm772, %v731, %v747
      %v786 = vsel %vm772, %v733, %v749
      %v787 = vsel %vm772, %v735, %v751
      %v788 = vsel %vm772, %v737, %v753
      %v789 = vsel %vm772, %v755, %v723
      %v790 = vsel %vm772, %v757, %v725
      %v791 = vsel %vm772, %v759, %v727
      %v792 = vsel %vm772, %v761, %v729
      %v793 = vsel %vm772, %v763, %v731
      %v794 = vsel %vm772, %v765, %v733
      %v795 = vsel %vm772, %v767, %v735
      %v796 = vsel %vm772, %v769, %v737
      %vm797 = vcmask 523264
      %v799 = vsel %vm797, %v714, 0
      %v802 = vsel %vm797, %v715, 0
      %v805 = vsel %vm797, %v716, 0
      %v808 = vsel %vm797, %v717, 0
      %v811 = vsel %vm797, %v718, 0
      %v814 = vsel %vm797, %v719, 0
      %v817 = vsel %vm797, %v720, 0
      %v820 = vsel %vm797, %v721, 0
      %822 = vmatprep.subr.mxu0 %v781
      %823 = vmatpush1.msra.mxu0 %v789
      %824 = vmatprep.subr.mxu0 %v782
      %825 = vmatpush1.msra.mxu0 %v790
      %826 = vmatprep.subr.mxu0 %v783
      %827 = vmatpush1.msra.mxu0 %v791
      %828 = vmatprep.subr.mxu0 %v784
      %829 = vmatpush1.msra.mxu0 %v792
      %830 = vmatprep.subr.mxu0 %v785
      %831 = vmatpush1.msra.mxu0 %v793
      %832 = vmatprep.subr.mxu0 %v786
      %833 = vmatpush1.msra.mxu0 %v794
      %834 = vmatprep.subr.mxu0 %v787
      %835 = vmatpush1.msra.mxu0 %v795
      %836 = vmatprep.subr.mxu0 %v788
      %837 = vmatpush1.msra.mxu0 %v796
      %838 = vmatprep.subr.mxu0 0.0
      %839 = vmatpush1.msra.mxu0 0.0
      %840 = vmatprep.subr.mxu0 0.0
      %841 = vmatpush1.msra.mxu0 0.0
      %842 = vmatprep.subr.mxu0 0.0
      %843 = vmatpush1.msra.mxu0 0.0
      %844 = vmatprep.subr.mxu0 0.0
      %845 = vmatpush1.msra.mxu0 0.0
      %846 = vmatprep.subr.mxu0 0.0
      %847 = vmatpush1.msra.mxu0 0.0
      %848 = vmatprep.subr.mxu0 0.0
      %849 = vmatpush1.msra.mxu0 0.0
      %850 = vmatprep.subr.mxu0 0.0
      %851 = vmatpush1.msra.mxu0 0.0
      %852 = vmatprep.subr.mxu0 0.0
      %853 = vmatpush1.msra.mxu0 0.0
      %854 = vmatprep.subr.mxu0 0.0
      %855 = vmatpush1.msra.mxu0 0.0
      %856 = vmatprep.subr.mxu0 0.0
      %857 = vmatpush1.msra.mxu0 0.0
      %858 = vmatprep.subr.mxu0 0.0
      %859 = vmatpush1.msra.mxu0 0.0
      %860 = vmatprep.subr.mxu0 0.0
      %861 = vmatpush1.msra.mxu0 0.0
      %862 = vmatprep.subr.mxu0 0.0
      %863 = vmatpush1.msra.mxu0 0.0
      %864 = vmatprep.subr.mxu0 0.0
      %865 = vmatpush1.msra.mxu0 0.0
      %866 = vmatprep.subr.mxu0 0.0
      %867 = vmatpush1.msra.mxu0 0.0
      %868 = vmatprep.subr.mxu0 0.0
      %869 = vmatpush1.msra.mxu0 0.0
      %870 = vmatprep.subr.mxu0 0.0
      %871 = vmatpush1.msra.mxu0 0.0
      %872 = vmatprep.subr.mxu0 0.0
      %873 = vmatpush1.msra.mxu0 0.0
      %874 = vmatprep.subr.mxu0 0.0
      %875 = vmatpush1.msra.mxu0 0.0
      %876 = vmatprep.subr.mxu0 0.0
      %877 = vmatpush1.msra.mxu0 0.0
      %878 = vmatprep.subr.mxu0 0.0
      %879 = vmatpush1.msra.mxu0 0.0
      %880 = vmatprep.subr.mxu0 0.0
      %881 = vmatpush1.msra.mxu0 0.0
      %882 = vmatprep.subr.mxu0 0.0
      %883 = vmatpush1.msra.mxu0 0.0
      %884 = vmatprep.subr.mxu0 0.0
      %885 = vmatpush1.msra.mxu0 0.0
      %886 = vmatprep.mubr.f32.mxu0 0.0
      %887 = vmatmul.mubr.f32.gmra.mrb[0].mxu0 %v799
      %v888 = vpop.f32.mrb[0].mxu0
      %v889 = vadd.f32 0.0, %v888
      %v890 = vpop.f32.mrb[0].mxu0
      %v891 = vadd.f32 0.0, %v890
      %892 = vmatprep.mubr.f32.mxu0 0.0
      %893 = vmatmul.mubr.f32.gmra.mrb[0].mxu0 %v802
      %v894 = vpop.f32.mrb[0].mxu0
      %v895 = vadd.f32 0.0, %v894
      %v896 = vpop.f32.mrb[0].mxu0
      %v897 = vadd.f32 0.0, %v896
      %898 = vmatprep.mubr.f32.mxu0 0.0
      %899 = vmatmul.mubr.f32.gmra.mrb[0].mxu0 %v805
      %v900 = vpop.f32.mrb[0].mxu0
      %v901 = vadd.f32 0.0, %v900
      %v902 = vpop.f32.mrb[0].mxu0
      %v903 = vadd.f32 0.0, %v902
      %904 = vmatprep.mubr.f32.mxu0 0.0
      %905 = vmatmul.mubr.f32.gmra.mrb[0].mxu0 %v808
      %v906 = vpop.f32.mrb[0].mxu0
      %v907 = vadd.f32 0.0, %v906
      %v908 = vpop.f32.mrb[0].mxu0
      %v909 = vadd.f32 0.0, %v908
      %910 = vmatprep.mubr.f32.mxu0 0.0
      %911 = vmatmul.mubr.f32.gmra.mrb[0].mxu0 %v811
      %v912 = vpop.f32.mrb[0].mxu0
      %v913 = vadd.f32 0.0, %v912
      %v914 = vpop.f32.mrb[0].mxu0
      %v915 = vadd.f32 0.0, %v914
      %916 = vmatprep.mubr.f32.mxu0 0.0
      %917 = vmatmul.mubr.f32.gmra.mrb[0].mxu0 %v814
      %v918 = vpop.f32.mrb[0].mxu0
      %v919 = vadd.f32 0.0, %v918
      %v920 = vpop.f32.mrb[0].mxu0
      %v921 = vadd.f32 0.0, %v920
      %922 = vmatprep.mubr.f32.mxu0 0.0
      %923 = vmatmul.mubr.f32.gmra.mrb[0].mxu0 %v817
      %v924 = vpop.f32.mrb[0].mxu0
      %v925 = vadd.f32 0.0, %v924
      %v926 = vpop.f32.mrb[0].mxu0
      %v927 = vadd.f32 0.0, %v926
      %928 = vmatprep.mubr.f32.mxu0 0.0
      %929 = vmatmul.mubr.f32.gmra.mrb[0].mxu0 %v820
      %v930 = vpop.f32.mrb[0].mxu0
      %v931 = vadd.f32 0.0, %v930
      %v932 = vpop.f32.mrb[0].mxu0
      %v933 = vadd.f32 0.0, %v932
      %934 = vdwg.mxu0
      %935 = vmatprep.subr.mxu0 0.0
      %936 = vmatpush1.msra.mxu0 %v773
      %937 = vmatprep.subr.mxu0 0.0
      %938 = vmatpush1.msra.mxu0 %v774
      %939 = vmatprep.subr.mxu0 0.0
      %940 = vmatpush1.msra.mxu0 %v775
      %941 = vmatprep.subr.mxu0 0.0
      %942 = vmatpush1.msra.mxu0 %v776
      %943 = vmatprep.subr.mxu0 0.0
      %944 = vmatpush1.msra.mxu0 %v777
      %945 = vmatprep.subr.mxu0 0.0
      %946 = vmatpush1.msra.mxu0 %v778
      %947 = vmatprep.subr.mxu0 0.0
      %948 = vmatpush1.msra.mxu0 %v779
      %949 = vmatprep.subr.mxu0 0.0
      %950 = vmatpush1.msra.mxu0 %v780
      %951 = vmatprep.subr.mxu0 0.0
      %952 = vmatpush1.msra.mxu0 0.0
      %953 = vmatprep.subr.mxu0 0.0
      %954 = vmatpush1.msra.mxu0 0.0
      %955 = vmatprep.subr.mxu0 0.0
      %956 = vmatpush1.msra.mxu0 0.0
      %957 = vmatprep.subr.mxu0 0.0
      %958 = vmatpush1.msra.mxu0 0.0
      %959 = vmatprep.subr.mxu0 0.0
      %960 = vmatpush1.msra.mxu0 0.0
      %961 = vmatprep.subr.mxu0 0.0
      %962 = vmatpush1.msra.mxu0 0.0
      %963 = vmatprep.subr.mxu0 0.0
      %964 = vmatpush1.msra.mxu0 0.0
      %965 = vmatprep.subr.mxu0 0.0
      %966 = vmatpush1.msra.mxu0 0.0
      %967 = vmatprep.subr.mxu0 0.0
      %968 = vmatpush1.msra.mxu0 0.0
      %969 = vmatprep.subr.mxu0 0.0
      %970 = vmatpush1.msra.mxu0 0.0
      %971 = vmatprep.subr.mxu0 0.0
      %972 = vmatpush1.msra.mxu0 0.0
      %973 = vmatprep.subr.mxu0 0.0
      %974 = vmatpush1.msra.mxu0 0.0
      %975 = vmatprep.subr.mxu0 0.0
      %976 = vmatpush1.msra.mxu0 0.0
      %977 = vmatprep.subr.mxu0 0.0
      %978 = vmatpush1.msra.mxu0 0.0
      %979 = vmatprep.subr.mxu0 0.0
      %980 = vmatpush1.msra.mxu0 0.0
      %981 = vmatprep.subr.mxu0 0.0
      %982 = vmatpush1.msra.mxu0 0.0
      %983 = vmatprep.subr.mxu0 0.0
      %984 = vmatpush1.msra.mxu0 0.0
      %985 = vmatprep.subr.mxu0 0.0
      %986 = vmatpush1.msra.mxu0 0.0
      %987 = vmatprep.subr.mxu0 0.0
      %988 = vmatpush1.msra.mxu0 0.0
      %989 = vmatprep.subr.mxu0 0.0
      %990 = vmatpush1.msra.mxu0 0.0
      %991 = vmatprep.subr.mxu0 0.0
      %992 = vmatpush1.msra.mxu0 0.0
      %993 = vmatprep.subr.mxu0 0.0
      %994 = vmatpush1.msra.mxu0 0.0
      %995 = vmatprep.subr.mxu0 0.0
      %996 = vmatpush1.msra.mxu0 0.0
      %997 = vmatprep.subr.mxu0 0.0
      %998 = vmatpush1.msra.mxu0 0.0
      %999 = vmatprep.mubr.f32.mxu0 0.0
      %1000 = vmatmul.mubr.f32.gmra.mrb[0].mxu0 %v799
      %v1001 = vpop.f32.mrb[0].mxu0
      %v1002 = vadd.f32 0.0, %v1001
      %v1003 = vpop.f32.mrb[0].mxu0
      %1004 = vmatprep.mubr.f32.mxu0 0.0
      %1005 = vmatmul.mubr.f32.gmra.mrb[0].mxu0 %v802
      %v1006 = vpop.f32.mrb[0].mxu0
      %v1007 = vadd.f32 0.0, %v1006
      %v1008 = vpop.f32.mrb[0].mxu0
      %1009 = vmatprep.mubr.f32.mxu0 0.0
      %1010 = vmatmul.mubr.f32.gmra.mrb[0].mxu0 %v805
      %v1011 = vpop.f32.mrb[0].mxu0
      %v1012 = vadd.f32 0.0, %v1011
      %v1013 = vpop.f32.mrb[0].mxu0
      %1014 = vmatprep.mubr.f32.mxu0 0.0
      %1015 = vmatmul.mubr.f32.gmra.mrb[0].mxu0 %v808
      %v1016 = vpop.f32.mrb[0].mxu0
      %v1017 = vadd.f32 0.0, %v1016
      %v1018 = vpop.f32.mrb[0].mxu0
      %1019 = vmatprep.mubr.f32.mxu0 0.0
      %1020 = vmatmul.mubr.f32.gmra.mrb[0].mxu0 %v811
      %v1021 = vpop.f32.mrb[0].mxu0
      %v1022 = vadd.f32 0.0, %v1021
      %v1023 = vpop.f32.mrb[0].mxu0
      %1024 = vmatprep.mubr.f32.mxu0 0.0
      %1025 = vmatmul.mubr.f32.gmra.mrb[0].mxu0 %v814
      %v1026 = vpop.f32.mrb[0].mxu0
      %v1027 = vadd.f32 0.0, %v1026
      %v1028 = vpop.f32.mrb[0].mxu0
      %1029 = vmatprep.mubr.f32.mxu0 0.0
      %1030 = vmatmul.mubr.f32.gmra.mrb[0].mxu0 %v817
      %v1031 = vpop.f32.mrb[0].mxu0
      %v1032 = vadd.f32 0.0, %v1031
      %v1033 = vpop.f32.mrb[0].mxu0
      %1034 = vmatprep.mubr.f32.mxu0 0.0
      %1035 = vmatmul.mubr.f32.gmra.mrb[0].mxu0 %v820
      %v1036 = vpop.f32.mrb[0].mxu0
      %v1037 = vadd.f32 0.0, %v1036
      %v1038 = vpop.f32.mrb[0].mxu0
      %1039 = vdwg.mxu0
      %v1041 = vsel %vm797, %v706, 0
      %v1044 = vsel %vm797, %v707, 0
      %v1047 = vsel %vm797, %v708, 0
      %v1050 = vsel %vm797, %v709, 0
      %v1053 = vsel %vm797, %v710, 0
      %v1056 = vsel %vm797, %v711, 0
      %v1059 = vsel %vm797, %v712, 0
      %v1062 = vsel %vm797, %v713, 0
      %1064 = vmatprep.subr.mxu0 %v658
      %1065 = vmatpush1.msra.mxu0 %v657
      %1066 = vmatprep.subr.mxu0 %v661
      %1067 = vmatpush1.msra.mxu0 %v660
      %1068 = vmatprep.subr.mxu0 %v664
      %1069 = vmatpush1.msra.mxu0 %v663
      %1070 = vmatprep.subr.mxu0 %v667
      %1071 = vmatpush1.msra.mxu0 %v666
      %1072 = vmatprep.subr.mxu0 %v670
      %1073 = vmatpush1.msra.mxu0 %v669
      %1074 = vmatprep.subr.mxu0 %v673
      %1075 = vmatpush1.msra.mxu0 %v672
      %1076 = vmatprep.subr.mxu0 %v676
      %1077 = vmatpush1.msra.mxu0 %v675
      %1078 = vmatprep.subr.mxu0 %v679
      %1079 = vmatpush1.msra.mxu0 %v678
      %1080 = vmatprep.subr.mxu0 0.0
      %1081 = vmatpush1.msra.mxu0 0.0
      %1082 = vmatprep.subr.mxu0 0.0
      %1083 = vmatpush1.msra.mxu0 0.0
      %1084 = vmatprep.subr.mxu0 0.0
      %1085 = vmatpush1.msra.mxu0 0.0
      %1086 = vmatprep.subr.mxu0 0.0
      %1087 = vmatpush1.msra.mxu0 0.0
      %1088 = vmatprep.subr.mxu0 0.0
      %1089 = vmatpush1.msra.mxu0 0.0
      %1090 = vmatprep.subr.mxu0 0.0
      %1091 = vmatpush1.msra.mxu0 0.0
      %1092 = vmatprep.subr.mxu0 0.0
      %1093 = vmatpush1.msra.mxu0 0.0
      %1094 = vmatprep.subr.mxu0 0.0
      %1095 = vmatpush1.msra.mxu0 0.0
      %1096 = vmatprep.subr.mxu0 0.0
      %1097 = vmatpush1.msra.mxu0 0.0
      %1098 = vmatprep.subr.mxu0 0.0
      %1099 = vmatpush1.msra.mxu0 0.0
      %1100 = vmatprep.subr.mxu0 0.0
      %1101 = vmatpush1.msra.mxu0 0.0
      %1102 = vmatprep.subr.mxu0 0.0
      %1103 = vmatpush1.msra.mxu0 0.0
      %1104 = vmatprep.subr.mxu0 0.0
      %1105 = vmatpush1.msra.mxu0 0.0
      %1106 = vmatprep.subr.mxu0 0.0
      %1107 = vmatpush1.msra.mxu0 0.0
      %1108 = vmatprep.subr.mxu0 0.0
      %1109 = vmatpush1.msra.mxu0 0.0
      %1110 = vmatprep.subr.mxu0 0.0
      %1111 = vmatpush1.msra.mxu0 0.0
      %1112 = vmatprep.subr.mxu0 0.0
      %1113 = vmatpush1.msra.mxu0 0.0
      %1114 = vmatprep.subr.mxu0 0.0
      %1115 = vmatpush1.msra.mxu0 0.0
      %1116 = vmatprep.subr.mxu0 0.0
      %1117 = vmatpush1.msra.mxu0 0.0
      %1118 = vmatprep.subr.mxu0 0.0
      %1119 = vmatpush1.msra.mxu0 0.0
      %1120 = vmatprep.subr.mxu0 0.0
      %1121 = vmatpush1.msra.mxu0 0.0
      %1122 = vmatprep.subr.mxu0 0.0
      %1123 = vmatpush1.msra.mxu0 0.0
      %1124 = vmatprep.subr.mxu0 0.0
      %1125 = vmatpush1.msra.mxu0 0.0
      %1126 = vmatprep.subr.mxu0 0.0
      %1127 = vmatpush1.msra.mxu0 0.0
      %1128 = vmatprep.mubr.f32.mxu0 0.0
      %1129 = vmatmul.mubr.f32.gmra.mrb[0].mxu0 %v1041
      %v1130 = vpop.f32.mrb[0].mxu0
      %v1131 = vadd.f32 %v889, %v1130
      %v1132 = vpop.f32.mrb[0].mxu0
      %v1133 = vadd.f32 %v891, %v1132
      %1134 = vmatprep.mubr.f32.mxu0 0.0
      %1135 = vmatmul.mubr.f32.gmra.mrb[0].mxu0 %v1044
      %v1136 = vpop.f32.mrb[0].mxu0
      %v1137 = vadd.f32 %v895, %v1136
      %v1138 = vpop.f32.mrb[0].mxu0
      %v1139 = vadd.f32 %v897, %v1138
      %1140 = vmatprep.mubr.f32.mxu0 0.0
      %1141 = vmatmul.mubr.f32.gmra.mrb[0].mxu0 %v1047
      %v1142 = vpop.f32.mrb[0].mxu0
      %v1143 = vadd.f32 %v901, %v1142
      %v1144 = vpop.f32.mrb[0].mxu0
      %v1145 = vadd.f32 %v903, %v1144
      %1146 = vmatprep.mubr.f32.mxu0 0.0
      %1147 = vmatmul.mubr.f32.gmra.mrb[0].mxu0 %v1050
      %v1148 = vpop.f32.mrb[0].mxu0
      %v1149 = vadd.f32 %v907, %v1148
      %v1150 = vpop.f32.mrb[0].mxu0
      %v1151 = vadd.f32 %v909, %v1150
      %1152 = vmatprep.mubr.f32.mxu0 0.0
      %1153 = vmatmul.mubr.f32.gmra.mrb[0].mxu0 %v1053
      %v1154 = vpop.f32.mrb[0].mxu0
      %v1155 = vadd.f32 %v913, %v1154
      %v1156 = vpop.f32.mrb[0].mxu0
      %v1157 = vadd.f32 %v915, %v1156
      %1158 = vmatprep.mubr.f32.mxu0 0.0
      %1159 = vmatmul.mubr.f32.gmra.mrb[0].mxu0 %v1056
      %v1160 = vpop.f32.mrb[0].mxu0
      %v1161 = vadd.f32 %v919, %v1160
      %v1162 = vpop.f32.mrb[0].mxu0
      %v1163 = vadd.f32 %v921, %v1162
      %1164 = vmatprep.mubr.f32.mxu0 0.0
      %1165 = vmatmul.mubr.f32.gmra.mrb[0].mxu0 %v1059
      %v1166 = vpop.f32.mrb[0].mxu0
      %v1167 = vadd.f32 %v925, %v1166
      %v1168 = vpop.f32.mrb[0].mxu0
      %v1169 = vadd.f32 %v927, %v1168
      %1170 = vmatprep.mubr.f32.mxu0 0.0
      %1171 = vmatmul.mubr.f32.gmra.mrb[0].mxu0 %v1062
      %v1172 = vpop.f32.mrb[0].mxu0
      %v1173 = vadd.f32 %v931, %v1172
      %v1174 = vpop.f32.mrb[0].mxu0
      %v1175 = vadd.f32 %v933, %v1174
      %1176 = vdwg.mxu0
      %1177 = vmatprep.subr.mxu0 0.0
      %1178 = vmatpush1.msra.mxu0 %v659
      %1179 = vmatprep.subr.mxu0 0.0
      %1180 = vmatpush1.msra.mxu0 %v662
      %1181 = vmatprep.subr.mxu0 0.0
      %1182 = vmatpush1.msra.mxu0 %v665
      %1183 = vmatprep.subr.mxu0 0.0
      %1184 = vmatpush1.msra.mxu0 %v668
      %1185 = vmatprep.subr.mxu0 0.0
      %1186 = vmatpush1.msra.mxu0 %v671
      %1187 = vmatprep.subr.mxu0 0.0
      %1188 = vmatpush1.msra.mxu0 %v674
      %1189 = vmatprep.subr.mxu0 0.0
      %1190 = vmatpush1.msra.mxu0 %v677
      %1191 = vmatprep.subr.mxu0 0.0
      %1192 = vmatpush1.msra.mxu0 %v680
      %1193 = vmatprep.subr.mxu0 0.0
      %1194 = vmatpush1.msra.mxu0 0.0
      %1195 = vmatprep.subr.mxu0 0.0
      %1196 = vmatpush1.msra.mxu0 0.0
      %1197 = vmatprep.subr.mxu0 0.0
      %1198 = vmatpush1.msra.mxu0 0.0
      %1199 = vmatprep.subr.mxu0 0.0
      %1200 = vmatpush1.msra.mxu0 0.0
      %1201 = vmatprep.subr.mxu0 0.0
      %1202 = vmatpush1.msra.mxu0 0.0
      %1203 = vmatprep.subr.mxu0 0.0
      %1204 = vmatpush1.msra.mxu0 0.0
      %1205 = vmatprep.subr.mxu0 0.0
      %1206 = vmatpush1.msra.mxu0 0.0
      %1207 = vmatprep.subr.mxu0 0.0
      %1208 = vmatpush1.msra.mxu0 0.0
      %1209 = vmatprep.subr.mxu0 0.0
      %1210 = vmatpush1.msra.mxu0 0.0
      %1211 = vmatprep.subr.mxu0 0.0
      %1212 = vmatpush1.msra.mxu0 0.0
      %1213 = vmatprep.subr.mxu0 0.0
      %1214 = vmatpush1.msra.mxu0 0.0
      %1215 = vmatprep.subr.mxu0 0.0
      %1216 = vmatpush1.msra.mxu0 0.0
      %1217 = vmatprep.subr.mxu0 0.0
      %1218 = vmatpush1.msra.mxu0 0.0
      %1219 = vmatprep.subr.mxu0 0.0
      %1220 = vmatpush1.msra.mxu0 0.0
      %1221 = vmatprep.subr.mxu0 0.0
      %1222 = vmatpush1.msra.mxu0 0.0
      %1223 = vmatprep.subr.mxu0 0.0
      %1224 = vmatpush1.msra.mxu0 0.0
      %1225 = vmatprep.subr.mxu0 0.0
      %1226 = vmatpush1.msra.mxu0 0.0
      %1227 = vmatprep.subr.mxu0 0.0
      %1228 = vmatpush1.msra.mxu0 0.0
      %1229 = vmatprep.subr.mxu0 0.0
      %1230 = vmatpush1.msra.mxu0 0.0
      %1231 = vmatprep.subr.mxu0 0.0
      %1232 = vmatpush1.msra.mxu0 0.0
      %1233 = vmatprep.subr.mxu0 0.0
      %1234 = vmatpush1.msra.mxu0 0.0
      %1235 = vmatprep.subr.mxu0 0.0
      %1236 = vmatpush1.msra.mxu0 0.0
      %1237 = vmatprep.subr.mxu0 0.0
      %1238 = vmatpush1.msra.mxu0 0.0
      %1239 = vmatprep.subr.mxu0 0.0
      %1240 = vmatpush1.msra.mxu0 0.0
      %1241 = vmatprep.mubr.f32.mxu0 0.0
      %1242 = vmatmul.mubr.f32.gmra.mrb[0].mxu0 %v1041
      %v1243 = vpop.f32.mrb[0].mxu0
      %v1244 = vadd.f32 %v1002, %v1243
      %v1245 = vpop.f32.mrb[0].mxu0
      %1246 = vmatprep.mubr.f32.mxu0 0.0
      %1247 = vmatmul.mubr.f32.gmra.mrb[0].mxu0 %v1044
      %v1248 = vpop.f32.mrb[0].mxu0
      %v1249 = vadd.f32 %v1007, %v1248
      %v1250 = vpop.f32.mrb[0].mxu0
      %1251 = vmatprep.mubr.f32.mxu0 0.0
      %1252 = vmatmul.mubr.f32.gmra.mrb[0].mxu0 %v1047
      %v1253 = vpop.f32.mrb[0].mxu0
      %v1254 = vadd.f32 %v1012, %v1253
      %v1255 = vpop.f32.mrb[0].mxu0
      %1256 = vmatprep.mubr.f32.mxu0 0.0
      %1257 = vmatmul.mubr.f32.gmra.mrb[0].mxu0 %v1050
      %v1258 = vpop.f32.mrb[0].mxu0
      %v1259 = vadd.f32 %v1017, %v1258
      %v1260 = vpop.f32.mrb[0].mxu0
      %1261 = vmatprep.mubr.f32.mxu0 0.0
      %1262 = vmatmul.mubr.f32.gmra.mrb[0].mxu0 %v1053
      %v1263 = vpop.f32.mrb[0].mxu0
      %v1264 = vadd.f32 %v1022, %v1263
      %v1265 = vpop.f32.mrb[0].mxu0
      %1266 = vmatprep.mubr.f32.mxu0 0.0
      %1267 = vmatmul.mubr.f32.gmra.mrb[0].mxu0 %v1056
      %v1268 = vpop.f32.mrb[0].mxu0
      %v1269 = vadd.f32 %v1027, %v1268
      %v1270 = vpop.f32.mrb[0].mxu0
      %1271 = vmatprep.mubr.f32.mxu0 0.0
      %1272 = vmatmul.mubr.f32.gmra.mrb[0].mxu0 %v1059
      %v1273 = vpop.f32.mrb[0].mxu0
      %v1274 = vadd.f32 %v1032, %v1273
      %v1275 = vpop.f32.mrb[0].mxu0
      %1276 = vmatprep.mubr.f32.mxu0 0.0
      %1277 = vmatmul.mubr.f32.gmra.mrb[0].mxu0 %v1062
      %v1278 = vpop.f32.mrb[0].mxu0
      %v1279 = vadd.f32 %v1037, %v1278
      %v1280 = vpop.f32.mrb[0].mxu0
      %1281 = vdwg.mxu0
      %s1282 = scalar_lea.vmem %s4, 64
      %v1283 = vld [vmem:[%s1282] sm:$0xff]
      %v1284 = vld [vmem:[%s1282 + $0x8] sm:$0xff]
      %v1285 = vld [vmem:[%s1282 + $0x10] sm:$0xff]
      %v1286 = vld [vmem:[%s1282 + $0x18] sm:$0xff]
      %v1287 = vld [vmem:[%s1282 + $0x20] sm:$0xff]
      %v1288 = vld [vmem:[%s1282 + $0x28] sm:$0xff]
      %v1289 = vld [vmem:[%s1282 + $0x30] sm:$0xff]
      %v1290 = vld [vmem:[%s1282 + $0x38] sm:$0xff]
      %1291 = vrot.lane.b32.xlu0 %v657, 18
      %v1292 = vpop.permute.xlu0 %1291
      %1293 = vrot.lane.b32.xlu0 %v660, 18
      %v1294 = vpop.permute.xlu0 %1293
      %1295 = vrot.lane.b32.xlu0 %v663, 18
      %v1296 = vpop.permute.xlu0 %1295
      %1297 = vrot.lane.b32.xlu0 %v666, 18
      %v1298 = vpop.permute.xlu0 %1297
      %1299 = vrot.lane.b32.xlu0 %v669, 18
      %v1300 = vpop.permute.xlu0 %1299
      %1301 = vrot.lane.b32.xlu0 %v672, 18
      %v1302 = vpop.permute.xlu0 %1301
      %1303 = vrot.lane.b32.xlu0 %v675, 18
      %v1304 = vpop.permute.xlu0 %1303
      %1305 = vrot.lane.b32.xlu0 %v678, 18
      %v1306 = vpop.permute.xlu0 %1305
      %1307 = vrot.lane.b32.xlu0 %v658, 18
      %v1308 = vpop.permute.xlu0 %1307
      %1309 = vrot.lane.b32.xlu0 %v661, 18
      %v1310 = vpop.permute.xlu0 %1309
      %1311 = vrot.lane.b32.xlu0 %v664, 18
      %v1312 = vpop.permute.xlu0 %1311
      %1313 = vrot.lane.b32.xlu0 %v667, 18
      %v1314 = vpop.permute.xlu0 %1313
      %1315 = vrot.lane.b32.xlu0 %v670, 18
      %v1316 = vpop.permute.xlu0 %1315
      %1317 = vrot.lane.b32.xlu0 %v673, 18
      %v1318 = vpop.permute.xlu0 %1317
      %1319 = vrot.lane.b32.xlu0 %v676, 18
      %v1320 = vpop.permute.xlu0 %1319
      %1321 = vrot.lane.b32.xlu0 %v679, 18
      %v1322 = vpop.permute.xlu0 %1321
      %1323 = vrot.lane.b32.xlu0 %v659, 18
      %v1324 = vpop.permute.xlu0 %1323
      %1325 = vrot.lane.b32.xlu0 %v662, 18
      %v1326 = vpop.permute.xlu0 %1325
      %1327 = vrot.lane.b32.xlu0 %v665, 18
      %v1328 = vpop.permute.xlu0 %1327
      %1329 = vrot.lane.b32.xlu0 %v668, 18
      %v1330 = vpop.permute.xlu0 %1329
      %1331 = vrot.lane.b32.xlu0 %v671, 18
      %v1332 = vpop.permute.xlu0 %1331
      %1333 = vrot.lane.b32.xlu0 %v674, 18
      %v1334 = vpop.permute.xlu0 %1333
      %1335 = vrot.lane.b32.xlu0 %v677, 18
      %v1336 = vpop.permute.xlu0 %1335
      %1337 = vrot.lane.b32.xlu0 %v680, 18
      %v1338 = vpop.permute.xlu0 %1337
      %vm1339 = vcmp.lt.s32.totalorder %v771, 18
      %v1340 = vsel %vm1339, %v1308, %v1324
      %v1341 = vsel %vm1339, %v1310, %v1326
      %v1342 = vsel %vm1339, %v1312, %v1328
      %v1343 = vsel %vm1339, %v1314, %v1330
      %v1344 = vsel %vm1339, %v1316, %v1332
      %v1345 = vsel %vm1339, %v1318, %v1334
      %v1346 = vsel %vm1339, %v1320, %v1336
      %v1347 = vsel %vm1339, %v1322, %v1338
      %v1348 = vsel %vm1339, %v1292, %v1308
      %v1349 = vsel %vm1339, %v1294, %v1310
      %v1350 = vsel %vm1339, %v1296, %v1312
      %v1351 = vsel %vm1339, %v1298, %v1314
      %v1352 = vsel %vm1339, %v1300, %v1316
      %v1353 = vsel %vm1339, %v1302, %v1318
      %v1354 = vsel %vm1339, %v1304, %v1320
      %v1355 = vsel %vm1339, %v1306, %v1322
      %v1356 = vsel %vm1339, %v1324, %v1292
      %v1357 = vsel %vm1339, %v1326, %v1294
      %v1358 = vsel %vm1339, %v1328, %v1296
      %v1359 = vsel %vm1339, %v1330, %v1298
      %v1360 = vsel %vm1339, %v1332, %v1300
      %v1361 = vsel %vm1339, %v1334, %v1302
      %v1362 = vsel %vm1339, %v1336, %v1304
      %v1363 = vsel %vm1339, %v1338, %v1306
      %v1365 = vsel %vm797, %v1283, 0
      %v1368 = vsel %vm797, %v1284, 0
      %v1371 = vsel %vm797, %v1285, 0
      %v1374 = vsel %vm797, %v1286, 0
      %v1377 = vsel %vm797, %v1287, 0
      %v1380 = vsel %vm797, %v1288, 0
      %v1383 = vsel %vm797, %v1289, 0
      %v1386 = vsel %vm797, %v1290, 0
      %1388 = vmatprep.subr.mxu0 %v1348
      %1389 = vmatpush1.msra.mxu0 %v1356
      %1390 = vmatprep.subr.mxu0 %v1349
      %1391 = vmatpush1.msra.mxu0 %v1357
      %1392 = vmatprep.subr.mxu0 %v1350
      %1393 = vmatpush1.msra.mxu0 %v1358
      %1394 = vmatprep.subr.mxu0 %v1351
      %1395 = vmatpush1.msra.mxu0 %v1359
      %1396 = vmatprep.subr.mxu0 %v1352
      %1397 = vmatpush1.msra.mxu0 %v1360
      %1398 = vmatprep.subr.mxu0 %v1353
      %1399 = vmatpush1.msra.mxu0 %v1361
      %1400 = vmatprep.subr.mxu0 %v1354
      %1401 = vmatpush1.msra.mxu0 %v1362
      %1402 = vmatprep.subr.mxu0 %v1355
      %1403 = vmatpush1.msra.mxu0 %v1363
      %1404 = vmatprep.subr.mxu0 0.0
      %1405 = vmatpush1.msra.mxu0 0.0
      %1406 = vmatprep.subr.mxu0 0.0
      %1407 = vmatpush1.msra.mxu0 0.0
      %1408 = vmatprep.subr.mxu0 0.0
      %1409 = vmatpush1.msra.mxu0 0.0
      %1410 = vmatprep.subr.mxu0 0.0
      %1411 = vmatpush1.msra.mxu0 0.0
      %1412 = vmatprep.subr.mxu0 0.0
      %1413 = vmatpush1.msra.mxu0 0.0
      %1414 = vmatprep.subr.mxu0 0.0
      %1415 = vmatpush1.msra.mxu0 0.0
      %1416 = vmatprep.subr.mxu0 0.0
      %1417 = vmatpush1.msra.mxu0 0.0
      %1418 = vmatprep.subr.mxu0 0.0
      %1419 = vmatpush1.msra.mxu0 0.0
      %1420 = vmatprep.subr.mxu0 0.0
      %1421 = vmatpush1.msra.mxu0 0.0
      %1422 = vmatprep.subr.mxu0 0.0
      %1423 = vmatpush1.msra.mxu0 0.0
      %1424 = vmatprep.subr.mxu0 0.0
      %1425 = vmatpush1.msra.mxu0 0.0
      %1426 = vmatprep.subr.mxu0 0.0
      %1427 = vmatpush1.msra.mxu0 0.0
      %1428 = vmatprep.subr.mxu0 0.0
      %1429 = vmatpush1.msra.mxu0 0.0
      %1430 = vmatprep.subr.mxu0 0.0
      %1431 = vmatpush1.msra.mxu0 0.0
      %1432 = vmatprep.subr.mxu0 0.0
      %1433 = vmatpush1.msra.mxu0 0.0
      %1434 = vmatprep.subr.mxu0 0.0
      %1435 = vmatpush1.msra.mxu0 0.0
      %1436 = vmatprep.subr.mxu0 0.0
      %1437 = vmatpush1.msra.mxu0 0.0
      %1438 = vmatprep.subr.mxu0 0.0
      %1439 = vmatpush1.msra.mxu0 0.0
      %1440 = vmatprep.subr.mxu0 0.0
      %1441 = vmatpush1.msra.mxu0 0.0
      %1442 = vmatprep.subr.mxu0 0.0
      %1443 = vmatpush1.msra.mxu0 0.0
      %1444 = vmatprep.subr.mxu0 0.0
      %1445 = vmatpush1.msra.mxu0 0.0
      %1446 = vmatprep.subr.mxu0 0.0
      %1447 = vmatpush1.msra.mxu0 0.0
      %1448 = vmatprep.subr.mxu0 0.0
      %1449 = vmatpush1.msra.mxu0 0.0
      %1450 = vmatprep.subr.mxu0 0.0
      %1451 = vmatpush1.msra.mxu0 0.0
      %1452 = vmatprep.mubr.f32.mxu0 0.0
      %1453 = vmatmul.mubr.f32.gmra.mrb[0].mxu0 %v1365
      %v1454 = vpop.f32.mrb[0].mxu0
      %v1455 = vadd.f32 0.0, %v1454
      %v1456 = vpop.f32.mrb[0].mxu0
      %v1457 = vadd.f32 0.0, %v1456
      %1458 = vmatprep.mubr.f32.mxu0 0.0
      %1459 = vmatmul.mubr.f32.gmra.mrb[0].mxu0 %v1368
      %v1460 = vpop.f32.mrb[0].mxu0
      %v1461 = vadd.f32 0.0, %v1460
      %v1462 = vpop.f32.mrb[0].mxu0
      %v1463 = vadd.f32 0.0, %v1462
      %1464 = vmatprep.mubr.f32.mxu0 0.0
      %1465 = vmatmul.mubr.f32.gmra.mrb[0].mxu0 %v1371
      %v1466 = vpop.f32.mrb[0].mxu0
      %v1467 = vadd.f32 0.0, %v1466
      %v1468 = vpop.f32.mrb[0].mxu0
      %v1469 = vadd.f32 0.0, %v1468
      %1470 = vmatprep.mubr.f32.mxu0 0.0
      %1471 = vmatmul.mubr.f32.gmra.mrb[0].mxu0 %v1374
      %v1472 = vpop.f32.mrb[0].mxu0
      %v1473 = vadd.f32 0.0, %v1472
      %v1474 = vpop.f32.mrb[0].mxu0
      %v1475 = vadd.f32 0.0, %v1474
      %1476 = vmatprep.mubr.f32.mxu0 0.0
      %1477 = vmatmul.mubr.f32.gmra.mrb[0].mxu0 %v1377
      %v1478 = vpop.f32.mrb[0].mxu0
      %v1479 = vadd.f32 0.0, %v1478
      %v1480 = vpop.f32.mrb[0].mxu0
      %v1481 = vadd.f32 0.0, %v1480
      %1482 = vmatprep.mubr.f32.mxu0 0.0
      %1483 = vmatmul.mubr.f32.gmra.mrb[0].mxu0 %v1380
      %v1484 = vpop.f32.mrb[0].mxu0
      %v1485 = vadd.f32 0.0, %v1484
      %v1486 = vpop.f32.mrb[0].mxu0
      %v1487 = vadd.f32 0.0, %v1486
      %1488 = vmatprep.mubr.f32.mxu0 0.0
      %1489 = vmatmul.mubr.f32.gmra.mrb[0].mxu0 %v1383
      %v1490 = vpop.f32.mrb[0].mxu0
      %v1491 = vadd.f32 0.0, %v1490
      %v1492 = vpop.f32.mrb[0].mxu0
      %v1493 = vadd.f32 0.0, %v1492
      %1494 = vmatprep.mubr.f32.mxu0 0.0
      %1495 = vmatmul.mubr.f32.gmra.mrb[0].mxu0 %v1386
      %v1496 = vpop.f32.mrb[0].mxu0
      %v1497 = vadd.f32 0.0, %v1496
      %v1498 = vpop.f32.mrb[0].mxu0
      %v1499 = vadd.f32 0.0, %v1498
      %1500 = vdwg.mxu0
      %1501 = vmatprep.subr.mxu0 0.0
      %1502 = vmatpush1.msra.mxu0 %v1340
      %1503 = vmatprep.subr.mxu0 0.0
      %1504 = vmatpush1.msra.mxu0 %v1341
      %1505 = vmatprep.subr.mxu0 0.0
      %1506 = vmatpush1.msra.mxu0 %v1342
      %1507 = vmatprep.subr.mxu0 0.0
      %1508 = vmatpush1.msra.mxu0 %v1343
      %1509 = vmatprep.subr.mxu0 0.0
      %1510 = vmatpush1.msra.mxu0 %v1344
      %1511 = vmatprep.subr.mxu0 0.0
      %1512 = vmatpush1.msra.mxu0 %v1345
      %1513 = vmatprep.subr.mxu0 0.0
      %1514 = vmatpush1.msra.mxu0 %v1346
      %1515 = vmatprep.subr.mxu0 0.0
      %1516 = vmatpush1.msra.mxu0 %v1347
      %1517 = vmatprep.subr.mxu0 0.0
      %1518 = vmatpush1.msra.mxu0 0.0
      %1519 = vmatprep.subr.mxu0 0.0
      %1520 = vmatpush1.msra.mxu0 0.0
      %1521 = vmatprep.subr.mxu0 0.0
      %1522 = vmatpush1.msra.mxu0 0.0
      %1523 = vmatprep.subr.mxu0 0.0
      %1524 = vmatpush1.msra.mxu0 0.0
      %1525 = vmatprep.subr.mxu0 0.0
      %1526 = vmatpush1.msra.mxu0 0.0
      %1527 = vmatprep.subr.mxu0 0.0
      %1528 = vmatpush1.msra.mxu0 0.0
      %1529 = vmatprep.subr.mxu0 0.0
      %1530 = vmatpush1.msra.mxu0 0.0
      %1531 = vmatprep.subr.mxu0 0.0
      %1532 = vmatpush1.msra.mxu0 0.0
      %1533 = vmatprep.subr.mxu0 0.0
      %1534 = vmatpush1.msra.mxu0 0.0
      %1535 = vmatprep.subr.mxu0 0.0
      %1536 = vmatpush1.msra.mxu0 0.0
      %1537 = vmatprep.subr.mxu0 0.0
      %1538 = vmatpush1.msra.mxu0 0.0
      %1539 = vmatprep.subr.mxu0 0.0
      %1540 = vmatpush1.msra.mxu0 0.0
      %1541 = vmatprep.subr.mxu0 0.0
      %1542 = vmatpush1.msra.mxu0 0.0
      %1543 = vmatprep.subr.mxu0 0.0
      %1544 = vmatpush1.msra.mxu0 0.0
      %1545 = vmatprep.subr.mxu0 0.0
      %1546 = vmatpush1.msra.mxu0 0.0
      %1547 = vmatprep.subr.mxu0 0.0
      %1548 = vmatpush1.msra.mxu0 0.0
      %1549 = vmatprep.subr.mxu0 0.0
      %1550 = vmatpush1.msra.mxu0 0.0
      %1551 = vmatprep.subr.mxu0 0.0
      %1552 = vmatpush1.msra.mxu0 0.0
      %1553 = vmatprep.subr.mxu0 0.0
      %1554 = vmatpush1.msra.mxu0 0.0
      %1555 = vmatprep.subr.mxu0 0.0
      %1556 = vmatpush1.msra.mxu0 0.0
      %1557 = vmatprep.subr.mxu0 0.0
      %1558 = vmatpush1.msra.mxu0 0.0
      %1559 = vmatprep.subr.mxu0 0.0
      %1560 = vmatpush1.msra.mxu0 0.0
      %1561 = vmatprep.subr.mxu0 0.0
      %1562 = vmatpush1.msra.mxu0 0.0
      %1563 = vmatprep.subr.mxu0 0.0
      %1564 = vmatpush1.msra.mxu0 0.0
      %1565 = vmatprep.mubr.f32.mxu0 0.0
      %1566 = vmatmul.mubr.f32.gmra.mrb[0].mxu0 %v1365
      %v1567 = vpop.f32.mrb[0].mxu0
      %v1568 = vadd.f32 0.0, %v1567
      %v1569 = vpop.f32.mrb[0].mxu0
      %1570 = vmatprep.mubr.f32.mxu0 0.0
      %1571 = vmatmul.mubr.f32.gmra.mrb[0].mxu0 %v1368
      %v1572 = vpop.f32.mrb[0].mxu0
      %v1573 = vadd.f32 0.0, %v1572
      %v1574 = vpop.f32.mrb[0].mxu0
      %1575 = vmatprep.mubr.f32.mxu0 0.0
      %1576 = vmatmul.mubr.f32.gmra.mrb[0].mxu0 %v1371
      %v1577 = vpop.f32.mrb[0].mxu0
      %v1578 = vadd.f32 0.0, %v1577
      %v1579 = vpop.f32.mrb[0].mxu0
      %1580 = vmatprep.mubr.f32.mxu0 0.0
      %1581 = vmatmul.mubr.f32.gmra.mrb[0].mxu0 %v1374
      %v1582 = vpop.f32.mrb[0].mxu0
      %v1583 = vadd.f32 0.0, %v1582
      %v1584 = vpop.f32.mrb[0].mxu0
      %1585 = vmatprep.mubr.f32.mxu0 0.0
      %1586 = vmatmul.mubr.f32.gmra.mrb[0].mxu0 %v1377
      %v1587 = vpop.f32.mrb[0].mxu0
      %v1588 = vadd.f32 0.0, %v1587
      %v1589 = vpop.f32.mrb[0].mxu0
      %1590 = vmatprep.mubr.f32.mxu0 0.0
      %1591 = vmatmul.mubr.f32.gmra.mrb[0].mxu0 %v1380
      %v1592 = vpop.f32.mrb[0].mxu0
      %v1593 = vadd.f32 0.0, %v1592
      %v1594 = vpop.f32.mrb[0].mxu0
      %1595 = vmatprep.mubr.f32.mxu0 0.0
      %1596 = vmatmul.mubr.f32.gmra.mrb[0].mxu0 %v1383
      %v1597 = vpop.f32.mrb[0].mxu0
      %v1598 = vadd.f32 0.0, %v1597
      %v1599 = vpop.f32.mrb[0].mxu0
      %1600 = vmatprep.mubr.f32.mxu0 0.0
      %1601 = vmatmul.mubr.f32.gmra.mrb[0].mxu0 %v1386
      %v1602 = vpop.f32.mrb[0].mxu0
      %v1603 = vadd.f32 0.0, %v1602
      %v1604 = vpop.f32.mrb[0].mxu0
      %1605 = vdwg.mxu0
      %v1606 = vadd.f32 %v1131, %v1455
      %v1607 = vadd.f32 %v1133, %v1457
      %v1608 = vadd.f32 %v1244, %v1568
      %v1609 = vadd.f32 %v1137, %v1461
      %v1610 = vadd.f32 %v1139, %v1463
      %v1611 = vadd.f32 %v1249, %v1573
      %v1612 = vadd.f32 %v1143, %v1467
      %v1613 = vadd.f32 %v1145, %v1469
      %v1614 = vadd.f32 %v1254, %v1578
      %v1615 = vadd.f32 %v1149, %v1473
      %v1616 = vadd.f32 %v1151, %v1475
      %v1617 = vadd.f32 %v1259, %v1583
      %v1618 = vadd.f32 %v1155, %v1479
      %v1619 = vadd.f32 %v1157, %v1481
      %v1620 = vadd.f32 %v1264, %v1588
      %v1621 = vadd.f32 %v1161, %v1485
      %v1622 = vadd.f32 %v1163, %v1487
      %v1623 = vadd.f32 %v1269, %v1593
      %v1624 = vadd.f32 %v1167, %v1491
      %v1625 = vadd.f32 %v1169, %v1493
      %v1626 = vadd.f32 %v1274, %v1598
      %v1627 = vadd.f32 %v1173, %v1497
      %v1628 = vadd.f32 %v1175, %v1499
      %v1629 = vadd.f32 %v1279, %v1603
      %s1630 = scalar_lea.vmem %s4, 128
      %v1631 = vld [vmem:[%s1630] sm:$0xff]
      %v1632 = vld [vmem:[%s1630 + $0x8] sm:$0xff]
      %v1633 = vld [vmem:[%s1630 + $0x10] sm:$0xff]
      %v1634 = vld [vmem:[%s1630 + $0x18] sm:$0xff]
      %v1635 = vld [vmem:[%s1630 + $0x20] sm:$0xff]
      %v1636 = vld [vmem:[%s1630 + $0x28] sm:$0xff]
      %v1637 = vld [vmem:[%s1630 + $0x30] sm:$0xff]
      %v1638 = vld [vmem:[%s1630 + $0x38] sm:$0xff]
      %1639 = vrot.lane.b32.xlu0 %v657, 17
      %v1640 = vpop.permute.xlu0 %1639
      %1641 = vrot.lane.b32.xlu0 %v660, 17
      %v1642 = vpop.permute.xlu0 %1641
      %1643 = vrot.lane.b32.xlu0 %v663, 17
      %v1644 = vpop.permute.xlu0 %1643
      %1645 = vrot.lane.b32.xlu0 %v666, 17
      %v1646 = vpop.permute.xlu0 %1645
      %1647 = vrot.lane.b32.xlu0 %v669, 17
      %v1648 = vpop.permute.xlu0 %1647
      %1649 = vrot.lane.b32.xlu0 %v672, 17
      %v1650 = vpop.permute.xlu0 %1649
      %1651 = vrot.lane.b32.xlu0 %v675, 17
      %v1652 = vpop.permute.xlu0 %1651
      %1653 = vrot.lane.b32.xlu0 %v678, 17
      %v1654 = vpop.permute.xlu0 %1653
      %1655 = vrot.lane.b32.xlu0 %v658, 17
      %v1656 = vpop.permute.xlu0 %1655
      %1657 = vrot.lane.b32.xlu0 %v661, 17
      %v1658 = vpop.permute.xlu0 %1657
      %1659 = vrot.lane.b32.xlu0 %v664, 17
      %v1660 = vpop.permute.xlu0 %1659
      %1661 = vrot.lane.b32.xlu0 %v667, 17
      %v1662 = vpop.permute.xlu0 %1661
      %1663 = vrot.lane.b32.xlu0 %v670, 17
      %v1664 = vpop.permute.xlu0 %1663
      %1665 = vrot.lane.b32.xlu0 %v673, 17
      %v1666 = vpop.permute.xlu0 %1665
      %1667 = vrot.lane.b32.xlu0 %v676, 17
      %v1668 = vpop.permute.xlu0 %1667
      %1669 = vrot.lane.b32.xlu0 %v679, 17
      %v1670 = vpop.permute.xlu0 %1669
      %1671 = vrot.lane.b32.xlu0 %v659, 17
      %v1672 = vpop.permute.xlu0 %1671
      %1673 = vrot.lane.b32.xlu0 %v662, 17
      %v1674 = vpop.permute.xlu0 %1673
      %1675 = vrot.lane.b32.xlu0 %v665, 17
      %v1676 = vpop.permute.xlu0 %1675
      %1677 = vrot.lane.b32.xlu0 %v668, 17
      %v1678 = vpop.permute.xlu0 %1677
      %1679 = vrot.lane.b32.xlu0 %v671, 17
      %v1680 = vpop.permute.xlu0 %1679
      %1681 = vrot.lane.b32.xlu0 %v674, 17
      %v1682 = vpop.permute.xlu0 %1681
      %1683 = vrot.lane.b32.xlu0 %v677, 17
      %v1684 = vpop.permute.xlu0 %1683
      %1685 = vrot.lane.b32.xlu0 %v680, 17
      %v1686 = vpop.permute.xlu0 %1685
      %vm1687 = vcmp.lt.s32.totalorder %v771, 17
      %v1688 = vsel %vm1687, %v1656, %v1672
      %v1689 = vsel %vm1687, %v1658, %v1674
      %v1690 = vsel %vm1687, %v1660, %v1676
      %v1691 = vsel %vm1687, %v1662, %v1678
      %v1692 = vsel %vm1687, %v1664, %v1680
      %v1693 = vsel %vm1687, %v1666, %v1682
      %v1694 = vsel %vm1687, %v1668, %v1684
      %v1695 = vsel %vm1687, %v1670, %v1686
      %v1696 = vsel %vm1687, %v1640, %v1656
      %v1697 = vsel %vm1687, %v1642, %v1658
      %v1698 = vsel %vm1687, %v1644, %v1660
      %v1699 = vsel %vm1687, %v1646, %v1662
      %v1700 = vsel %vm1687, %v1648, %v1664
      %v1701 = vsel %vm1687, %v1650, %v1666
      %v1702 = vsel %vm1687, %v1652, %v1668
      %v1703 = vsel %vm1687, %v1654, %v1670
      %v1704 = vsel %vm1687, %v1672, %v1640
      %v1705 = vsel %vm1687, %v1674, %v1642
      %v1706 = vsel %vm1687, %v1676, %v1644
      %v1707 = vsel %vm1687, %v1678, %v1646
      %v1708 = vsel %vm1687, %v1680, %v1648
      %v1709 = vsel %vm1687, %v1682, %v1650
      %v1710 = vsel %vm1687, %v1684, %v1652
      %v1711 = vsel %vm1687, %v1686, %v1654
      %v1713 = vsel %vm797, %v1631, 0
      %v1716 = vsel %vm797, %v1632, 0
      %v1719 = vsel %vm797, %v1633, 0
      %v1722 = vsel %vm797, %v1634, 0
      %v1725 = vsel %vm797, %v1635, 0
      %v1728 = vsel %vm797, %v1636, 0
      %v1731 = vsel %vm797, %v1637, 0
      %v1734 = vsel %vm797, %v1638, 0
      %1736 = vmatprep.subr.mxu0 %v1696
      %1737 = vmatpush1.msra.mxu0 %v1704
      %1738 = vmatprep.subr.mxu0 %v1697
      %1739 = vmatpush1.msra.mxu0 %v1705
      %1740 = vmatprep.subr.mxu0 %v1698
      %1741 = vmatpush1.msra.mxu0 %v1706
      %1742 = vmatprep.subr.mxu0 %v1699
      %1743 = vmatpush1.msra.mxu0 %v1707
      %1744 = vmatprep.subr.mxu0 %v1700
      %1745 = vmatpush1.msra.mxu0 %v1708
      %1746 = vmatprep.subr.mxu0 %v1701
      %1747 = vmatpush1.msra.mxu0 %v1709
      %1748 = vmatprep.subr.mxu0 %v1702
      %1749 = vmatpush1.msra.mxu0 %v1710
      %1750 = vmatprep.subr.mxu0 %v1703
      %1751 = vmatpush1.msra.mxu0 %v1711
      %1752 = vmatprep.subr.mxu0 0.0
      %1753 = vmatpush1.msra.mxu0 0.0
      %1754 = vmatprep.subr.mxu0 0.0
      %1755 = vmatpush1.msra.mxu0 0.0
      %1756 = vmatprep.subr.mxu0 0.0
      %1757 = vmatpush1.msra.mxu0 0.0
      %1758 = vmatprep.subr.mxu0 0.0
      %1759 = vmatpush1.msra.mxu0 0.0
      %1760 = vmatprep.subr.mxu0 0.0
      %1761 = vmatpush1.msra.mxu0 0.0
      %1762 = vmatprep.subr.mxu0 0.0
      %1763 = vmatpush1.msra.mxu0 0.0
      %1764 = vmatprep.subr.mxu0 0.0
      %1765 = vmatpush1.msra.mxu0 0.0
      %1766 = vmatprep.subr.mxu0 0.0
      %1767 = vmatpush1.msra.mxu0 0.0
      %1768 = vmatprep.subr.mxu0 0.0
      %1769 = vmatpush1.msra.mxu0 0.0
      %1770 = vmatprep.subr.mxu0 0.0
      %1771 = vmatpush1.msra.mxu0 0.0
      %1772 = vmatprep.subr.mxu0 0.0
      %1773 = vmatpush1.msra.mxu0 0.0
      %1774 = vmatprep.subr.mxu0 0.0
      %1775 = vmatpush1.msra.mxu0 0.0
      %1776 = vmatprep.subr.mxu0 0.0
      %1777 = vmatpush1.msra.mxu0 0.0
      %1778 = vmatprep.subr.mxu0 0.0
      %1779 = vmatpush1.msra.mxu0 0.0
      %1780 = vmatprep.subr.mxu0 0.0
      %1781 = vmatpush1.msra.mxu0 0.0
      %1782 = vmatprep.subr.mxu0 0.0
      %1783 = vmatpush1.msra.mxu0 0.0
      %1784 = vmatprep.subr.mxu0 0.0
      %1785 = vmatpush1.msra.mxu0 0.0
      %1786 = vmatprep.subr.mxu0 0.0
      %1787 = vmatpush1.msra.mxu0 0.0
      %1788 = vmatprep.subr.mxu0 0.0
      %1789 = vmatpush1.msra.mxu0 0.0
      %1790 = vmatprep.subr.mxu0 0.0
      %1791 = vmatpush1.msra.mxu0 0.0
      %1792 = vmatprep.subr.mxu0 0.0
      %1793 = vmatpush1.msra.mxu0 0.0
      %1794 = vmatprep.subr.mxu0 0.0
      %1795 = vmatpush1.msra.mxu0 0.0
      %1796 = vmatprep.subr.mxu0 0.0
      %1797 = vmatpush1.msra.mxu0 0.0
      %1798 = vmatprep.subr.mxu0 0.0
      %1799 = vmatpush1.msra.mxu0 0.0
      %1800 = vmatprep.mubr.f32.mxu0 0.0
      %1801 = vmatmul.mubr.f32.gmra.mrb[0].mxu0 %v1713
      %v1802 = vpop.f32.mrb[0].mxu0
      %v1803 = vadd.f32 0.0, %v1802
      %v1804 = vpop.f32.mrb[0].mxu0
      %v1805 = vadd.f32 0.0, %v1804
      %1806 = vmatprep.mubr.f32.mxu0 0.0
      %1807 = vmatmul.mubr.f32.gmra.mrb[0].mxu0 %v1716
      %v1808 = vpop.f32.mrb[0].mxu0
      %v1809 = vadd.f32 0.0, %v1808
      %v1810 = vpop.f32.mrb[0].mxu0
      %v1811 = vadd.f32 0.0, %v1810
      %1812 = vmatprep.mubr.f32.mxu0 0.0
      %1813 = vmatmul.mubr.f32.gmra.mrb[0].mxu0 %v1719
      %v1814 = vpop.f32.mrb[0].mxu0
      %v1815 = vadd.f32 0.0, %v1814
      %v1816 = vpop.f32.mrb[0].mxu0
      %v1817 = vadd.f32 0.0, %v1816
      %1818 = vmatprep.mubr.f32.mxu0 0.0
      %1819 = vmatmul.mubr.f32.gmra.mrb[0].mxu0 %v1722
      %v1820 = vpop.f32.mrb[0].mxu0
      %v1821 = vadd.f32 0.0, %v1820
      %v1822 = vpop.f32.mrb[0].mxu0
      %v1823 = vadd.f32 0.0, %v1822
      %1824 = vmatprep.mubr.f32.mxu0 0.0
      %1825 = vmatmul.mubr.f32.gmra.mrb[0].mxu0 %v1725
      %v1826 = vpop.f32.mrb[0].mxu0
      %v1827 = vadd.f32 0.0, %v1826
      %v1828 = vpop.f32.mrb[0].mxu0
      %v1829 = vadd.f32 0.0, %v1828
      %1830 = vmatprep.mubr.f32.mxu0 0.0
      %1831 = vmatmul.mubr.f32.gmra.mrb[0].mxu0 %v1728
      %v1832 = vpop.f32.mrb[0].mxu0
      %v1833 = vadd.f32 0.0, %v1832
      %v1834 = vpop.f32.mrb[0].mxu0
      %v1835 = vadd.f32 0.0, %v1834
      %1836 = vmatprep.mubr.f32.mxu0 0.0
      %1837 = vmatmul.mubr.f32.gmra.mrb[0].mxu0 %v1731
      %v1838 = vpop.f32.mrb[0].mxu0
      %v1839 = vadd.f32 0.0, %v1838
      %v1840 = vpop.f32.mrb[0].mxu0
      %v1841 = vadd.f32 0.0, %v1840
      %1842 = vmatprep.mubr.f32.mxu0 0.0
      %1843 = vmatmul.mubr.f32.gmra.mrb[0].mxu0 %v1734
      %v1844 = vpop.f32.mrb[0].mxu0
      %v1845 = vadd.f32 0.0, %v1844
      %v1846 = vpop.f32.mrb[0].mxu0
      %v1847 = vadd.f32 0.0, %v1846
      %1848 = vdwg.mxu0
      %1849 = vmatprep.subr.mxu0 0.0
      %1850 = vmatpush1.msra.mxu0 %v1688
      %1851 = vmatprep.subr.mxu0 0.0
      %1852 = vmatpush1.msra.mxu0 %v1689
      %1853 = vmatprep.subr.mxu0 0.0
      %1854 = vmatpush1.msra.mxu0 %v1690
      %1855 = vmatprep.subr.mxu0 0.0
      %1856 = vmatpush1.msra.mxu0 %v1691
      %1857 = vmatprep.subr.mxu0 0.0
      %1858 = vmatpush1.msra.mxu0 %v1692
      %1859 = vmatprep.subr.mxu0 0.0
      %1860 = vmatpush1.msra.mxu0 %v1693
      %1861 = vmatprep.subr.mxu0 0.0
      %1862 = vmatpush1.msra.mxu0 %v1694
      %1863 = vmatprep.subr.mxu0 0.0
      %1864 = vmatpush1.msra.mxu0 %v1695
      %1865 = vmatprep.subr.mxu0 0.0
      %1866 = vmatpush1.msra.mxu0 0.0
      %1867 = vmatprep.subr.mxu0 0.0
      %1868 = vmatpush1.msra.mxu0 0.0
      %1869 = vmatprep.subr.mxu0 0.0
      %1870 = vmatpush1.msra.mxu0 0.0
      %1871 = vmatprep.subr.mxu0 0.0
      %1872 = vmatpush1.msra.mxu0 0.0
      %1873 = vmatprep.subr.mxu0 0.0
      %1874 = vmatpush1.msra.mxu0 0.0
      %1875 = vmatprep.subr.mxu0 0.0
      %1876 = vmatpush1.msra.mxu0 0.0
      %1877 = vmatprep.subr.mxu0 0.0
      %1878 = vmatpush1.msra.mxu0 0.0
      %1879 = vmatprep.subr.mxu0 0.0
      %1880 = vmatpush1.msra.mxu0 0.0
      %1881 = vmatprep.subr.mxu0 0.0
      %1882 = vmatpush1.msra.mxu0 0.0
      %1883 = vmatprep.subr.mxu0 0.0
      %1884 = vmatpush1.msra.mxu0 0.0
      %1885 = vmatprep.subr.mxu0 0.0
      %1886 = vmatpush1.msra.mxu0 0.0
      %1887 = vmatprep.subr.mxu0 0.0
      %1888 = vmatpush1.msra.mxu0 0.0
      %1889 = vmatprep.subr.mxu0 0.0
      %1890 = vmatpush1.msra.mxu0 0.0
      %1891 = vmatprep.subr.mxu0 0.0
      %1892 = vmatpush1.msra.mxu0 0.0
      %1893 = vmatprep.subr.mxu0 0.0
      %1894 = vmatpush1.msra.mxu0 0.0
      %1895 = vmatprep.subr.mxu0 0.0
      %1896 = vmatpush1.msra.mxu0 0.0
      %1897 = vmatprep.subr.mxu0 0.0
      %1898 = vmatpush1.msra.mxu0 0.0
      %1899 = vmatprep.subr.mxu0 0.0
      %1900 = vmatpush1.msra.mxu0 0.0
      %1901 = vmatprep.subr.mxu0 0.0
      %1902 = vmatpush1.msra.mxu0 0.0
      %1903 = vmatprep.subr.mxu0 0.0
      %1904 = vmatpush1.msra.mxu0 0.0
      %1905 = vmatprep.subr.mxu0 0.0
      %1906 = vmatpush1.msra.mxu0 0.0
      %1907 = vmatprep.subr.mxu0 0.0
      %1908 = vmatpush1.msra.mxu0 0.0
      %1909 = vmatprep.subr.mxu0 0.0
      %1910 = vmatpush1.msra.mxu0 0.0
      %1911 = vmatprep.subr.mxu0 0.0
      %1912 = vmatpush1.msra.mxu0 0.0
      %1913 = vmatprep.mubr.f32.mxu0 0.0
      %1914 = vmatmul.mubr.f32.gmra.mrb[0].mxu0 %v1713
      %v1915 = vpop.f32.mrb[0].mxu0
      %v1916 = vadd.f32 0.0, %v1915
      %v1917 = vpop.f32.mrb[0].mxu0
      %1918 = vmatprep.mubr.f32.mxu0 0.0
      %1919 = vmatmul.mubr.f32.gmra.mrb[0].mxu0 %v1716
      %v1920 = vpop.f32.mrb[0].mxu0
      %v1921 = vadd.f32 0.0, %v1920
      %v1922 = vpop.f32.mrb[0].mxu0
      %1923 = vmatprep.mubr.f32.mxu0 0.0
      %1924 = vmatmul.mubr.f32.gmra.mrb[0].mxu0 %v1719
      %v1925 = vpop.f32.mrb[0].mxu0
      %v1926 = vadd.f32 0.0, %v1925
      %v1927 = vpop.f32.mrb[0].mxu0
      %1928 = vmatprep.mubr.f32.mxu0 0.0
      %1929 = vmatmul.mubr.f32.gmra.mrb[0].mxu0 %v1722
      %v1930 = vpop.f32.mrb[0].mxu0
      %v1931 = vadd.f32 0.0, %v1930
      %v1932 = vpop.f32.mrb[0].mxu0
      %1933 = vmatprep.mubr.f32.mxu0 0.0
      %1934 = vmatmul.mubr.f32.gmra.mrb[0].mxu0 %v1725
      %v1935 = vpop.f32.mrb[0].mxu0
      %v1936 = vadd.f32 0.0, %v1935
      %v1937 = vpop.f32.mrb[0].mxu0
      %1938 = vmatprep.mubr.f32.mxu0 0.0
      %1939 = vmatmul.mubr.f32.gmra.mrb[0].mxu0 %v1728
      %v1940 = vpop.f32.mrb[0].mxu0
      %v1941 = vadd.f32 0.0, %v1940
      %v1942 = vpop.f32.mrb[0].mxu0
      %1943 = vmatprep.mubr.f32.mxu0 0.0
      %1944 = vmatmul.mubr.f32.gmra.mrb[0].mxu0 %v1731
      %v1945 = vpop.f32.mrb[0].mxu0
      %v1946 = vadd.f32 0.0, %v1945
      %v1947 = vpop.f32.mrb[0].mxu0
      %1948 = vmatprep.mubr.f32.mxu0 0.0
      %1949 = vmatmul.mubr.f32.gmra.mrb[0].mxu0 %v1734
      %v1950 = vpop.f32.mrb[0].mxu0
      %v1951 = vadd.f32 0.0, %v1950
      %v1952 = vpop.f32.mrb[0].mxu0
      %1953 = vdwg.mxu0
      %v1954 = vadd.f32 %v1606, %v1803
      %v1955 = vadd.f32 %v1607, %v1805
      %v1956 = vadd.f32 %v1608, %v1916
      %v1957 = vadd.f32 %v1609, %v1809
      %v1958 = vadd.f32 %v1610, %v1811
      %v1959 = vadd.f32 %v1611, %v1921
      %v1960 = vadd.f32 %v1612, %v1815
      %v1961 = vadd.f32 %v1613, %v1817
      %v1962 = vadd.f32 %v1614, %v1926
      %v1963 = vadd.f32 %v1615, %v1821
      %v1964 = vadd.f32 %v1616, %v1823
      %v1965 = vadd.f32 %v1617, %v1931
      %v1966 = vadd.f32 %v1618, %v1827
      %v1967 = vadd.f32 %v1619, %v1829
      %v1968 = vadd.f32 %v1620, %v1936
      %v1969 = vadd.f32 %v1621, %v1833
      %v1970 = vadd.f32 %v1622, %v1835
      %v1971 = vadd.f32 %v1623, %v1941
      %v1972 = vadd.f32 %v1624, %v1839
      %v1973 = vadd.f32 %v1625, %v1841
      %v1974 = vadd.f32 %v1626, %v1946
      %v1975 = vadd.f32 %v1627, %v1845
      %v1976 = vadd.f32 %v1628, %v1847
      %v1977 = vadd.f32 %v1629, %v1951
      %s1978 = scalar_lea.vmem %s4, 192
      %v1979 = vld [vmem:[%s1978] sm:$0xff]
      %v1980 = vld [vmem:[%s1978 + $0x8] sm:$0xff]
      %v1981 = vld [vmem:[%s1978 + $0x10] sm:$0xff]
      %v1982 = vld [vmem:[%s1978 + $0x18] sm:$0xff]
      %v1983 = vld [vmem:[%s1978 + $0x20] sm:$0xff]
      %v1984 = vld [vmem:[%s1978 + $0x28] sm:$0xff]
      %v1985 = vld [vmem:[%s1978 + $0x30] sm:$0xff]
      %v1986 = vld [vmem:[%s1978 + $0x38] sm:$0xff]
      %1987 = vrot.lane.b32.xlu0 %v657, 1
      %v1988 = vpop.permute.xlu0 %1987
      %1989 = vrot.lane.b32.xlu0 %v660, 1
      %v1990 = vpop.permute.xlu0 %1989
      %1991 = vrot.lane.b32.xlu0 %v663, 1
      %v1992 = vpop.permute.xlu0 %1991
      %1993 = vrot.lane.b32.xlu0 %v666, 1
      %v1994 = vpop.permute.xlu0 %1993
      %1995 = vrot.lane.b32.xlu0 %v669, 1
      %v1996 = vpop.permute.xlu0 %1995
      %1997 = vrot.lane.b32.xlu0 %v672, 1
      %v1998 = vpop.permute.xlu0 %1997
      %1999 = vrot.lane.b32.xlu0 %v675, 1
      %v2000 = vpop.permute.xlu0 %1999
      %2001 = vrot.lane.b32.xlu0 %v678, 1
      %v2002 = vpop.permute.xlu0 %2001
      %2003 = vrot.lane.b32.xlu0 %v658, 1
      %v2004 = vpop.permute.xlu0 %2003
      %2005 = vrot.lane.b32.xlu0 %v661, 1
      %v2006 = vpop.permute.xlu0 %2005
      %2007 = vrot.lane.b32.xlu0 %v664, 1
      %v2008 = vpop.permute.xlu0 %2007
      %2009 = vrot.lane.b32.xlu0 %v667, 1
      %v2010 = vpop.permute.xlu0 %2009
      %2011 = vrot.lane.b32.xlu0 %v670, 1
      %v2012 = vpop.permute.xlu0 %2011
      %2013 = vrot.lane.b32.xlu0 %v673, 1
      %v2014 = vpop.permute.xlu0 %2013
      %2015 = vrot.lane.b32.xlu0 %v676, 1
      %v2016 = vpop.permute.xlu0 %2015
      %2017 = vrot.lane.b32.xlu0 %v679, 1
      %v2018 = vpop.permute.xlu0 %2017
      %2019 = vrot.lane.b32.xlu0 %v659, 1
      %v2020 = vpop.permute.xlu0 %2019
      %2021 = vrot.lane.b32.xlu0 %v662, 1
      %v2022 = vpop.permute.xlu0 %2021
      %2023 = vrot.lane.b32.xlu0 %v665, 1
      %v2024 = vpop.permute.xlu0 %2023
      %2025 = vrot.lane.b32.xlu0 %v668, 1
      %v2026 = vpop.permute.xlu0 %2025
      %2027 = vrot.lane.b32.xlu0 %v671, 1
      %v2028 = vpop.permute.xlu0 %2027
      %2029 = vrot.lane.b32.xlu0 %v674, 1
      %v2030 = vpop.permute.xlu0 %2029
      %2031 = vrot.lane.b32.xlu0 %v677, 1
      %v2032 = vpop.permute.xlu0 %2031
      %2033 = vrot.lane.b32.xlu0 %v680, 1
      %v2034 = vpop.permute.xlu0 %2033
      %vm2035 = vcmp.lt.s32.totalorder %v771, 1
      %v2036 = vsel %vm2035, %v2004, %v2020
      %v2037 = vsel %vm2035, %v2006, %v2022
      %v2038 = vsel %vm2035, %v2008, %v2024
      %v2039 = vsel %vm2035, %v2010, %v2026
      %v2040 = vsel %vm2035, %v2012, %v2028
      %v2041 = vsel %vm2035, %v2014, %v2030
      %v2042 = vsel %vm2035, %v2016, %v2032
      %v2043 = vsel %vm2035, %v2018, %v2034
      %v2044 = vsel %vm2035, %v1988, %v2004
      %v2045 = vsel %vm2035, %v1990, %v2006
      %v2046 = vsel %vm2035, %v1992, %v2008
      %v2047 = vsel %vm2035, %v1994, %v2010
      %v2048 = vsel %vm2035, %v1996, %v2012
      %v2049 = vsel %vm2035, %v1998, %v2014
      %v2050 = vsel %vm2035, %v2000, %v2016
      %v2051 = vsel %vm2035, %v2002, %v2018
      %v2052 = vsel %vm2035, %v2020, %v1988
      %v2053 = vsel %vm2035, %v2022, %v1990
      %v2054 = vsel %vm2035, %v2024, %v1992
      %v2055 = vsel %vm2035, %v2026, %v1994
      %v2056 = vsel %vm2035, %v2028, %v1996
      %v2057 = vsel %vm2035, %v2030, %v1998
      %v2058 = vsel %vm2035, %v2032, %v2000
      %v2059 = vsel %vm2035, %v2034, %v2002
      %v2061 = vsel %vm797, %v1979, 0
      %v2064 = vsel %vm797, %v1980, 0
      %v2067 = vsel %vm797, %v1981, 0
      %v2070 = vsel %vm797, %v1982, 0
      %v2073 = vsel %vm797, %v1983, 0
      %v2076 = vsel %vm797, %v1984, 0
      %v2079 = vsel %vm797, %v1985, 0
      %v2082 = vsel %vm797, %v1986, 0
      %2084 = vmatprep.subr.mxu0 %v2044
      %2085 = vmatpush1.msra.mxu0 %v2052
      %2086 = vmatprep.subr.mxu0 %v2045
      %2087 = vmatpush1.msra.mxu0 %v2053
      %2088 = vmatprep.subr.mxu0 %v2046
      %2089 = vmatpush1.msra.mxu0 %v2054
      %2090 = vmatprep.subr.mxu0 %v2047
      %2091 = vmatpush1.msra.mxu0 %v2055
      %2092 = vmatprep.subr.mxu0 %v2048
      %2093 = vmatpush1.msra.mxu0 %v2056
      %2094 = vmatprep.subr.mxu0 %v2049
      %2095 = vmatpush1.msra.mxu0 %v2057
      %2096 = vmatprep.subr.mxu0 %v2050
      %2097 = vmatpush1.msra.mxu0 %v2058
      %2098 = vmatprep.subr.mxu0 %v2051
      %2099 = vmatpush1.msra.mxu0 %v2059
      %2100 = vmatprep.subr.mxu0 0.0
      %2101 = vmatpush1.msra.mxu0 0.0
      %2102 = vmatprep.subr.mxu0 0.0
      %2103 = vmatpush1.msra.mxu0 0.0
      %2104 = vmatprep.subr.mxu0 0.0
      %2105 = vmatpush1.msra.mxu0 0.0
      %2106 = vmatprep.subr.mxu0 0.0
      %2107 = vmatpush1.msra.mxu0 0.0
      %2108 = vmatprep.subr.mxu0 0.0
      %2109 = vmatpush1.msra.mxu0 0.0
      %2110 = vmatprep.subr.mxu0 0.0
      %2111 = vmatpush1.msra.mxu0 0.0
      %2112 = vmatprep.subr.mxu0 0.0
      %2113 = vmatpush1.msra.mxu0 0.0
      %2114 = vmatprep.subr.mxu0 0.0
      %2115 = vmatpush1.msra.mxu0 0.0
      %2116 = vmatprep.subr.mxu0 0.0
      %2117 = vmatpush1.msra.mxu0 0.0
      %2118 = vmatprep.subr.mxu0 0.0
      %2119 = vmatpush1.msra.mxu0 0.0
      %2120 = vmatprep.subr.mxu0 0.0
      %2121 = vmatpush1.msra.mxu0 0.0
      %2122 = vmatprep.subr.mxu0 0.0
      %2123 = vmatpush1.msra.mxu0 0.0
      %2124 = vmatprep.subr.mxu0 0.0
      %2125 = vmatpush1.msra.mxu0 0.0
      %2126 = vmatprep.subr.mxu0 0.0
      %2127 = vmatpush1.msra.mxu0 0.0
      %2128 = vmatprep.subr.mxu0 0.0
      %2129 = vmatpush1.msra.mxu0 0.0
      %2130 = vmatprep.subr.mxu0 0.0
      %2131 = vmatpush1.msra.mxu0 0.0
      %2132 = vmatprep.subr.mxu0 0.0
      %2133 = vmatpush1.msra.mxu0 0.0
      %2134 = vmatprep.subr.mxu0 0.0
      %2135 = vmatpush1.msra.mxu0 0.0
      %2136 = vmatprep.subr.mxu0 0.0
      %2137 = vmatpush1.msra.mxu0 0.0
      %2138 = vmatprep.subr.mxu0 0.0
      %2139 = vmatpush1.msra.mxu0 0.0
      %2140 = vmatprep.subr.mxu0 0.0
      %2141 = vmatpush1.msra.mxu0 0.0
      %2142 = vmatprep.subr.mxu0 0.0
      %2143 = vmatpush1.msra.mxu0 0.0
      %2144 = vmatprep.subr.mxu0 0.0
      %2145 = vmatpush1.msra.mxu0 0.0
      %2146 = vmatprep.subr.mxu0 0.0
      %2147 = vmatpush1.msra.mxu0 0.0
      %2148 = vmatprep.mubr.f32.mxu0 0.0
      %2149 = vmatmul.mubr.f32.gmra.mrb[0].mxu0 %v2061
      %v2150 = vpop.f32.mrb[0].mxu0
      %v2151 = vadd.f32 0.0, %v2150
      %v2152 = vpop.f32.mrb[0].mxu0
      %v2153 = vadd.f32 0.0, %v2152
      %2154 = vmatprep.mubr.f32.mxu0 0.0
      %2155 = vmatmul.mubr.f32.gmra.mrb[0].mxu0 %v2064
      %v2156 = vpop.f32.mrb[0].mxu0
      %v2157 = vadd.f32 0.0, %v2156
      %v2158 = vpop.f32.mrb[0].mxu0
      %v2159 = vadd.f32 0.0, %v2158
      %2160 = vmatprep.mubr.f32.mxu0 0.0
      %2161 = vmatmul.mubr.f32.gmra.mrb[0].mxu0 %v2067
      %v2162 = vpop.f32.mrb[0].mxu0
      %v2163 = vadd.f32 0.0, %v2162
      %v2164 = vpop.f32.mrb[0].mxu0
      %v2165 = vadd.f32 0.0, %v2164
      %2166 = vmatprep.mubr.f32.mxu0 0.0
      %2167 = vmatmul.mubr.f32.gmra.mrb[0].mxu0 %v2070
      %v2168 = vpop.f32.mrb[0].mxu0
      %v2169 = vadd.f32 0.0, %v2168
      %v2170 = vpop.f32.mrb[0].mxu0
      %v2171 = vadd.f32 0.0, %v2170
      %2172 = vmatprep.mubr.f32.mxu0 0.0
      %2173 = vmatmul.mubr.f32.gmra.mrb[0].mxu0 %v2073
      %v2174 = vpop.f32.mrb[0].mxu0
      %v2175 = vadd.f32 0.0, %v2174
      %v2176 = vpop.f32.mrb[0].mxu0
      %v2177 = vadd.f32 0.0, %v2176
      %2178 = vmatprep.mubr.f32.mxu0 0.0
      %2179 = vmatmul.mubr.f32.gmra.mrb[0].mxu0 %v2076
      %v2180 = vpop.f32.mrb[0].mxu0
      %v2181 = vadd.f32 0.0, %v2180
      %v2182 = vpop.f32.mrb[0].mxu0
      %v2183 = vadd.f32 0.0, %v2182
      %2184 = vmatprep.mubr.f32.mxu0 0.0
      %2185 = vmatmul.mubr.f32.gmra.mrb[0].mxu0 %v2079
      %v2186 = vpop.f32.mrb[0].mxu0
      %v2187 = vadd.f32 0.0, %v2186
      %v2188 = vpop.f32.mrb[0].mxu0
      %v2189 = vadd.f32 0.0, %v2188
      %2190 = vmatprep.mubr.f32.mxu0 0.0
      %2191 = vmatmul.mubr.f32.gmra.mrb[0].mxu0 %v2082
      %v2192 = vpop.f32.mrb[0].mxu0
      %v2193 = vadd.f32 0.0, %v2192
      %v2194 = vpop.f32.mrb[0].mxu0
      %v2195 = vadd.f32 0.0, %v2194
      %2196 = vdwg.mxu0
      %2197 = vmatprep.subr.mxu0 0.0
      %2198 = vmatpush1.msra.mxu0 %v2036
      %2199 = vmatprep.subr.mxu0 0.0
      %2200 = vmatpush1.msra.mxu0 %v2037
      %2201 = vmatprep.subr.mxu0 0.0
      %2202 = vmatpush1.msra.mxu0 %v2038
      %2203 = vmatprep.subr.mxu0 0.0
      %2204 = vmatpush1.msra.mxu0 %v2039
      %2205 = vmatprep.subr.mxu0 0.0
      %2206 = vmatpush1.msra.mxu0 %v2040
      %2207 = vmatprep.subr.mxu0 0.0
      %2208 = vmatpush1.msra.mxu0 %v2041
      %2209 = vmatprep.subr.mxu0 0.0
      %2210 = vmatpush1.msra.mxu0 %v2042
      %2211 = vmatprep.subr.mxu0 0.0
      %2212 = vmatpush1.msra.mxu0 %v2043
      %2213 = vmatprep.subr.mxu0 0.0
      %2214 = vmatpush1.msra.mxu0 0.0
      %2215 = vmatprep.subr.mxu0 0.0
      %2216 = vmatpush1.msra.mxu0 0.0
      %2217 = vmatprep.subr.mxu0 0.0
      %2218 = vmatpush1.msra.mxu0 0.0
      %2219 = vmatprep.subr.mxu0 0.0
      %2220 = vmatpush1.msra.mxu0 0.0
      %2221 = vmatprep.subr.mxu0 0.0
      %2222 = vmatpush1.msra.mxu0 0.0
      %2223 = vmatprep.subr.mxu0 0.0
      %2224 = vmatpush1.msra.mxu0 0.0
      %2225 = vmatprep.subr.mxu0 0.0
      %2226 = vmatpush1.msra.mxu0 0.0
      %2227 = vmatprep.subr.mxu0 0.0
      %2228 = vmatpush1.msra.mxu0 0.0
      %2229 = vmatprep.subr.mxu0 0.0
      %2230 = vmatpush1.msra.mxu0 0.0
      %2231 = vmatprep.subr.mxu0 0.0
      %2232 = vmatpush1.msra.mxu0 0.0
      %2233 = vmatprep.subr.mxu0 0.0
      %2234 = vmatpush1.msra.mxu0 0.0
      %2235 = vmatprep.subr.mxu0 0.0
      %2236 = vmatpush1.msra.mxu0 0.0
      %2237 = vmatprep.subr.mxu0 0.0
      %2238 = vmatpush1.msra.mxu0 0.0
      %2239 = vmatprep.subr.mxu0 0.0
      %2240 = vmatpush1.msra.mxu0 0.0
      %2241 = vmatprep.subr.mxu0 0.0
      %2242 = vmatpush1.msra.mxu0 0.0
      %2243 = vmatprep.subr.mxu0 0.0
      %2244 = vmatpush1.msra.mxu0 0.0
      %2245 = vmatprep.subr.mxu0 0.0
      %2246 = vmatpush1.msra.mxu0 0.0
      %2247 = vmatprep.subr.mxu0 0.0
      %2248 = vmatpush1.msra.mxu0 0.0
      %2249 = vmatprep.subr.mxu0 0.0
      %2250 = vmatpush1.msra.mxu0 0.0
      %2251 = vmatprep.subr.mxu0 0.0
      %2252 = vmatpush1.msra.mxu0 0.0
      %2253 = vmatprep.subr.mxu0 0.0
      %2254 = vmatpush1.msra.mxu0 0.0
      %2255 = vmatprep.subr.mxu0 0.0
      %2256 = vmatpush1.msra.mxu0 0.0
      %2257 = vmatprep.subr.mxu0 0.0
      %2258 = vmatpush1.msra.mxu0 0.0
      %2259 = vmatprep.subr.mxu0 0.0
      %2260 = vmatpush1.msra.mxu0 0.0
      %2261 = vmatprep.mubr.f32.mxu0 0.0
      %2262 = vmatmul.mubr.f32.gmra.mrb[0].mxu0 %v2061
      %v2263 = vpop.f32.mrb[0].mxu0
      %v2264 = vadd.f32 0.0, %v2263
      %v2265 = vpop.f32.mrb[0].mxu0
      %2266 = vmatprep.mubr.f32.mxu0 0.0
      %2267 = vmatmul.mubr.f32.gmra.mrb[0].mxu0 %v2064
      %v2268 = vpop.f32.mrb[0].mxu0
      %v2269 = vadd.f32 0.0, %v2268
      %v2270 = vpop.f32.mrb[0].mxu0
      %2271 = vmatprep.mubr.f32.mxu0 0.0
      %2272 = vmatmul.mubr.f32.gmra.mrb[0].mxu0 %v2067
      %v2273 = vpop.f32.mrb[0].mxu0
      %v2274 = vadd.f32 0.0, %v2273
      %v2275 = vpop.f32.mrb[0].mxu0
      %2276 = vmatprep.mubr.f32.mxu0 0.0
      %2277 = vmatmul.mubr.f32.gmra.mrb[0].mxu0 %v2070
      %v2278 = vpop.f32.mrb[0].mxu0
      %v2279 = vadd.f32 0.0, %v2278
      %v2280 = vpop.f32.mrb[0].mxu0
      %2281 = vmatprep.mubr.f32.mxu0 0.0
      %2282 = vmatmul.mubr.f32.gmra.mrb[0].mxu0 %v2073
      %v2283 = vpop.f32.mrb[0].mxu0
      %v2284 = vadd.f32 0.0, %v2283
      %v2285 = vpop.f32.mrb[0].mxu0
      %2286 = vmatprep.mubr.f32.mxu0 0.0
      %2287 = vmatmul.mubr.f32.gmra.mrb[0].mxu0 %v2076
      %v2288 = vpop.f32.mrb[0].mxu0
      %v2289 = vadd.f32 0.0, %v2288
      %v2290 = vpop.f32.mrb[0].mxu0
      %2291 = vmatprep.mubr.f32.mxu0 0.0
      %2292 = vmatmul.mubr.f32.gmra.mrb[0].mxu0 %v2079
      %v2293 = vpop.f32.mrb[0].mxu0
      %v2294 = vadd.f32 0.0, %v2293
      %v2295 = vpop.f32.mrb[0].mxu0
      %2296 = vmatprep.mubr.f32.mxu0 0.0
      %2297 = vmatmul.mubr.f32.gmra.mrb[0].mxu0 %v2082
      %v2298 = vpop.f32.mrb[0].mxu0
      %v2299 = vadd.f32 0.0, %v2298
      %v2300 = vpop.f32.mrb[0].mxu0
      %2301 = vdwg.mxu0
      %v2302 = vadd.f32 %v1954, %v2151
      %v2303 = vadd.f32 %v1955, %v2153
      %v2304 = vadd.f32 %v1956, %v2264
      %v2305 = vadd.f32 %v1957, %v2157
      %v2306 = vadd.f32 %v1958, %v2159
      %v2307 = vadd.f32 %v1959, %v2269
      %v2308 = vadd.f32 %v1960, %v2163
      %v2309 = vadd.f32 %v1961, %v2165
      %v2310 = vadd.f32 %v1962, %v2274
      %v2311 = vadd.f32 %v1963, %v2169
      %v2312 = vadd.f32 %v1964, %v2171
      %v2313 = vadd.f32 %v1965, %v2279
      %v2314 = vadd.f32 %v1966, %v2175
      %v2315 = vadd.f32 %v1967, %v2177
      %v2316 = vadd.f32 %v1968, %v2284
      %v2317 = vadd.f32 %v1969, %v2181
      %v2318 = vadd.f32 %v1970, %v2183
      %v2319 = vadd.f32 %v1971, %v2289
      %v2320 = vadd.f32 %v1972, %v2187
      %v2321 = vadd.f32 %v1973, %v2189
      %v2322 = vadd.f32 %v1974, %v2294
      %v2323 = vadd.f32 %v1975, %v2193
      %v2324 = vadd.f32 %v1976, %v2195
      %v2325 = vadd.f32 %v1977, %v2299
      %s2326 = scalar_lea.vmem %s4, 320
      %v2327 = vld [vmem:[%s2326] sm:$0xff]
      %v2328 = vld [vmem:[%s2326 + $0x8] sm:$0xff]
      %v2329 = vld [vmem:[%s2326 + $0x10] sm:$0xff]
      %v2330 = vld [vmem:[%s2326 + $0x18] sm:$0xff]
      %v2331 = vld [vmem:[%s2326 + $0x20] sm:$0xff]
      %v2332 = vld [vmem:[%s2326 + $0x28] sm:$0xff]
      %v2333 = vld [vmem:[%s2326 + $0x30] sm:$0xff]
      %v2334 = vld [vmem:[%s2326 + $0x38] sm:$0xff]
      %2335 = vrot.lane.b32.xlu0 %v657, 127
      %v2336 = vpop.permute.xlu0 %2335
      %2337 = vrot.lane.b32.xlu0 %v660, 127
      %v2338 = vpop.permute.xlu0 %2337
      %2339 = vrot.lane.b32.xlu0 %v663, 127
      %v2340 = vpop.permute.xlu0 %2339
      %2341 = vrot.lane.b32.xlu0 %v666, 127
      %v2342 = vpop.permute.xlu0 %2341
      %2343 = vrot.lane.b32.xlu0 %v669, 127
      %v2344 = vpop.permute.xlu0 %2343
      %2345 = vrot.lane.b32.xlu0 %v672, 127
      %v2346 = vpop.permute.xlu0 %2345
      %2347 = vrot.lane.b32.xlu0 %v675, 127
      %v2348 = vpop.permute.xlu0 %2347
      %2349 = vrot.lane.b32.xlu0 %v678, 127
      %v2350 = vpop.permute.xlu0 %2349
      %2351 = vrot.lane.b32.xlu0 %v658, 127
      %v2352 = vpop.permute.xlu0 %2351
      %2353 = vrot.lane.b32.xlu0 %v661, 127
      %v2354 = vpop.permute.xlu0 %2353
      %2355 = vrot.lane.b32.xlu0 %v664, 127
      %v2356 = vpop.permute.xlu0 %2355
      %2357 = vrot.lane.b32.xlu0 %v667, 127
      %v2358 = vpop.permute.xlu0 %2357
      %2359 = vrot.lane.b32.xlu0 %v670, 127
      %v2360 = vpop.permute.xlu0 %2359
      %2361 = vrot.lane.b32.xlu0 %v673, 127
      %v2362 = vpop.permute.xlu0 %2361
      %2363 = vrot.lane.b32.xlu0 %v676, 127
      %v2364 = vpop.permute.xlu0 %2363
      %2365 = vrot.lane.b32.xlu0 %v679, 127
      %v2366 = vpop.permute.xlu0 %2365
      %2367 = vrot.lane.b32.xlu0 %v659, 127
      %v2368 = vpop.permute.xlu0 %2367
      %2369 = vrot.lane.b32.xlu0 %v662, 127
      %v2370 = vpop.permute.xlu0 %2369
      %2371 = vrot.lane.b32.xlu0 %v665, 127
      %v2372 = vpop.permute.xlu0 %2371
      %2373 = vrot.lane.b32.xlu0 %v668, 127
      %v2374 = vpop.permute.xlu0 %2373
      %2375 = vrot.lane.b32.xlu0 %v671, 127
      %v2376 = vpop.permute.xlu0 %2375
      %2377 = vrot.lane.b32.xlu0 %v674, 127
      %v2378 = vpop.permute.xlu0 %2377
      %2379 = vrot.lane.b32.xlu0 %v677, 127
      %v2380 = vpop.permute.xlu0 %2379
      %2381 = vrot.lane.b32.xlu0 %v680, 127
      %v2382 = vpop.permute.xlu0 %2381
      %vm2383 = vcmp.lt.s32.totalorder %v771, 127
      %v2384 = vsel %vm2383, %v2352, %v2368
      %v2385 = vsel %vm2383, %v2354, %v2370
      %v2386 = vsel %vm2383, %v2356, %v2372
      %v2387 = vsel %vm2383, %v2358, %v2374
      %v2388 = vsel %vm2383, %v2360, %v2376
      %v2389 = vsel %vm2383, %v2362, %v2378
      %v2390 = vsel %vm2383, %v2364, %v2380
      %v2391 = vsel %vm2383, %v2366, %v2382
      %v2392 = vsel %vm2383, %v2336, %v2352
      %v2393 = vsel %vm2383, %v2338, %v2354
      %v2394 = vsel %vm2383, %v2340, %v2356
      %v2395 = vsel %vm2383, %v2342, %v2358
      %v2396 = vsel %vm2383, %v2344, %v2360
      %v2397 = vsel %vm2383, %v2346, %v2362
      %v2398 = vsel %vm2383, %v2348, %v2364
      %v2399 = vsel %vm2383, %v2350, %v2366
      %v2400 = vsel %vm2383, %v2368, %v2336
      %v2401 = vsel %vm2383, %v2370, %v2338
      %v2402 = vsel %vm2383, %v2372, %v2340
      %v2403 = vsel %vm2383, %v2374, %v2342
      %v2404 = vsel %vm2383, %v2376, %v2344
      %v2405 = vsel %vm2383, %v2378, %v2346
      %v2406 = vsel %vm2383, %v2380, %v2348
      %v2407 = vsel %vm2383, %v2382, %v2350
      %v2409 = vsel %vm797, %v2327, 0
      %v2412 = vsel %vm797, %v2328, 0
      %v2415 = vsel %vm797, %v2329, 0
      %v2418 = vsel %vm797, %v2330, 0
      %v2421 = vsel %vm797, %v2331, 0
      %v2424 = vsel %vm797, %v2332, 0
      %v2427 = vsel %vm797, %v2333, 0
      %v2430 = vsel %vm797, %v2334, 0
      %2432 = vmatprep.subr.mxu0 %v2384
      %2433 = vmatpush1.msra.mxu0 %v2392
      %2434 = vmatprep.subr.mxu0 %v2385
      %2435 = vmatpush1.msra.mxu0 %v2393
      %2436 = vmatprep.subr.mxu0 %v2386
      %2437 = vmatpush1.msra.mxu0 %v2394
      %2438 = vmatprep.subr.mxu0 %v2387
      %2439 = vmatpush1.msra.mxu0 %v2395
      %2440 = vmatprep.subr.mxu0 %v2388
      %2441 = vmatpush1.msra.mxu0 %v2396
      %2442 = vmatprep.subr.mxu0 %v2389
      %2443 = vmatpush1.msra.mxu0 %v2397
      %2444 = vmatprep.subr.mxu0 %v2390
      %2445 = vmatpush1.msra.mxu0 %v2398
      %2446 = vmatprep.subr.mxu0 %v2391
      %2447 = vmatpush1.msra.mxu0 %v2399
      %2448 = vmatprep.subr.mxu0 0.0
      %2449 = vmatpush1.msra.mxu0 0.0
      %2450 = vmatprep.subr.mxu0 0.0
      %2451 = vmatpush1.msra.mxu0 0.0
      %2452 = vmatprep.subr.mxu0 0.0
      %2453 = vmatpush1.msra.mxu0 0.0
      %2454 = vmatprep.subr.mxu0 0.0
      %2455 = vmatpush1.msra.mxu0 0.0
      %2456 = vmatprep.subr.mxu0 0.0
      %2457 = vmatpush1.msra.mxu0 0.0
      %2458 = vmatprep.subr.mxu0 0.0
      %2459 = vmatpush1.msra.mxu0 0.0
      %2460 = vmatprep.subr.mxu0 0.0
      %2461 = vmatpush1.msra.mxu0 0.0
      %2462 = vmatprep.subr.mxu0 0.0
      %2463 = vmatpush1.msra.mxu0 0.0
      %2464 = vmatprep.subr.mxu0 0.0
      %2465 = vmatpush1.msra.mxu0 0.0
      %2466 = vmatprep.subr.mxu0 0.0
      %2467 = vmatpush1.msra.mxu0 0.0
      %2468 = vmatprep.subr.mxu0 0.0
      %2469 = vmatpush1.msra.mxu0 0.0
      %2470 = vmatprep.subr.mxu0 0.0
      %2471 = vmatpush1.msra.mxu0 0.0
      %2472 = vmatprep.subr.mxu0 0.0
      %2473 = vmatpush1.msra.mxu0 0.0
      %2474 = vmatprep.subr.mxu0 0.0
      %2475 = vmatpush1.msra.mxu0 0.0
      %2476 = vmatprep.subr.mxu0 0.0
      %2477 = vmatpush1.msra.mxu0 0.0
      %2478 = vmatprep.subr.mxu0 0.0
      %2479 = vmatpush1.msra.mxu0 0.0
      %2480 = vmatprep.subr.mxu0 0.0
      %2481 = vmatpush1.msra.mxu0 0.0
      %2482 = vmatprep.subr.mxu0 0.0
      %2483 = vmatpush1.msra.mxu0 0.0
      %2484 = vmatprep.subr.mxu0 0.0
      %2485 = vmatpush1.msra.mxu0 0.0
      %2486 = vmatprep.subr.mxu0 0.0
      %2487 = vmatpush1.msra.mxu0 0.0
      %2488 = vmatprep.subr.mxu0 0.0
      %2489 = vmatpush1.msra.mxu0 0.0
      %2490 = vmatprep.subr.mxu0 0.0
      %2491 = vmatpush1.msra.mxu0 0.0
      %2492 = vmatprep.subr.mxu0 0.0
      %2493 = vmatpush1.msra.mxu0 0.0
      %2494 = vmatprep.subr.mxu0 0.0
      %2495 = vmatpush1.msra.mxu0 0.0
      %2496 = vmatprep.mubr.f32.mxu0 0.0
      %2497 = vmatmul.mubr.f32.gmra.mrb[0].mxu0 %v2409
      %v2498 = vpop.f32.mrb[0].mxu0
      %v2499 = vadd.f32 0.0, %v2498
      %v2500 = vpop.f32.mrb[0].mxu0
      %v2501 = vadd.f32 0.0, %v2500
      %2502 = vmatprep.mubr.f32.mxu0 0.0
      %2503 = vmatmul.mubr.f32.gmra.mrb[0].mxu0 %v2412
      %v2504 = vpop.f32.mrb[0].mxu0
      %v2505 = vadd.f32 0.0, %v2504
      %v2506 = vpop.f32.mrb[0].mxu0
      %v2507 = vadd.f32 0.0, %v2506
      %2508 = vmatprep.mubr.f32.mxu0 0.0
      %2509 = vmatmul.mubr.f32.gmra.mrb[0].mxu0 %v2415
      %v2510 = vpop.f32.mrb[0].mxu0
      %v2511 = vadd.f32 0.0, %v2510
      %v2512 = vpop.f32.mrb[0].mxu0
      %v2513 = vadd.f32 0.0, %v2512
      %2514 = vmatprep.mubr.f32.mxu0 0.0
      %2515 = vmatmul.mubr.f32.gmra.mrb[0].mxu0 %v2418
      %v2516 = vpop.f32.mrb[0].mxu0
      %v2517 = vadd.f32 0.0, %v2516
      %v2518 = vpop.f32.mrb[0].mxu0
      %v2519 = vadd.f32 0.0, %v2518
      %2520 = vmatprep.mubr.f32.mxu0 0.0
      %2521 = vmatmul.mubr.f32.gmra.mrb[0].mxu0 %v2421
      %v2522 = vpop.f32.mrb[0].mxu0
      %v2523 = vadd.f32 0.0, %v2522
      %v2524 = vpop.f32.mrb[0].mxu0
      %v2525 = vadd.f32 0.0, %v2524
      %2526 = vmatprep.mubr.f32.mxu0 0.0
      %2527 = vmatmul.mubr.f32.gmra.mrb[0].mxu0 %v2424
      %v2528 = vpop.f32.mrb[0].mxu0
      %v2529 = vadd.f32 0.0, %v2528
      %v2530 = vpop.f32.mrb[0].mxu0
      %v2531 = vadd.f32 0.0, %v2530
      %2532 = vmatprep.mubr.f32.mxu0 0.0
      %2533 = vmatmul.mubr.f32.gmra.mrb[0].mxu0 %v2427
      %v2534 = vpop.f32.mrb[0].mxu0
      %v2535 = vadd.f32 0.0, %v2534
      %v2536 = vpop.f32.mrb[0].mxu0
      %v2537 = vadd.f32 0.0, %v2536
      %2538 = vmatprep.mubr.f32.mxu0 0.0
      %2539 = vmatmul.mubr.f32.gmra.mrb[0].mxu0 %v2430
      %v2540 = vpop.f32.mrb[0].mxu0
      %v2541 = vadd.f32 0.0, %v2540
      %v2542 = vpop.f32.mrb[0].mxu0
      %v2543 = vadd.f32 0.0, %v2542
      %2544 = vdwg.mxu0
      %2545 = vmatprep.subr.mxu0 0.0
      %2546 = vmatpush1.msra.mxu0 %v2400
      %2547 = vmatprep.subr.mxu0 0.0
      %2548 = vmatpush1.msra.mxu0 %v2401
      %2549 = vmatprep.subr.mxu0 0.0
      %2550 = vmatpush1.msra.mxu0 %v2402
      %2551 = vmatprep.subr.mxu0 0.0
      %2552 = vmatpush1.msra.mxu0 %v2403
      %2553 = vmatprep.subr.mxu0 0.0
      %2554 = vmatpush1.msra.mxu0 %v2404
      %2555 = vmatprep.subr.mxu0 0.0
      %2556 = vmatpush1.msra.mxu0 %v2405
      %2557 = vmatprep.subr.mxu0 0.0
      %2558 = vmatpush1.msra.mxu0 %v2406
      %2559 = vmatprep.subr.mxu0 0.0
      %2560 = vmatpush1.msra.mxu0 %v2407
      %2561 = vmatprep.subr.mxu0 0.0
      %2562 = vmatpush1.msra.mxu0 0.0
      %2563 = vmatprep.subr.mxu0 0.0
      %2564 = vmatpush1.msra.mxu0 0.0
      %2565 = vmatprep.subr.mxu0 0.0
      %2566 = vmatpush1.msra.mxu0 0.0
      %2567 = vmatprep.subr.mxu0 0.0
      %2568 = vmatpush1.msra.mxu0 0.0
      %2569 = vmatprep.subr.mxu0 0.0
      %2570 = vmatpush1.msra.mxu0 0.0
      %2571 = vmatprep.subr.mxu0 0.0
      %2572 = vmatpush1.msra.mxu0 0.0
      %2573 = vmatprep.subr.mxu0 0.0
      %2574 = vmatpush1.msra.mxu0 0.0
      %2575 = vmatprep.subr.mxu0 0.0
      %2576 = vmatpush1.msra.mxu0 0.0
      %2577 = vmatprep.subr.mxu0 0.0
      %2578 = vmatpush1.msra.mxu0 0.0
      %2579 = vmatprep.subr.mxu0 0.0
      %2580 = vmatpush1.msra.mxu0 0.0
      %2581 = vmatprep.subr.mxu0 0.0
      %2582 = vmatpush1.msra.mxu0 0.0
      %2583 = vmatprep.subr.mxu0 0.0
      %2584 = vmatpush1.msra.mxu0 0.0
      %2585 = vmatprep.subr.mxu0 0.0
      %2586 = vmatpush1.msra.mxu0 0.0
      %2587 = vmatprep.subr.mxu0 0.0
      %2588 = vmatpush1.msra.mxu0 0.0
      %2589 = vmatprep.subr.mxu0 0.0
      %2590 = vmatpush1.msra.mxu0 0.0
      %2591 = vmatprep.subr.mxu0 0.0
      %2592 = vmatpush1.msra.mxu0 0.0
      %2593 = vmatprep.subr.mxu0 0.0
      %2594 = vmatpush1.msra.mxu0 0.0
      %2595 = vmatprep.subr.mxu0 0.0
      %2596 = vmatpush1.msra.mxu0 0.0
      %2597 = vmatprep.subr.mxu0 0.0
      %2598 = vmatpush1.msra.mxu0 0.0
      %2599 = vmatprep.subr.mxu0 0.0
      %2600 = vmatpush1.msra.mxu0 0.0
      %2601 = vmatprep.subr.mxu0 0.0
      %2602 = vmatpush1.msra.mxu0 0.0
      %2603 = vmatprep.subr.mxu0 0.0
      %2604 = vmatpush1.msra.mxu0 0.0
      %2605 = vmatprep.subr.mxu0 0.0
      %2606 = vmatpush1.msra.mxu0 0.0
      %2607 = vmatprep.subr.mxu0 0.0
      %2608 = vmatpush1.msra.mxu0 0.0
      %2609 = vmatprep.mubr.f32.mxu0 0.0
      %2610 = vmatmul.mubr.f32.gmra.mrb[0].mxu0 %v2409
      %v2611 = vpop.f32.mrb[0].mxu0
      %v2612 = vadd.f32 0.0, %v2611
      %v2613 = vpop.f32.mrb[0].mxu0
      %2614 = vmatprep.mubr.f32.mxu0 0.0
      %2615 = vmatmul.mubr.f32.gmra.mrb[0].mxu0 %v2412
      %v2616 = vpop.f32.mrb[0].mxu0
      %v2617 = vadd.f32 0.0, %v2616
      %v2618 = vpop.f32.mrb[0].mxu0
      %2619 = vmatprep.mubr.f32.mxu0 0.0
      %2620 = vmatmul.mubr.f32.gmra.mrb[0].mxu0 %v2415
      %v2621 = vpop.f32.mrb[0].mxu0
      %v2622 = vadd.f32 0.0, %v2621
      %v2623 = vpop.f32.mrb[0].mxu0
      %2624 = vmatprep.mubr.f32.mxu0 0.0
      %2625 = vmatmul.mubr.f32.gmra.mrb[0].mxu0 %v2418
      %v2626 = vpop.f32.mrb[0].mxu0
      %v2627 = vadd.f32 0.0, %v2626
      %v2628 = vpop.f32.mrb[0].mxu0
      %2629 = vmatprep.mubr.f32.mxu0 0.0
      %2630 = vmatmul.mubr.f32.gmra.mrb[0].mxu0 %v2421
      %v2631 = vpop.f32.mrb[0].mxu0
      %v2632 = vadd.f32 0.0, %v2631
      %v2633 = vpop.f32.mrb[0].mxu0
      %2634 = vmatprep.mubr.f32.mxu0 0.0
      %2635 = vmatmul.mubr.f32.gmra.mrb[0].mxu0 %v2424
      %v2636 = vpop.f32.mrb[0].mxu0
      %v2637 = vadd.f32 0.0, %v2636
      %v2638 = vpop.f32.mrb[0].mxu0
      %2639 = vmatprep.mubr.f32.mxu0 0.0
      %2640 = vmatmul.mubr.f32.gmra.mrb[0].mxu0 %v2427
      %v2641 = vpop.f32.mrb[0].mxu0
      %v2642 = vadd.f32 0.0, %v2641
      %v2643 = vpop.f32.mrb[0].mxu0
      %2644 = vmatprep.mubr.f32.mxu0 0.0
      %2645 = vmatmul.mubr.f32.gmra.mrb[0].mxu0 %v2430
      %v2646 = vpop.f32.mrb[0].mxu0
      %v2647 = vadd.f32 0.0, %v2646
      %v2648 = vpop.f32.mrb[0].mxu0
      %2649 = vdwg.mxu0
      %v2650 = vadd.f32 %v2302, %v2499
      %v2651 = vadd.f32 %v2303, %v2501
      %v2652 = vadd.f32 %v2304, %v2612
      %v2653 = vadd.f32 %v2305, %v2505
      %v2654 = vadd.f32 %v2306, %v2507
      %v2655 = vadd.f32 %v2307, %v2617
      %v2656 = vadd.f32 %v2308, %v2511
      %v2657 = vadd.f32 %v2309, %v2513
      %v2658 = vadd.f32 %v2310, %v2622
      %v2659 = vadd.f32 %v2311, %v2517
      %v2660 = vadd.f32 %v2312, %v2519
      %v2661 = vadd.f32 %v2313, %v2627
      %v2662 = vadd.f32 %v2314, %v2523
      %v2663 = vadd.f32 %v2315, %v2525
      %v2664 = vadd.f32 %v2316, %v2632
      %v2665 = vadd.f32 %v2317, %v2529
      %v2666 = vadd.f32 %v2318, %v2531
      %v2667 = vadd.f32 %v2319, %v2637
      %v2668 = vadd.f32 %v2320, %v2535
      %v2669 = vadd.f32 %v2321, %v2537
      %v2670 = vadd.f32 %v2322, %v2642
      %v2671 = vadd.f32 %v2323, %v2541
      %v2672 = vadd.f32 %v2324, %v2543
      %v2673 = vadd.f32 %v2325, %v2647
      %s2674 = scalar_lea.vmem %s4, 384
      %v2675 = vld [vmem:[%s2674] sm:$0xff]
      %v2676 = vld [vmem:[%s2674 + $0x8] sm:$0xff]
      %v2677 = vld [vmem:[%s2674 + $0x10] sm:$0xff]
      %v2678 = vld [vmem:[%s2674 + $0x18] sm:$0xff]
      %v2679 = vld [vmem:[%s2674 + $0x20] sm:$0xff]
      %v2680 = vld [vmem:[%s2674 + $0x28] sm:$0xff]
      %v2681 = vld [vmem:[%s2674 + $0x30] sm:$0xff]
      %v2682 = vld [vmem:[%s2674 + $0x38] sm:$0xff]
      %2683 = vrot.lane.b32.xlu0 %v657, 111
      %v2684 = vpop.permute.xlu0 %2683
      %2685 = vrot.lane.b32.xlu0 %v660, 111
      %v2686 = vpop.permute.xlu0 %2685
      %2687 = vrot.lane.b32.xlu0 %v663, 111
      %v2688 = vpop.permute.xlu0 %2687
      %2689 = vrot.lane.b32.xlu0 %v666, 111
      %v2690 = vpop.permute.xlu0 %2689
      %2691 = vrot.lane.b32.xlu0 %v669, 111
      %v2692 = vpop.permute.xlu0 %2691
      %2693 = vrot.lane.b32.xlu0 %v672, 111
      %v2694 = vpop.permute.xlu0 %2693
      %2695 = vrot.lane.b32.xlu0 %v675, 111
      %v2696 = vpop.permute.xlu0 %2695
      %2697 = vrot.lane.b32.xlu0 %v678, 111
      %v2698 = vpop.permute.xlu0 %2697
      %2699 = vrot.lane.b32.xlu0 %v658, 111
      %v2700 = vpop.permute.xlu0 %2699
      %2701 = vrot.lane.b32.xlu0 %v661, 111
      %v2702 = vpop.permute.xlu0 %2701
      %2703 = vrot.lane.b32.xlu0 %v664, 111
      %v2704 = vpop.permute.xlu0 %2703
      %2705 = vrot.lane.b32.xlu0 %v667, 111
      %v2706 = vpop.permute.xlu0 %2705
      %2707 = vrot.lane.b32.xlu0 %v670, 111
      %v2708 = vpop.permute.xlu0 %2707
      %2709 = vrot.lane.b32.xlu0 %v673, 111
      %v2710 = vpop.permute.xlu0 %2709
      %2711 = vrot.lane.b32.xlu0 %v676, 111
      %v2712 = vpop.permute.xlu0 %2711
      %2713 = vrot.lane.b32.xlu0 %v679, 111
      %v2714 = vpop.permute.xlu0 %2713
      %2715 = vrot.lane.b32.xlu0 %v659, 111
      %v2716 = vpop.permute.xlu0 %2715
      %2717 = vrot.lane.b32.xlu0 %v662, 111
      %v2718 = vpop.permute.xlu0 %2717
      %2719 = vrot.lane.b32.xlu0 %v665, 111
      %v2720 = vpop.permute.xlu0 %2719
      %2721 = vrot.lane.b32.xlu0 %v668, 111
      %v2722 = vpop.permute.xlu0 %2721
      %2723 = vrot.lane.b32.xlu0 %v671, 111
      %v2724 = vpop.permute.xlu0 %2723
      %2725 = vrot.lane.b32.xlu0 %v674, 111
      %v2726 = vpop.permute.xlu0 %2725
      %2727 = vrot.lane.b32.xlu0 %v677, 111
      %v2728 = vpop.permute.xlu0 %2727
      %2729 = vrot.lane.b32.xlu0 %v680, 111
      %v2730 = vpop.permute.xlu0 %2729
      %vm2731 = vcmp.lt.s32.totalorder %v771, 111
      %v2732 = vsel %vm2731, %v2700, %v2716
      %v2733 = vsel %vm2731, %v2702, %v2718
      %v2734 = vsel %vm2731, %v2704, %v2720
      %v2735 = vsel %vm2731, %v2706, %v2722
      %v2736 = vsel %vm2731, %v2708, %v2724
      %v2737 = vsel %vm2731, %v2710, %v2726
      %v2738 = vsel %vm2731, %v2712, %v2728
      %v2739 = vsel %vm2731, %v2714, %v2730
      %v2740 = vsel %vm2731, %v2684, %v2700
      %v2741 = vsel %vm2731, %v2686, %v2702
      %v2742 = vsel %vm2731, %v2688, %v2704
      %v2743 = vsel %vm2731, %v2690, %v2706
      %v2744 = vsel %vm2731, %v2692, %v2708
      %v2745 = vsel %vm2731, %v2694, %v2710
      %v2746 = vsel %vm2731, %v2696, %v2712
      %v2747 = vsel %vm2731, %v2698, %v2714
      %v2748 = vsel %vm2731, %v2716, %v2684
      %v2749 = vsel %vm2731, %v2718, %v2686
      %v2750 = vsel %vm2731, %v2720, %v2688
      %v2751 = vsel %vm2731, %v2722, %v2690
      %v2752 = vsel %vm2731, %v2724, %v2692
      %v2753 = vsel %vm2731, %v2726, %v2694
      %v2754 = vsel %vm2731, %v2728, %v2696
      %v2755 = vsel %vm2731, %v2730, %v2698
      %v2757 = vsel %vm797, %v2675, 0
      %v2760 = vsel %vm797, %v2676, 0
      %v2763 = vsel %vm797, %v2677, 0
      %v2766 = vsel %vm797, %v2678, 0
      %v2769 = vsel %vm797, %v2679, 0
      %v2772 = vsel %vm797, %v2680, 0
      %v2775 = vsel %vm797, %v2681, 0
      %v2778 = vsel %vm797, %v2682, 0
      %2780 = vmatprep.subr.mxu0 %v2732
      %2781 = vmatpush1.msra.mxu0 %v2740
      %2782 = vmatprep.subr.mxu0 %v2733
      %2783 = vmatpush1.msra.mxu0 %v2741
      %2784 = vmatprep.subr.mxu0 %v2734
      %2785 = vmatpush1.msra.mxu0 %v2742
      %2786 = vmatprep.subr.mxu0 %v2735
      %2787 = vmatpush1.msra.mxu0 %v2743
      %2788 = vmatprep.subr.mxu0 %v2736
      %2789 = vmatpush1.msra.mxu0 %v2744
      %2790 = vmatprep.subr.mxu0 %v2737
      %2791 = vmatpush1.msra.mxu0 %v2745
      %2792 = vmatprep.subr.mxu0 %v2738
      %2793 = vmatpush1.msra.mxu0 %v2746
      %2794 = vmatprep.subr.mxu0 %v2739
      %2795 = vmatpush1.msra.mxu0 %v2747
      %2796 = vmatprep.subr.mxu0 0.0
      %2797 = vmatpush1.msra.mxu0 0.0
      %2798 = vmatprep.subr.mxu0 0.0
      %2799 = vmatpush1.msra.mxu0 0.0
      %2800 = vmatprep.subr.mxu0 0.0
      %2801 = vmatpush1.msra.mxu0 0.0
      %2802 = vmatprep.subr.mxu0 0.0
      %2803 = vmatpush1.msra.mxu0 0.0
      %2804 = vmatprep.subr.mxu0 0.0
      %2805 = vmatpush1.msra.mxu0 0.0
      %2806 = vmatprep.subr.mxu0 0.0
      %2807 = vmatpush1.msra.mxu0 0.0
      %2808 = vmatprep.subr.mxu0 0.0
      %2809 = vmatpush1.msra.mxu0 0.0
      %2810 = vmatprep.subr.mxu0 0.0
      %2811 = vmatpush1.msra.mxu0 0.0
      %2812 = vmatprep.subr.mxu0 0.0
      %2813 = vmatpush1.msra.mxu0 0.0
      %2814 = vmatprep.subr.mxu0 0.0
      %2815 = vmatpush1.msra.mxu0 0.0
      %2816 = vmatprep.subr.mxu0 0.0
      %2817 = vmatpush1.msra.mxu0 0.0
      %2818 = vmatprep.subr.mxu0 0.0
      %2819 = vmatpush1.msra.mxu0 0.0
      %2820 = vmatprep.subr.mxu0 0.0
      %2821 = vmatpush1.msra.mxu0 0.0
      %2822 = vmatprep.subr.mxu0 0.0
      %2823 = vmatpush1.msra.mxu0 0.0
      %2824 = vmatprep.subr.mxu0 0.0
      %2825 = vmatpush1.msra.mxu0 0.0
      %2826 = vmatprep.subr.mxu0 0.0
      %2827 = vmatpush1.msra.mxu0 0.0
      %2828 = vmatprep.subr.mxu0 0.0
      %2829 = vmatpush1.msra.mxu0 0.0
      %2830 = vmatprep.subr.mxu0 0.0
      %2831 = vmatpush1.msra.mxu0 0.0
      %2832 = vmatprep.subr.mxu0 0.0
      %2833 = vmatpush1.msra.mxu0 0.0
      %2834 = vmatprep.subr.mxu0 0.0
      %2835 = vmatpush1.msra.mxu0 0.0
      %2836 = vmatprep.subr.mxu0 0.0
      %2837 = vmatpush1.msra.mxu0 0.0
      %2838 = vmatprep.subr.mxu0 0.0
      %2839 = vmatpush1.msra.mxu0 0.0
      %2840 = vmatprep.subr.mxu0 0.0
      %2841 = vmatpush1.msra.mxu0 0.0
      %2842 = vmatprep.subr.mxu0 0.0
      %2843 = vmatpush1.msra.mxu0 0.0
      %2844 = vmatprep.mubr.f32.mxu0 0.0
      %2845 = vmatmul.mubr.f32.gmra.mrb[0].mxu0 %v2757
      %v2846 = vpop.f32.mrb[0].mxu0
      %v2847 = vadd.f32 0.0, %v2846
      %v2848 = vpop.f32.mrb[0].mxu0
      %v2849 = vadd.f32 0.0, %v2848
      %2850 = vmatprep.mubr.f32.mxu0 0.0
      %2851 = vmatmul.mubr.f32.gmra.mrb[0].mxu0 %v2760
      %v2852 = vpop.f32.mrb[0].mxu0
      %v2853 = vadd.f32 0.0, %v2852
      %v2854 = vpop.f32.mrb[0].mxu0
      %v2855 = vadd.f32 0.0, %v2854
      %2856 = vmatprep.mubr.f32.mxu0 0.0
      %2857 = vmatmul.mubr.f32.gmra.mrb[0].mxu0 %v2763
      %v2858 = vpop.f32.mrb[0].mxu0
      %v2859 = vadd.f32 0.0, %v2858
      %v2860 = vpop.f32.mrb[0].mxu0
      %v2861 = vadd.f32 0.0, %v2860
      %2862 = vmatprep.mubr.f32.mxu0 0.0
      %2863 = vmatmul.mubr.f32.gmra.mrb[0].mxu0 %v2766
      %v2864 = vpop.f32.mrb[0].mxu0
      %v2865 = vadd.f32 0.0, %v2864
      %v2866 = vpop.f32.mrb[0].mxu0
      %v2867 = vadd.f32 0.0, %v2866
      %2868 = vmatprep.mubr.f32.mxu0 0.0
      %2869 = vmatmul.mubr.f32.gmra.mrb[0].mxu0 %v2769
      %v2870 = vpop.f32.mrb[0].mxu0
      %v2871 = vadd.f32 0.0, %v2870
      %v2872 = vpop.f32.mrb[0].mxu0
      %v2873 = vadd.f32 0.0, %v2872
      %2874 = vmatprep.mubr.f32.mxu0 0.0
      %2875 = vmatmul.mubr.f32.gmra.mrb[0].mxu0 %v2772
      %v2876 = vpop.f32.mrb[0].mxu0
      %v2877 = vadd.f32 0.0, %v2876
      %v2878 = vpop.f32.mrb[0].mxu0
      %v2879 = vadd.f32 0.0, %v2878
      %2880 = vmatprep.mubr.f32.mxu0 0.0
      %2881 = vmatmul.mubr.f32.gmra.mrb[0].mxu0 %v2775
      %v2882 = vpop.f32.mrb[0].mxu0
      %v2883 = vadd.f32 0.0, %v2882
      %v2884 = vpop.f32.mrb[0].mxu0
      %v2885 = vadd.f32 0.0, %v2884
      %2886 = vmatprep.mubr.f32.mxu0 0.0
      %2887 = vmatmul.mubr.f32.gmra.mrb[0].mxu0 %v2778
      %v2888 = vpop.f32.mrb[0].mxu0
      %v2889 = vadd.f32 0.0, %v2888
      %v2890 = vpop.f32.mrb[0].mxu0
      %v2891 = vadd.f32 0.0, %v2890
      %2892 = vdwg.mxu0
      %2893 = vmatprep.subr.mxu0 0.0
      %2894 = vmatpush1.msra.mxu0 %v2748
      %2895 = vmatprep.subr.mxu0 0.0
      %2896 = vmatpush1.msra.mxu0 %v2749
      %2897 = vmatprep.subr.mxu0 0.0
      %2898 = vmatpush1.msra.mxu0 %v2750
      %2899 = vmatprep.subr.mxu0 0.0
      %2900 = vmatpush1.msra.mxu0 %v2751
      %2901 = vmatprep.subr.mxu0 0.0
      %2902 = vmatpush1.msra.mxu0 %v2752
      %2903 = vmatprep.subr.mxu0 0.0
      %2904 = vmatpush1.msra.mxu0 %v2753
      %2905 = vmatprep.subr.mxu0 0.0
      %2906 = vmatpush1.msra.mxu0 %v2754
      %2907 = vmatprep.subr.mxu0 0.0
      %2908 = vmatpush1.msra.mxu0 %v2755
      %2909 = vmatprep.subr.mxu0 0.0
      %2910 = vmatpush1.msra.mxu0 0.0
      %2911 = vmatprep.subr.mxu0 0.0
      %2912 = vmatpush1.msra.mxu0 0.0
      %2913 = vmatprep.subr.mxu0 0.0
      %2914 = vmatpush1.msra.mxu0 0.0
      %2915 = vmatprep.subr.mxu0 0.0
      %2916 = vmatpush1.msra.mxu0 0.0
      %2917 = vmatprep.subr.mxu0 0.0
      %2918 = vmatpush1.msra.mxu0 0.0
      %2919 = vmatprep.subr.mxu0 0.0
      %2920 = vmatpush1.msra.mxu0 0.0
      %2921 = vmatprep.subr.mxu0 0.0
      %2922 = vmatpush1.msra.mxu0 0.0
      %2923 = vmatprep.subr.mxu0 0.0
      %2924 = vmatpush1.msra.mxu0 0.0
      %2925 = vmatprep.subr.mxu0 0.0
      %2926 = vmatpush1.msra.mxu0 0.0
      %2927 = vmatprep.subr.mxu0 0.0
      %2928 = vmatpush1.msra.mxu0 0.0
      %2929 = vmatprep.subr.mxu0 0.0
      %2930 = vmatpush1.msra.mxu0 0.0
      %2931 = vmatprep.subr.mxu0 0.0
      %2932 = vmatpush1.msra.mxu0 0.0
      %2933 = vmatprep.subr.mxu0 0.0
      %2934 = vmatpush1.msra.mxu0 0.0
      %2935 = vmatprep.subr.mxu0 0.0
      %2936 = vmatpush1.msra.mxu0 0.0
      %2937 = vmatprep.subr.mxu0 0.0
      %2938 = vmatpush1.msra.mxu0 0.0
      %2939 = vmatprep.subr.mxu0 0.0
      %2940 = vmatpush1.msra.mxu0 0.0
      %2941 = vmatprep.subr.mxu0 0.0
      %2942 = vmatpush1.msra.mxu0 0.0
      %2943 = vmatprep.subr.mxu0 0.0
      %2944 = vmatpush1.msra.mxu0 0.0
      %2945 = vmatprep.subr.mxu0 0.0
      %2946 = vmatpush1.msra.mxu0 0.0
      %2947 = vmatprep.subr.mxu0 0.0
      %2948 = vmatpush1.msra.mxu0 0.0
      %2949 = vmatprep.subr.mxu0 0.0
      %2950 = vmatpush1.msra.mxu0 0.0
      %2951 = vmatprep.subr.mxu0 0.0
      %2952 = vmatpush1.msra.mxu0 0.0
      %2953 = vmatprep.subr.mxu0 0.0
      %2954 = vmatpush1.msra.mxu0 0.0
      %2955 = vmatprep.subr.mxu0 0.0
      %2956 = vmatpush1.msra.mxu0 0.0
      %2957 = vmatprep.mubr.f32.mxu0 0.0
      %2958 = vmatmul.mubr.f32.gmra.mrb[0].mxu0 %v2757
      %v2959 = vpop.f32.mrb[0].mxu0
      %v2960 = vadd.f32 0.0, %v2959
      %v2961 = vpop.f32.mrb[0].mxu0
      %2962 = vmatprep.mubr.f32.mxu0 0.0
      %2963 = vmatmul.mubr.f32.gmra.mrb[0].mxu0 %v2760
      %v2964 = vpop.f32.mrb[0].mxu0
      %v2965 = vadd.f32 0.0, %v2964
      %v2966 = vpop.f32.mrb[0].mxu0
      %2967 = vmatprep.mubr.f32.mxu0 0.0
      %2968 = vmatmul.mubr.f32.gmra.mrb[0].mxu0 %v2763
      %v2969 = vpop.f32.mrb[0].mxu0
      %v2970 = vadd.f32 0.0, %v2969
      %v2971 = vpop.f32.mrb[0].mxu0
      %2972 = vmatprep.mubr.f32.mxu0 0.0
      %2973 = vmatmul.mubr.f32.gmra.mrb[0].mxu0 %v2766
      %v2974 = vpop.f32.mrb[0].mxu0
      %v2975 = vadd.f32 0.0, %v2974
      %v2976 = vpop.f32.mrb[0].mxu0
      %2977 = vmatprep.mubr.f32.mxu0 0.0
      %2978 = vmatmul.mubr.f32.gmra.mrb[0].mxu0 %v2769
      %v2979 = vpop.f32.mrb[0].mxu0
      %v2980 = vadd.f32 0.0, %v2979
      %v2981 = vpop.f32.mrb[0].mxu0
      %2982 = vmatprep.mubr.f32.mxu0 0.0
      %2983 = vmatmul.mubr.f32.gmra.mrb[0].mxu0 %v2772
      %v2984 = vpop.f32.mrb[0].mxu0
      %v2985 = vadd.f32 0.0, %v2984
      %v2986 = vpop.f32.mrb[0].mxu0
      %2987 = vmatprep.mubr.f32.mxu0 0.0
      %2988 = vmatmul.mubr.f32.gmra.mrb[0].mxu0 %v2775
      %v2989 = vpop.f32.mrb[0].mxu0
      %v2990 = vadd.f32 0.0, %v2989
      %v2991 = vpop.f32.mrb[0].mxu0
      %2992 = vmatprep.mubr.f32.mxu0 0.0
      %2993 = vmatmul.mubr.f32.gmra.mrb[0].mxu0 %v2778
      %v2994 = vpop.f32.mrb[0].mxu0
      %v2995 = vadd.f32 0.0, %v2994
      %v2996 = vpop.f32.mrb[0].mxu0
      %2997 = vdwg.mxu0
      %v2998 = vadd.f32 %v2650, %v2847
      %v2999 = vadd.f32 %v2651, %v2849
      %v3000 = vadd.f32 %v2652, %v2960
      %v3001 = vadd.f32 %v2653, %v2853
      %v3002 = vadd.f32 %v2654, %v2855
      %v3003 = vadd.f32 %v2655, %v2965
      %v3004 = vadd.f32 %v2656, %v2859
      %v3005 = vadd.f32 %v2657, %v2861
      %v3006 = vadd.f32 %v2658, %v2970
      %v3007 = vadd.f32 %v2659, %v2865
      %v3008 = vadd.f32 %v2660, %v2867
      %v3009 = vadd.f32 %v2661, %v2975
      %v3010 = vadd.f32 %v2662, %v2871
      %v3011 = vadd.f32 %v2663, %v2873
      %v3012 = vadd.f32 %v2664, %v2980
      %v3013 = vadd.f32 %v2665, %v2877
      %v3014 = vadd.f32 %v2666, %v2879
      %v3015 = vadd.f32 %v2667, %v2985
      %v3016 = vadd.f32 %v2668, %v2883
      %v3017 = vadd.f32 %v2669, %v2885
      %v3018 = vadd.f32 %v2670, %v2990
      %v3019 = vadd.f32 %v2671, %v2889
      %v3020 = vadd.f32 %v2672, %v2891
      %v3021 = vadd.f32 %v2673, %v2995
      %s3022 = scalar_lea.vmem %s4, 448
      %v3023 = vld [vmem:[%s3022] sm:$0xff]
      %v3024 = vld [vmem:[%s3022 + $0x8] sm:$0xff]
      %v3025 = vld [vmem:[%s3022 + $0x10] sm:$0xff]
      %v3026 = vld [vmem:[%s3022 + $0x18] sm:$0xff]
      %v3027 = vld [vmem:[%s3022 + $0x20] sm:$0xff]
      %v3028 = vld [vmem:[%s3022 + $0x28] sm:$0xff]
      %v3029 = vld [vmem:[%s3022 + $0x30] sm:$0xff]
      %v3030 = vld [vmem:[%s3022 + $0x38] sm:$0xff]
      %3031 = vrot.lane.b32.xlu0 %v657, 110
      %v3032 = vpop.permute.xlu0 %3031
      %3033 = vrot.lane.b32.xlu0 %v660, 110
      %v3034 = vpop.permute.xlu0 %3033
      %3035 = vrot.lane.b32.xlu0 %v663, 110
      %v3036 = vpop.permute.xlu0 %3035
      %3037 = vrot.lane.b32.xlu0 %v666, 110
      %v3038 = vpop.permute.xlu0 %3037
      %3039 = vrot.lane.b32.xlu0 %v669, 110
      %v3040 = vpop.permute.xlu0 %3039
      %3041 = vrot.lane.b32.xlu0 %v672, 110
      %v3042 = vpop.permute.xlu0 %3041
      %3043 = vrot.lane.b32.xlu0 %v675, 110
      %v3044 = vpop.permute.xlu0 %3043
      %3045 = vrot.lane.b32.xlu0 %v678, 110
      %v3046 = vpop.permute.xlu0 %3045
      %3047 = vrot.lane.b32.xlu0 %v658, 110
      %v3048 = vpop.permute.xlu0 %3047
      %3049 = vrot.lane.b32.xlu0 %v661, 110
      %v3050 = vpop.permute.xlu0 %3049
      %3051 = vrot.lane.b32.xlu0 %v664, 110
      %v3052 = vpop.permute.xlu0 %3051
      %3053 = vrot.lane.b32.xlu0 %v667, 110
      %v3054 = vpop.permute.xlu0 %3053
      %3055 = vrot.lane.b32.xlu0 %v670, 110
      %v3056 = vpop.permute.xlu0 %3055
      %3057 = vrot.lane.b32.xlu0 %v673, 110
      %v3058 = vpop.permute.xlu0 %3057
      %3059 = vrot.lane.b32.xlu0 %v676, 110
      %v3060 = vpop.permute.xlu0 %3059
      %3061 = vrot.lane.b32.xlu0 %v679, 110
      %v3062 = vpop.permute.xlu0 %3061
      %3063 = vrot.lane.b32.xlu0 %v659, 110
      %v3064 = vpop.permute.xlu0 %3063
      %3065 = vrot.lane.b32.xlu0 %v662, 110
      %v3066 = vpop.permute.xlu0 %3065
      %3067 = vrot.lane.b32.xlu0 %v665, 110
      %v3068 = vpop.permute.xlu0 %3067
      %3069 = vrot.lane.b32.xlu0 %v668, 110
      %v3070 = vpop.permute.xlu0 %3069
      %3071 = vrot.lane.b32.xlu0 %v671, 110
      %v3072 = vpop.permute.xlu0 %3071
      %3073 = vrot.lane.b32.xlu0 %v674, 110
      %v3074 = vpop.permute.xlu0 %3073
      %3075 = vrot.lane.b32.xlu0 %v677, 110
      %v3076 = vpop.permute.xlu0 %3075
      %3077 = vrot.lane.b32.xlu0 %v680, 110
      %v3078 = vpop.permute.xlu0 %3077
      %vm3079 = vcmp.lt.s32.totalorder %v771, 110
      %v3080 = vsel %vm3079, %v3048, %v3064
      %v3081 = vsel %vm3079, %v3050, %v3066
      %v3082 = vsel %vm3079, %v3052, %v3068
      %v3083 = vsel %vm3079, %v3054, %v3070
      %v3084 = vsel %vm3079, %v3056, %v3072
      %v3085 = vsel %vm3079, %v3058, %v3074
      %v3086 = vsel %vm3079, %v3060, %v3076
      %v3087 = vsel %vm3079, %v3062, %v3078
      %v3088 = vsel %vm3079, %v3032, %v3048
      %v3089 = vsel %vm3079, %v3034, %v3050
      %v3090 = vsel %vm3079, %v3036, %v3052
      %v3091 = vsel %vm3079, %v3038, %v3054
      %v3092 = vsel %vm3079, %v3040, %v3056
      %v3093 = vsel %vm3079, %v3042, %v3058
      %v3094 = vsel %vm3079, %v3044, %v3060
      %v3095 = vsel %vm3079, %v3046, %v3062
      %v3096 = vsel %vm3079, %v3064, %v3032
      %v3097 = vsel %vm3079, %v3066, %v3034
      %v3098 = vsel %vm3079, %v3068, %v3036
      %v3099 = vsel %vm3079, %v3070, %v3038
      %v3100 = vsel %vm3079, %v3072, %v3040
      %v3101 = vsel %vm3079, %v3074, %v3042
      %v3102 = vsel %vm3079, %v3076, %v3044
      %v3103 = vsel %vm3079, %v3078, %v3046
      %v3105 = vsel %vm797, %v3023, 0
      %v3108 = vsel %vm797, %v3024, 0
      %v3111 = vsel %vm797, %v3025, 0
      %v3114 = vsel %vm797, %v3026, 0
      %v3117 = vsel %vm797, %v3027, 0
      %v3120 = vsel %vm797, %v3028, 0
      %v3123 = vsel %vm797, %v3029, 0
      %v3126 = vsel %vm797, %v3030, 0
      %3128 = vmatprep.subr.mxu0 %v3080
      %3129 = vmatpush1.msra.mxu0 %v3088
      %3130 = vmatprep.subr.mxu0 %v3081
      %3131 = vmatpush1.msra.mxu0 %v3089
      %3132 = vmatprep.subr.mxu0 %v3082
      %3133 = vmatpush1.msra.mxu0 %v3090
      %3134 = vmatprep.subr.mxu0 %v3083
      %3135 = vmatpush1.msra.mxu0 %v3091
      %3136 = vmatprep.subr.mxu0 %v3084
      %3137 = vmatpush1.msra.mxu0 %v3092
      %3138 = vmatprep.subr.mxu0 %v3085
      %3139 = vmatpush1.msra.mxu0 %v3093
      %3140 = vmatprep.subr.mxu0 %v3086
      %3141 = vmatpush1.msra.mxu0 %v3094
      %3142 = vmatprep.subr.mxu0 %v3087
      %3143 = vmatpush1.msra.mxu0 %v3095
      %3144 = vmatprep.subr.mxu0 0.0
      %3145 = vmatpush1.msra.mxu0 0.0
      %3146 = vmatprep.subr.mxu0 0.0
      %3147 = vmatpush1.msra.mxu0 0.0
      %3148 = vmatprep.subr.mxu0 0.0
      %3149 = vmatpush1.msra.mxu0 0.0
      %3150 = vmatprep.subr.mxu0 0.0
      %3151 = vmatpush1.msra.mxu0 0.0
      %3152 = vmatprep.subr.mxu0 0.0
      %3153 = vmatpush1.msra.mxu0 0.0
      %3154 = vmatprep.subr.mxu0 0.0
      %3155 = vmatpush1.msra.mxu0 0.0
      %3156 = vmatprep.subr.mxu0 0.0
      %3157 = vmatpush1.msra.mxu0 0.0
      %3158 = vmatprep.subr.mxu0 0.0
      %3159 = vmatpush1.msra.mxu0 0.0
      %3160 = vmatprep.subr.mxu0 0.0
      %3161 = vmatpush1.msra.mxu0 0.0
      %3162 = vmatprep.subr.mxu0 0.0
      %3163 = vmatpush1.msra.mxu0 0.0
      %3164 = vmatprep.subr.mxu0 0.0
      %3165 = vmatpush1.msra.mxu0 0.0
      %3166 = vmatprep.subr.mxu0 0.0
      %3167 = vmatpush1.msra.mxu0 0.0
      %3168 = vmatprep.subr.mxu0 0.0
      %3169 = vmatpush1.msra.mxu0 0.0
      %3170 = vmatprep.subr.mxu0 0.0
      %3171 = vmatpush1.msra.mxu0 0.0
      %3172 = vmatprep.subr.mxu0 0.0
      %3173 = vmatpush1.msra.mxu0 0.0
      %3174 = vmatprep.subr.mxu0 0.0
      %3175 = vmatpush1.msra.mxu0 0.0
      %3176 = vmatprep.subr.mxu0 0.0
      %3177 = vmatpush1.msra.mxu0 0.0
      %3178 = vmatprep.subr.mxu0 0.0
      %3179 = vmatpush1.msra.mxu0 0.0
      %3180 = vmatprep.subr.mxu0 0.0
      %3181 = vmatpush1.msra.mxu0 0.0
      %3182 = vmatprep.subr.mxu0 0.0
      %3183 = vmatpush1.msra.mxu0 0.0
      %3184 = vmatprep.subr.mxu0 0.0
      %3185 = vmatpush1.msra.mxu0 0.0
      %3186 = vmatprep.subr.mxu0 0.0
      %3187 = vmatpush1.msra.mxu0 0.0
      %3188 = vmatprep.subr.mxu0 0.0
      %3189 = vmatpush1.msra.mxu0 0.0
      %3190 = vmatprep.subr.mxu0 0.0
      %3191 = vmatpush1.msra.mxu0 0.0
      %3192 = vmatprep.mubr.f32.mxu0 0.0
      %3193 = vmatmul.mubr.f32.gmra.mrb[0].mxu0 %v3105
      %v3194 = vpop.f32.mrb[0].mxu0
      %v3195 = vadd.f32 0.0, %v3194
      %v3196 = vpop.f32.mrb[0].mxu0
      %v3197 = vadd.f32 0.0, %v3196
      %3198 = vmatprep.mubr.f32.mxu0 0.0
      %3199 = vmatmul.mubr.f32.gmra.mrb[0].mxu0 %v3108
      %v3200 = vpop.f32.mrb[0].mxu0
      %v3201 = vadd.f32 0.0, %v3200
      %v3202 = vpop.f32.mrb[0].mxu0
      %v3203 = vadd.f32 0.0, %v3202
      %3204 = vmatprep.mubr.f32.mxu0 0.0
      %3205 = vmatmul.mubr.f32.gmra.mrb[0].mxu0 %v3111
      %v3206 = vpop.f32.mrb[0].mxu0
      %v3207 = vadd.f32 0.0, %v3206
      %v3208 = vpop.f32.mrb[0].mxu0
      %v3209 = vadd.f32 0.0, %v3208
      %3210 = vmatprep.mubr.f32.mxu0 0.0
      %3211 = vmatmul.mubr.f32.gmra.mrb[0].mxu0 %v3114
      %v3212 = vpop.f32.mrb[0].mxu0
      %v3213 = vadd.f32 0.0, %v3212
      %v3214 = vpop.f32.mrb[0].mxu0
      %v3215 = vadd.f32 0.0, %v3214
      %3216 = vmatprep.mubr.f32.mxu0 0.0
      %3217 = vmatmul.mubr.f32.gmra.mrb[0].mxu0 %v3117
      %v3218 = vpop.f32.mrb[0].mxu0
      %v3219 = vadd.f32 0.0, %v3218
      %v3220 = vpop.f32.mrb[0].mxu0
      %v3221 = vadd.f32 0.0, %v3220
      %3222 = vmatprep.mubr.f32.mxu0 0.0
      %3223 = vmatmul.mubr.f32.gmra.mrb[0].mxu0 %v3120
      %v3224 = vpop.f32.mrb[0].mxu0
      %v3225 = vadd.f32 0.0, %v3224
      %v3226 = vpop.f32.mrb[0].mxu0
      %v3227 = vadd.f32 0.0, %v3226
      %3228 = vmatprep.mubr.f32.mxu0 0.0
      %3229 = vmatmul.mubr.f32.gmra.mrb[0].mxu0 %v3123
      %v3230 = vpop.f32.mrb[0].mxu0
      %v3231 = vadd.f32 0.0, %v3230
      %v3232 = vpop.f32.mrb[0].mxu0
      %v3233 = vadd.f32 0.0, %v3232
      %3234 = vmatprep.mubr.f32.mxu0 0.0
      %3235 = vmatmul.mubr.f32.gmra.mrb[0].mxu0 %v3126
      %v3236 = vpop.f32.mrb[0].mxu0
      %v3237 = vadd.f32 0.0, %v3236
      %v3238 = vpop.f32.mrb[0].mxu0
      %v3239 = vadd.f32 0.0, %v3238
      %3240 = vdwg.mxu0
      %3241 = vmatprep.subr.mxu0 0.0
      %3242 = vmatpush1.msra.mxu0 %v3096
      %3243 = vmatprep.subr.mxu0 0.0
      %3244 = vmatpush1.msra.mxu0 %v3097
      %3245 = vmatprep.subr.mxu0 0.0
      %3246 = vmatpush1.msra.mxu0 %v3098
      %3247 = vmatprep.subr.mxu0 0.0
      %3248 = vmatpush1.msra.mxu0 %v3099
      %3249 = vmatprep.subr.mxu0 0.0
      %3250 = vmatpush1.msra.mxu0 %v3100
      %3251 = vmatprep.subr.mxu0 0.0
      %3252 = vmatpush1.msra.mxu0 %v3101
      %3253 = vmatprep.subr.mxu0 0.0
      %3254 = vmatpush1.msra.mxu0 %v3102
      %3255 = vmatprep.subr.mxu0 0.0
      %3256 = vmatpush1.msra.mxu0 %v3103
      %3257 = vmatprep.subr.mxu0 0.0
      %3258 = vmatpush1.msra.mxu0 0.0
      %3259 = vmatprep.subr.mxu0 0.0
      %3260 = vmatpush1.msra.mxu0 0.0
      %3261 = vmatprep.subr.mxu0 0.0
      %3262 = vmatpush1.msra.mxu0 0.0
      %3263 = vmatprep.subr.mxu0 0.0
      %3264 = vmatpush1.msra.mxu0 0.0
      %3265 = vmatprep.subr.mxu0 0.0
      %3266 = vmatpush1.msra.mxu0 0.0
      %3267 = vmatprep.subr.mxu0 0.0
      %3268 = vmatpush1.msra.mxu0 0.0
      %3269 = vmatprep.subr.mxu0 0.0
      %3270 = vmatpush1.msra.mxu0 0.0
      %3271 = vmatprep.subr.mxu0 0.0
      %3272 = vmatpush1.msra.mxu0 0.0
      %3273 = vmatprep.subr.mxu0 0.0
      %3274 = vmatpush1.msra.mxu0 0.0
      %3275 = vmatprep.subr.mxu0 0.0
      %3276 = vmatpush1.msra.mxu0 0.0
      %3277 = vmatprep.subr.mxu0 0.0
      %3278 = vmatpush1.msra.mxu0 0.0
      %3279 = vmatprep.subr.mxu0 0.0
      %3280 = vmatpush1.msra.mxu0 0.0
      %3281 = vmatprep.subr.mxu0 0.0
      %3282 = vmatpush1.msra.mxu0 0.0
      %3283 = vmatprep.subr.mxu0 0.0
      %3284 = vmatpush1.msra.mxu0 0.0
      %3285 = vmatprep.subr.mxu0 0.0
      %3286 = vmatpush1.msra.mxu0 0.0
      %3287 = vmatprep.subr.mxu0 0.0
      %3288 = vmatpush1.msra.mxu0 0.0
      %3289 = vmatprep.subr.mxu0 0.0
      %3290 = vmatpush1.msra.mxu0 0.0
      %3291 = vmatprep.subr.mxu0 0.0
      %3292 = vmatpush1.msra.mxu0 0.0
      %3293 = vmatprep.subr.mxu0 0.0
      %3294 = vmatpush1.msra.mxu0 0.0
      %3295 = vmatprep.subr.mxu0 0.0
      %3296 = vmatpush1.msra.mxu0 0.0
      %3297 = vmatprep.subr.mxu0 0.0
      %3298 = vmatpush1.msra.mxu0 0.0
      %3299 = vmatprep.subr.mxu0 0.0
      %3300 = vmatpush1.msra.mxu0 0.0
      %3301 = vmatprep.subr.mxu0 0.0
      %3302 = vmatpush1.msra.mxu0 0.0
      %3303 = vmatprep.subr.mxu0 0.0
      %3304 = vmatpush1.msra.mxu0 0.0
      %3305 = vmatprep.mubr.f32.mxu0 0.0
      %3306 = vmatmul.mubr.f32.gmra.mrb[0].mxu0 %v3105
      %v3307 = vpop.f32.mrb[0].mxu0
      %v3308 = vadd.f32 0.0, %v3307
      %v3309 = vpop.f32.mrb[0].mxu0
      %3310 = vmatprep.mubr.f32.mxu0 0.0
      %3311 = vmatmul.mubr.f32.gmra.mrb[0].mxu0 %v3108
      %v3312 = vpop.f32.mrb[0].mxu0
      %v3313 = vadd.f32 0.0, %v3312
      %v3314 = vpop.f32.mrb[0].mxu0
      %3315 = vmatprep.mubr.f32.mxu0 0.0
      %3316 = vmatmul.mubr.f32.gmra.mrb[0].mxu0 %v3111
      %v3317 = vpop.f32.mrb[0].mxu0
      %v3318 = vadd.f32 0.0, %v3317
      %v3319 = vpop.f32.mrb[0].mxu0
      %3320 = vmatprep.mubr.f32.mxu0 0.0
      %3321 = vmatmul.mubr.f32.gmra.mrb[0].mxu0 %v3114
      %v3322 = vpop.f32.mrb[0].mxu0
      %v3323 = vadd.f32 0.0, %v3322
      %v3324 = vpop.f32.mrb[0].mxu0
      %3325 = vmatprep.mubr.f32.mxu0 0.0
      %3326 = vmatmul.mubr.f32.gmra.mrb[0].mxu0 %v3117
      %v3327 = vpop.f32.mrb[0].mxu0
      %v3328 = vadd.f32 0.0, %v3327
      %v3329 = vpop.f32.mrb[0].mxu0
      %3330 = vmatprep.mubr.f32.mxu0 0.0
      %3331 = vmatmul.mubr.f32.gmra.mrb[0].mxu0 %v3120
      %v3332 = vpop.f32.mrb[0].mxu0
      %v3333 = vadd.f32 0.0, %v3332
      %v3334 = vpop.f32.mrb[0].mxu0
      %3335 = vmatprep.mubr.f32.mxu0 0.0
      %3336 = vmatmul.mubr.f32.gmra.mrb[0].mxu0 %v3123
      %v3337 = vpop.f32.mrb[0].mxu0
      %v3338 = vadd.f32 0.0, %v3337
      %v3339 = vpop.f32.mrb[0].mxu0
      %3340 = vmatprep.mubr.f32.mxu0 0.0
      %3341 = vmatmul.mubr.f32.gmra.mrb[0].mxu0 %v3126
      %v3342 = vpop.f32.mrb[0].mxu0
      %v3343 = vadd.f32 0.0, %v3342
      %v3344 = vpop.f32.mrb[0].mxu0
      %3345 = vdwg.mxu0
      %v3346 = vadd.f32 %v2998, %v3195
      %v3347 = vadd.f32 %v2999, %v3197
      %v3348 = vadd.f32 %v3000, %v3308
      %v3349 = vadd.f32 %v3001, %v3201
      %v3350 = vadd.f32 %v3002, %v3203
      %v3351 = vadd.f32 %v3003, %v3313
      %v3352 = vadd.f32 %v3004, %v3207
      %v3353 = vadd.f32 %v3005, %v3209
      %v3354 = vadd.f32 %v3006, %v3318
      %v3355 = vadd.f32 %v3007, %v3213
      %v3356 = vadd.f32 %v3008, %v3215
      %v3357 = vadd.f32 %v3009, %v3323
      %v3358 = vadd.f32 %v3010, %v3219
      %v3359 = vadd.f32 %v3011, %v3221
      %v3360 = vadd.f32 %v3012, %v3328
      %v3361 = vadd.f32 %v3013, %v3225
      %v3362 = vadd.f32 %v3014, %v3227
      %v3363 = vadd.f32 %v3015, %v3333
      %v3364 = vadd.f32 %v3016, %v3231
      %v3365 = vadd.f32 %v3017, %v3233
      %v3366 = vadd.f32 %v3018, %v3338
      %v3367 = vadd.f32 %v3019, %v3237
      %v3368 = vadd.f32 %v3020, %v3239
      %v3369 = vadd.f32 %v3021, %v3343
      %s3370 = scalar_lea.vmem %s4, 512
      %v3371 = vld [vmem:[%s3370] sm:$0xff]
      %v3372 = vld [vmem:[%s3370 + $0x8] sm:$0xff]
      %v3373 = vld [vmem:[%s3370 + $0x10] sm:$0xff]
      %v3374 = vld [vmem:[%s3370 + $0x18] sm:$0xff]
      %v3375 = vld [vmem:[%s3370 + $0x20] sm:$0xff]
      %v3376 = vld [vmem:[%s3370 + $0x28] sm:$0xff]
      %v3377 = vld [vmem:[%s3370 + $0x30] sm:$0xff]
      %v3378 = vld [vmem:[%s3370 + $0x38] sm:$0xff]
      %3379 = vrot.lane.b32.xlu0 %v657, 109
      %v3380 = vpop.permute.xlu0 %3379
      %3381 = vrot.lane.b32.xlu0 %v660, 109
      %v3382 = vpop.permute.xlu0 %3381
      %3383 = vrot.lane.b32.xlu0 %v663, 109
      %v3384 = vpop.permute.xlu0 %3383
      %3385 = vrot.lane.b32.xlu0 %v666, 109
      %v3386 = vpop.permute.xlu0 %3385
      %3387 = vrot.lane.b32.xlu0 %v669, 109
      %v3388 = vpop.permute.xlu0 %3387
      %3389 = vrot.lane.b32.xlu0 %v672, 109
      %v3390 = vpop.permute.xlu0 %3389
      %3391 = vrot.lane.b32.xlu0 %v675, 109
      %v3392 = vpop.permute.xlu0 %3391
      %3393 = vrot.lane.b32.xlu0 %v678, 109
      %v3394 = vpop.permute.xlu0 %3393
      %3395 = vrot.lane.b32.xlu0 %v658, 109
      %v3396 = vpop.permute.xlu0 %3395
      %3397 = vrot.lane.b32.xlu0 %v661, 109
      %v3398 = vpop.permute.xlu0 %3397
      %3399 = vrot.lane.b32.xlu0 %v664, 109
      %v3400 = vpop.permute.xlu0 %3399
      %3401 = vrot.lane.b32.xlu0 %v667, 109
      %v3402 = vpop.permute.xlu0 %3401
      %3403 = vrot.lane.b32.xlu0 %v670, 109
      %v3404 = vpop.permute.xlu0 %3403
      %3405 = vrot.lane.b32.xlu0 %v673, 109
      %v3406 = vpop.permute.xlu0 %3405
      %3407 = vrot.lane.b32.xlu0 %v676, 109
      %v3408 = vpop.permute.xlu0 %3407
      %3409 = vrot.lane.b32.xlu0 %v679, 109
      %v3410 = vpop.permute.xlu0 %3409
      %3411 = vrot.lane.b32.xlu0 %v659, 109
      %v3412 = vpop.permute.xlu0 %3411
      %3413 = vrot.lane.b32.xlu0 %v662, 109
      %v3414 = vpop.permute.xlu0 %3413
      %3415 = vrot.lane.b32.xlu0 %v665, 109
      %v3416 = vpop.permute.xlu0 %3415
      %3417 = vrot.lane.b32.xlu0 %v668, 109
      %v3418 = vpop.permute.xlu0 %3417
      %3419 = vrot.lane.b32.xlu0 %v671, 109
      %v3420 = vpop.permute.xlu0 %3419
      %3421 = vrot.lane.b32.xlu0 %v674, 109
      %v3422 = vpop.permute.xlu0 %3421
      %3423 = vrot.lane.b32.xlu0 %v677, 109
      %v3424 = vpop.permute.xlu0 %3423
      %3425 = vrot.lane.b32.xlu0 %v680, 109
      %v3426 = vpop.permute.xlu0 %3425
      %vm3427 = vcmp.lt.s32.totalorder %v771, 109
      %v3428 = vsel %vm3427, %v3396, %v3412
      %v3429 = vsel %vm3427, %v3398, %v3414
      %v3430 = vsel %vm3427, %v3400, %v3416
      %v3431 = vsel %vm3427, %v3402, %v3418
      %v3432 = vsel %vm3427, %v3404, %v3420
      %v3433 = vsel %vm3427, %v3406, %v3422
      %v3434 = vsel %vm3427, %v3408, %v3424
      %v3435 = vsel %vm3427, %v3410, %v3426
      %v3436 = vsel %vm3427, %v3380, %v3396
      %v3437 = vsel %vm3427, %v3382, %v3398
      %v3438 = vsel %vm3427, %v3384, %v3400
      %v3439 = vsel %vm3427, %v3386, %v3402
      %v3440 = vsel %vm3427, %v3388, %v3404
      %v3441 = vsel %vm3427, %v3390, %v3406
      %v3442 = vsel %vm3427, %v3392, %v3408
      %v3443 = vsel %vm3427, %v3394, %v3410
      %v3444 = vsel %vm3427, %v3412, %v3380
      %v3445 = vsel %vm3427, %v3414, %v3382
      %v3446 = vsel %vm3427, %v3416, %v3384
      %v3447 = vsel %vm3427, %v3418, %v3386
      %v3448 = vsel %vm3427, %v3420, %v3388
      %v3449 = vsel %vm3427, %v3422, %v3390
      %v3450 = vsel %vm3427, %v3424, %v3392
      %v3451 = vsel %vm3427, %v3426, %v3394
      %v3453 = vsel %vm797, %v3371, 0
      %v3456 = vsel %vm797, %v3372, 0
      %v3459 = vsel %vm797, %v3373, 0
      %v3462 = vsel %vm797, %v3374, 0
      %v3465 = vsel %vm797, %v3375, 0
      %v3468 = vsel %vm797, %v3376, 0
      %v3471 = vsel %vm797, %v3377, 0
      %v3474 = vsel %vm797, %v3378, 0
      %3476 = vmatprep.subr.mxu0 %v3428
      %3477 = vmatpush1.msra.mxu0 %v3436
      %3478 = vmatprep.subr.mxu0 %v3429
      %3479 = vmatpush1.msra.mxu0 %v3437
      %3480 = vmatprep.subr.mxu0 %v3430
      %3481 = vmatpush1.msra.mxu0 %v3438
      %3482 = vmatprep.subr.mxu0 %v3431
      %3483 = vmatpush1.msra.mxu0 %v3439
      %3484 = vmatprep.subr.mxu0 %v3432
      %3485 = vmatpush1.msra.mxu0 %v3440
      %3486 = vmatprep.subr.mxu0 %v3433
      %3487 = vmatpush1.msra.mxu0 %v3441
      %3488 = vmatprep.subr.mxu0 %v3434
      %3489 = vmatpush1.msra.mxu0 %v3442
      %3490 = vmatprep.subr.mxu0 %v3435
      %3491 = vmatpush1.msra.mxu0 %v3443
      %3492 = vmatprep.subr.mxu0 0.0
      %3493 = vmatpush1.msra.mxu0 0.0
      %3494 = vmatprep.subr.mxu0 0.0
      %3495 = vmatpush1.msra.mxu0 0.0
      %3496 = vmatprep.subr.mxu0 0.0
      %3497 = vmatpush1.msra.mxu0 0.0
      %3498 = vmatprep.subr.mxu0 0.0
      %3499 = vmatpush1.msra.mxu0 0.0
      %3500 = vmatprep.subr.mxu0 0.0
      %3501 = vmatpush1.msra.mxu0 0.0
      %3502 = vmatprep.subr.mxu0 0.0
      %3503 = vmatpush1.msra.mxu0 0.0
      %3504 = vmatprep.subr.mxu0 0.0
      %3505 = vmatpush1.msra.mxu0 0.0
      %3506 = vmatprep.subr.mxu0 0.0
      %3507 = vmatpush1.msra.mxu0 0.0
      %3508 = vmatprep.subr.mxu0 0.0
      %3509 = vmatpush1.msra.mxu0 0.0
      %3510 = vmatprep.subr.mxu0 0.0
      %3511 = vmatpush1.msra.mxu0 0.0
      %3512 = vmatprep.subr.mxu0 0.0
      %3513 = vmatpush1.msra.mxu0 0.0
      %3514 = vmatprep.subr.mxu0 0.0
      %3515 = vmatpush1.msra.mxu0 0.0
      %3516 = vmatprep.subr.mxu0 0.0
      %3517 = vmatpush1.msra.mxu0 0.0
      %3518 = vmatprep.subr.mxu0 0.0
      %3519 = vmatpush1.msra.mxu0 0.0
      %3520 = vmatprep.subr.mxu0 0.0
      %3521 = vmatpush1.msra.mxu0 0.0
      %3522 = vmatprep.subr.mxu0 0.0
      %3523 = vmatpush1.msra.mxu0 0.0
      %3524 = vmatprep.subr.mxu0 0.0
      %3525 = vmatpush1.msra.mxu0 0.0
      %3526 = vmatprep.subr.mxu0 0.0
      %3527 = vmatpush1.msra.mxu0 0.0
      %3528 = vmatprep.subr.mxu0 0.0
      %3529 = vmatpush1.msra.mxu0 0.0
      %3530 = vmatprep.subr.mxu0 0.0
      %3531 = vmatpush1.msra.mxu0 0.0
      %3532 = vmatprep.subr.mxu0 0.0
      %3533 = vmatpush1.msra.mxu0 0.0
      %3534 = vmatprep.subr.mxu0 0.0
      %3535 = vmatpush1.msra.mxu0 0.0
      %3536 = vmatprep.subr.mxu0 0.0
      %3537 = vmatpush1.msra.mxu0 0.0
      %3538 = vmatprep.subr.mxu0 0.0
      %3539 = vmatpush1.msra.mxu0 0.0
      %3540 = vmatprep.mubr.f32.mxu0 0.0
      %3541 = vmatmul.mubr.f32.gmra.mrb[0].mxu0 %v3453
      %v3542 = vpop.f32.mrb[0].mxu0
      %v3543 = vadd.f32 0.0, %v3542
      %v3544 = vpop.f32.mrb[0].mxu0
      %v3545 = vadd.f32 0.0, %v3544
      %3546 = vmatprep.mubr.f32.mxu0 0.0
      %3547 = vmatmul.mubr.f32.gmra.mrb[0].mxu0 %v3456
      %v3548 = vpop.f32.mrb[0].mxu0
      %v3549 = vadd.f32 0.0, %v3548
      %v3550 = vpop.f32.mrb[0].mxu0
      %v3551 = vadd.f32 0.0, %v3550
      %3552 = vmatprep.mubr.f32.mxu0 0.0
      %3553 = vmatmul.mubr.f32.gmra.mrb[0].mxu0 %v3459
      %v3554 = vpop.f32.mrb[0].mxu0
      %v3555 = vadd.f32 0.0, %v3554
      %v3556 = vpop.f32.mrb[0].mxu0
      %v3557 = vadd.f32 0.0, %v3556
      %3558 = vmatprep.mubr.f32.mxu0 0.0
      %3559 = vmatmul.mubr.f32.gmra.mrb[0].mxu0 %v3462
      %v3560 = vpop.f32.mrb[0].mxu0
      %v3561 = vadd.f32 0.0, %v3560
      %v3562 = vpop.f32.mrb[0].mxu0
      %v3563 = vadd.f32 0.0, %v3562
      %3564 = vmatprep.mubr.f32.mxu0 0.0
      %3565 = vmatmul.mubr.f32.gmra.mrb[0].mxu0 %v3465
      %v3566 = vpop.f32.mrb[0].mxu0
      %v3567 = vadd.f32 0.0, %v3566
      %v3568 = vpop.f32.mrb[0].mxu0
      %v3569 = vadd.f32 0.0, %v3568
      %3570 = vmatprep.mubr.f32.mxu0 0.0
      %3571 = vmatmul.mubr.f32.gmra.mrb[0].mxu0 %v3468
      %v3572 = vpop.f32.mrb[0].mxu0
      %v3573 = vadd.f32 0.0, %v3572
      %v3574 = vpop.f32.mrb[0].mxu0
      %v3575 = vadd.f32 0.0, %v3574
      %3576 = vmatprep.mubr.f32.mxu0 0.0
      %3577 = vmatmul.mubr.f32.gmra.mrb[0].mxu0 %v3471
      %v3578 = vpop.f32.mrb[0].mxu0
      %v3579 = vadd.f32 0.0, %v3578
      %v3580 = vpop.f32.mrb[0].mxu0
      %v3581 = vadd.f32 0.0, %v3580
      %3582 = vmatprep.mubr.f32.mxu0 0.0
      %3583 = vmatmul.mubr.f32.gmra.mrb[0].mxu0 %v3474
      %v3584 = vpop.f32.mrb[0].mxu0
      %v3585 = vadd.f32 0.0, %v3584
      %v3586 = vpop.f32.mrb[0].mxu0
      %v3587 = vadd.f32 0.0, %v3586
      %3588 = vdwg.mxu0
      %3589 = vmatprep.subr.mxu0 0.0
      %3590 = vmatpush1.msra.mxu0 %v3444
      %3591 = vmatprep.subr.mxu0 0.0
      %3592 = vmatpush1.msra.mxu0 %v3445
      %3593 = vmatprep.subr.mxu0 0.0
      %3594 = vmatpush1.msra.mxu0 %v3446
      %3595 = vmatprep.subr.mxu0 0.0
      %3596 = vmatpush1.msra.mxu0 %v3447
      %3597 = vmatprep.subr.mxu0 0.0
      %3598 = vmatpush1.msra.mxu0 %v3448
      %3599 = vmatprep.subr.mxu0 0.0
      %3600 = vmatpush1.msra.mxu0 %v3449
      %3601 = vmatprep.subr.mxu0 0.0
      %3602 = vmatpush1.msra.mxu0 %v3450
      %3603 = vmatprep.subr.mxu0 0.0
      %3604 = vmatpush1.msra.mxu0 %v3451
      %3605 = vmatprep.subr.mxu0 0.0
      %3606 = vmatpush1.msra.mxu0 0.0
      %3607 = vmatprep.subr.mxu0 0.0
      %3608 = vmatpush1.msra.mxu0 0.0
      %3609 = vmatprep.subr.mxu0 0.0
      %3610 = vmatpush1.msra.mxu0 0.0
      %3611 = vmatprep.subr.mxu0 0.0
      %3612 = vmatpush1.msra.mxu0 0.0
      %3613 = vmatprep.subr.mxu0 0.0
      %3614 = vmatpush1.msra.mxu0 0.0
      %3615 = vmatprep.subr.mxu0 0.0
      %3616 = vmatpush1.msra.mxu0 0.0
      %3617 = vmatprep.subr.mxu0 0.0
      %3618 = vmatpush1.msra.mxu0 0.0
      %3619 = vmatprep.subr.mxu0 0.0
      %3620 = vmatpush1.msra.mxu0 0.0
      %3621 = vmatprep.subr.mxu0 0.0
      %3622 = vmatpush1.msra.mxu0 0.0
      %3623 = vmatprep.subr.mxu0 0.0
      %3624 = vmatpush1.msra.mxu0 0.0
      %3625 = vmatprep.subr.mxu0 0.0
      %3626 = vmatpush1.msra.mxu0 0.0
      %3627 = vmatprep.subr.mxu0 0.0
      %3628 = vmatpush1.msra.mxu0 0.0
      %3629 = vmatprep.subr.mxu0 0.0
      %3630 = vmatpush1.msra.mxu0 0.0
      %3631 = vmatprep.subr.mxu0 0.0
      %3632 = vmatpush1.msra.mxu0 0.0
      %3633 = vmatprep.subr.mxu0 0.0
      %3634 = vmatpush1.msra.mxu0 0.0
      %3635 = vmatprep.subr.mxu0 0.0
      %3636 = vmatpush1.msra.mxu0 0.0
      %3637 = vmatprep.subr.mxu0 0.0
      %3638 = vmatpush1.msra.mxu0 0.0
      %3639 = vmatprep.subr.mxu0 0.0
      %3640 = vmatpush1.msra.mxu0 0.0
      %3641 = vmatprep.subr.mxu0 0.0
      %3642 = vmatpush1.msra.mxu0 0.0
      %3643 = vmatprep.subr.mxu0 0.0
      %3644 = vmatpush1.msra.mxu0 0.0
      %3645 = vmatprep.subr.mxu0 0.0
      %3646 = vmatpush1.msra.mxu0 0.0
      %3647 = vmatprep.subr.mxu0 0.0
      %3648 = vmatpush1.msra.mxu0 0.0
      %3649 = vmatprep.subr.mxu0 0.0
      %3650 = vmatpush1.msra.mxu0 0.0
      %3651 = vmatprep.subr.mxu0 0.0
      %3652 = vmatpush1.msra.mxu0 0.0
      %3653 = vmatprep.mubr.f32.mxu0 0.0
      %3654 = vmatmul.mubr.f32.gmra.mrb[0].mxu0 %v3453
      %v3655 = vpop.f32.mrb[0].mxu0
      %v3656 = vadd.f32 0.0, %v3655
      %v3657 = vpop.f32.mrb[0].mxu0
      %3658 = vmatprep.mubr.f32.mxu0 0.0
      %3659 = vmatmul.mubr.f32.gmra.mrb[0].mxu0 %v3456
      %v3660 = vpop.f32.mrb[0].mxu0
      %v3661 = vadd.f32 0.0, %v3660
      %v3662 = vpop.f32.mrb[0].mxu0
      %3663 = vmatprep.mubr.f32.mxu0 0.0
      %3664 = vmatmul.mubr.f32.gmra.mrb[0].mxu0 %v3459
      %v3665 = vpop.f32.mrb[0].mxu0
      %v3666 = vadd.f32 0.0, %v3665
      %v3667 = vpop.f32.mrb[0].mxu0
      %3668 = vmatprep.mubr.f32.mxu0 0.0
      %3669 = vmatmul.mubr.f32.gmra.mrb[0].mxu0 %v3462
      %v3670 = vpop.f32.mrb[0].mxu0
      %v3671 = vadd.f32 0.0, %v3670
      %v3672 = vpop.f32.mrb[0].mxu0
      %3673 = vmatprep.mubr.f32.mxu0 0.0
      %3674 = vmatmul.mubr.f32.gmra.mrb[0].mxu0 %v3465
      %v3675 = vpop.f32.mrb[0].mxu0
      %v3676 = vadd.f32 0.0, %v3675
      %v3677 = vpop.f32.mrb[0].mxu0
      %3678 = vmatprep.mubr.f32.mxu0 0.0
      %3679 = vmatmul.mubr.f32.gmra.mrb[0].mxu0 %v3468
      %v3680 = vpop.f32.mrb[0].mxu0
      %v3681 = vadd.f32 0.0, %v3680
      %v3682 = vpop.f32.mrb[0].mxu0
      %3683 = vmatprep.mubr.f32.mxu0 0.0
      %3684 = vmatmul.mubr.f32.gmra.mrb[0].mxu0 %v3471
      %v3685 = vpop.f32.mrb[0].mxu0
      %v3686 = vadd.f32 0.0, %v3685
      %v3687 = vpop.f32.mrb[0].mxu0
      %3688 = vmatprep.mubr.f32.mxu0 0.0
      %3689 = vmatmul.mubr.f32.gmra.mrb[0].mxu0 %v3474
      %v3690 = vpop.f32.mrb[0].mxu0
      %v3691 = vadd.f32 0.0, %v3690
      %v3692 = vpop.f32.mrb[0].mxu0
      %3693 = vdwg.mxu0
      %v3694 = vadd.f32 %v3346, %v3543
      %v3695 = vadd.f32 %v3347, %v3545
      %v3696 = vadd.f32 %v3348, %v3656
      %v3697 = vadd.f32 %v3349, %v3549
      %v3698 = vadd.f32 %v3350, %v3551
      %v3699 = vadd.f32 %v3351, %v3661
      %v3700 = vadd.f32 %v3352, %v3555
      %v3701 = vadd.f32 %v3353, %v3557
      %v3702 = vadd.f32 %v3354, %v3666
      %v3703 = vadd.f32 %v3355, %v3561
      %v3704 = vadd.f32 %v3356, %v3563
      %v3705 = vadd.f32 %v3357, %v3671
      %v3706 = vadd.f32 %v3358, %v3567
      %v3707 = vadd.f32 %v3359, %v3569
      %v3708 = vadd.f32 %v3360, %v3676
      %v3709 = vadd.f32 %v3361, %v3573
      %v3710 = vadd.f32 %v3362, %v3575
      %v3711 = vadd.f32 %v3363, %v3681
      %v3712 = vadd.f32 %v3364, %v3579
      %v3713 = vadd.f32 %v3365, %v3581
      %v3714 = vadd.f32 %v3366, %v3686
      %v3715 = vadd.f32 %v3367, %v3585
      %v3716 = vadd.f32 %v3368, %v3587
      %v3717 = vadd.f32 %v3369, %v3691
      %v3718 = vld [vmem:[%s5] sm:$0xff]
      %v3719 = vld [vmem:[%s5 + $0x8] sm:$0xff]
      %v3720 = vld [vmem:[%s5 + $0x10] sm:$0xff]
      %v3721 = vld [vmem:[%s5 + $0x18] sm:$0xff]
      %v3722 = vld [vmem:[%s5 + $0x20] sm:$0xff]
      %v3723 = vld [vmem:[%s5 + $0x28] sm:$0xff]
      %v3724 = vld [vmem:[%s5 + $0x30] sm:$0xff]
      %v3725 = vld [vmem:[%s5 + $0x38] sm:$0xff]
      %3727 = vset.pattern.permute.xlu0 0
      %3728 = vperm.xlu0 %3727, %v3718
      %v3729 = vpop.permute.xlu0 %3728
      %3732 = vset.pattern.permute.xlu0 0
      %3733 = vperm.xlu0 %3732, %v3719
      %v3734 = vpop.permute.xlu0 %3733
      %3737 = vset.pattern.permute.xlu0 0
      %3738 = vperm.xlu0 %3737, %v3720
      %v3739 = vpop.permute.xlu0 %3738
      %3742 = vset.pattern.permute.xlu0 0
      %3743 = vperm.xlu0 %3742, %v3721
      %v3744 = vpop.permute.xlu0 %3743
      %3747 = vset.pattern.permute.xlu0 0
      %3748 = vperm.xlu0 %3747, %v3722
      %v3749 = vpop.permute.xlu0 %3748
      %3752 = vset.pattern.permute.xlu0 0
      %3753 = vperm.xlu0 %3752, %v3723
      %v3754 = vpop.permute.xlu0 %3753
      %3757 = vset.pattern.permute.xlu0 0
      %3758 = vperm.xlu0 %3757, %v3724
      %v3759 = vpop.permute.xlu0 %3758
      %3762 = vset.pattern.permute.xlu0 0
      %3763 = vperm.xlu0 %3762, %v3725
      %v3764 = vpop.permute.xlu0 %3763
      %v3766 = vadd.f32 %v3694, %v3729
      %v3767 = vadd.f32 %v3695, %v3729
      %v3768 = vadd.f32 %v3696, %v3729
      %v3769 = vadd.f32 %v3697, %v3734
      %v3770 = vadd.f32 %v3698, %v3734
      %v3771 = vadd.f32 %v3699, %v3734
      %v3772 = vadd.f32 %v3700, %v3739
      %v3773 = vadd.f32 %v3701, %v3739
      %v3774 = vadd.f32 %v3702, %v3739
      %v3775 = vadd.f32 %v3703, %v3744
      %v3776 = vadd.f32 %v3704, %v3744
      %v3777 = vadd.f32 %v3705, %v3744
      %v3778 = vadd.f32 %v3706, %v3749
      %v3779 = vadd.f32 %v3707, %v3749
      %v3780 = vadd.f32 %v3708, %v3749
      %v3781 = vadd.f32 %v3709, %v3754
      %v3782 = vadd.f32 %v3710, %v3754
      %v3783 = vadd.f32 %v3711, %v3754
      %v3784 = vadd.f32 %v3712, %v3759
      %v3785 = vadd.f32 %v3713, %v3759
      %v3786 = vadd.f32 %v3714, %v3759
      %v3787 = vadd.f32 %v3715, %v3764
      %v3788 = vadd.f32 %v3716, %v3764
      %v3789 = vadd.f32 %v3717, %v3764
      %v3790 = vmax.f32 %v3766, 0.0
      %v3791 = vmax.f32 %v3767, 0.0
      %v3792 = vmax.f32 %v3768, 0.0
      %v3793 = vmax.f32 %v3769, 0.0
      %v3794 = vmax.f32 %v3770, 0.0
      %v3795 = vmax.f32 %v3771, 0.0
      %v3796 = vmax.f32 %v3772, 0.0
      %v3797 = vmax.f32 %v3773, 0.0
      %v3798 = vmax.f32 %v3774, 0.0
      %v3799 = vmax.f32 %v3775, 0.0
      %v3800 = vmax.f32 %v3776, 0.0
      %v3801 = vmax.f32 %v3777, 0.0
      %v3802 = vmax.f32 %v3778, 0.0
      %v3803 = vmax.f32 %v3779, 0.0
      %v3804 = vmax.f32 %v3780, 0.0
      %v3805 = vmax.f32 %v3781, 0.0
      %v3806 = vmax.f32 %v3782, 0.0
      %v3807 = vmax.f32 %v3783, 0.0
      %v3808 = vmax.f32 %v3784, 0.0
      %v3809 = vmax.f32 %v3785, 0.0
      %v3810 = vmax.f32 %v3786, 0.0
      %v3811 = vmax.f32 %v3787, 0.0
      %v3812 = vmax.f32 %v3788, 0.0
      %v3813 = vmax.f32 %v3789, 0.0
      %3814 = vst [vmem:[%s286] sm:$0xff] %v3790
      %3815 = vst [vmem:[%s286 + $0x8] sm:$0xff] %v3791
      %3816 = vst [vmem:[%s286 + $0x10] sm:$0xff] %v3792
      %3817 = vst [vmem:[%s286 + $0x18] sm:$0xff] %v3793
      %3818 = vst [vmem:[%s286 + $0x20] sm:$0xff] %v3794
      %3819 = vst [vmem:[%s286 + $0x28] sm:$0xff] %v3795
      %3820 = vst [vmem:[%s286 + $0x30] sm:$0xff] %v3796
      %3821 = vst [vmem:[%s286 + $0x38] sm:$0xff] %v3797
      %3822 = vst [vmem:[%s286 + $0x40] sm:$0xff] %v3798
      %3823 = vst [vmem:[%s286 + $0x48] sm:$0xff] %v3799
      %3824 = vst [vmem:[%s286 + $0x50] sm:$0xff] %v3800
      %3825 = vst [vmem:[%s286 + $0x58] sm:$0xff] %v3801
      %3826 = vst [vmem:[%s286 + $0x60] sm:$0xff] %v3802
      %3827 = vst [vmem:[%s286 + $0x68] sm:$0xff] %v3803
      %3828 = vst [vmem:[%s286 + $0x70] sm:$0xff] %v3804
      %3829 = vst [vmem:[%s286 + $0x78] sm:$0xff] %v3805
      %3830 = vst [vmem:[%s286 + $0x80] sm:$0xff] %v3806
      %3831 = vst [vmem:[%s286 + $0x88] sm:$0xff] %v3807
      %3832 = vst [vmem:[%s286 + $0x90] sm:$0xff] %v3808
      %3833 = vst [vmem:[%s286 + $0x98] sm:$0xff] %v3809
      %3834 = vst [vmem:[%s286 + $0xa0] sm:$0xff] %v3810
      %3835 = vst [vmem:[%s286 + $0xa8] sm:$0xff] %v3811
      %3836 = vst [vmem:[%s286 + $0xb0] sm:$0xff] %v3812
      %3837 = vst [vmem:[%s286 + $0xb8] sm:$0xff] %v3813
      %p3838 = scmp.lt.s32.totalorder %s19, 1
      %s3839 = scalar_select %p3838, %s19, 1
      %s3840 = smul.addr %s3839, 24
      %s3841 = smul.addr %s3840, 8
      %s3842 = scalar_lea.vmem %s6, %s3841
      %p3843 = scmp.lt.s32.totalorder %s19, 1
      %s3844 = scalar_select %p3843, %s19, 1
      %s3845 = smul.addr %s3844, 24
      %s3846 = smul.addr %s3845, 8
      %s3847 = scalar_lea.vmem %s7, %s3846
      // Predicated region
      $region45: #{two_conv_bn_rule.1} parent=43 // pred_check
        %p3848 = pneg %p168
      $region46: #{two_conv_bn_rule.1} parent=43 // pred_check_branch
        %3850 = sbr.rel (%p3848) target = $region48
      $region47: #{two_conv_bn_rule.1} parent=43 // pred_region
        _
      $region48: #{two_conv_bn_rule.1} parent=43 // pred_fallthru
        _
      // Predicated region
      $region49: #{two_conv_bn_rule.1} parent=43 // pred_check
        %p3851 = pneg %p194
      $region50: #{two_conv_bn_rule.1} parent=43 // pred_check_branch
        %3853 = sbr.rel (%p3851) target = $region52
      $region51: #{two_conv_bn_rule.1} parent=43 // pred_region
        _
      $region52: #{two_conv_bn_rule.1} parent=43 // pred_fallthru
        _
    $region44: #{two_conv_bn_rule.1} parent=5 // pred_fallthru
      _
    %p3854 = scmp.le.s32.totalorder 2, %s14
    // Predicated region
    $region53: #{two_conv_bn_rule.1} parent=5 // pred_check
      %p3855 = pneg %p3854
    $region54: #{two_conv_bn_rule.1} parent=5 // pred_check_branch
      %3857 = sbr.rel (%p3855) target = $region56
    $region55: #{two_conv_bn_rule.1} parent=5 // pred_region
      %s3858 = ssub.s32 %s14, 2
      // Predicated region
      $region57: #{two_conv_bn_rule.1} parent=55 // pred_check
        %p3859 = pneg %p174
      $region58: #{two_conv_bn_rule.1} parent=55 // pred_check_branch
        %3861 = sbr.rel (%p3859) target = $region60
      $region59: #{two_conv_bn_rule.1} parent=55 // pred_region
        %p3862 = scmp.lt.s32.totalorder %s20, 1
        %s3863 = scalar_select %p3862, %s20, 1
        %s3864 = smul.addr %s3863, 24
        %s3865 = smul.addr %s3864, 8
        %s3866 = scalar_lea.vmem %s6, %s3865
      $region60: #{two_conv_bn_rule.1} parent=55 // pred_fallthru
        _
      // Predicated region
      $region61: #{two_conv_bn_rule.1} parent=55 // pred_check
        %p3867 = pneg %p200
      $region62: #{two_conv_bn_rule.1} parent=55 // pred_check_branch
        %3869 = sbr.rel (%p3867) target = $region64
      $region63: #{two_conv_bn_rule.1} parent=55 // pred_region
        %p3870 = scmp.lt.s32.totalorder %s20, 1
        %s3871 = scalar_select %p3870, %s20, 1
        %s3872 = smul.addr %s3871, 24
        %s3873 = smul.addr %s3872, 8
        %s3874 = scalar_lea.vmem %s7, %s3873
      $region64: #{two_conv_bn_rule.1} parent=55 // pred_fallthru
        _
    $region56: #{two_conv_bn_rule.1} parent=5 // pred_fallthru
      _
  $region6: #{two_conv_bn_rule.1} parent=0 // loop_footer
    %s18 = sadd.s32 1, %s14
  $region7: #{two_conv_bn_rule.1} parent=0 // loop_footer_branch
    %13 = sbr.rel target = $region3
  $region8: #{two_conv_bn_rule.1} parent=0 // loop_exit
    _

</llo_original>
